<compile_context>
chip_gen: v7x
topology: tpu7x:2x2x1
jax: 0.10.0
libtpu: 0.0.40
codegen_flags: <defaults>
</compile_context>

<pallas_src>
import jax
import jax.numpy as jnp
from jax import lax
from jax.experimental import pallas as pl
from jax.experimental.pallas import tpu as pltpu

# ----- original model sizes ------------------------------------------------
EMBED_SIZE = 100      # embed_size
HIDDEN_SIZE = 100     # hidden_size
PROJ_DIM = 200        # projection_dim (module hard-codes 200)
NUM_CLASSES = 3
VOCAB_SIZE = 50
PAD_ID = 0

# ----- lane-padded sizes for the TPU kernel --------------------------------
HP = 128              # padded per-LSTM hidden dim
HF = 2 * HP           # fused hidden width: [h_prem | h_hyp] = 256
GF = 4 * HF           # fused gate width:   [i | f | g | o], each 256 = 1024
PP = 256              # padded projection dim
OUT_P = 128           # padded (lane-dense) output width; real logits = first 3

# column offsets of the real 100-wide gate blocks inside the fused gate layout
_PREM_OFF = [g * HF for g in range(4)]          # 0, 256, 512, 768
_HYP_OFF = [g * HF + HP for g in range(4)]      # 128, 384, 640, 896


# ---------------------------------------------------------------------------
# Fused kernel: ONE block-diagonal LSTM recurrence (premise + hypothesis
# simultaneously, length-frozen per half) + tanh-MLP head, single launch.
# gx refs hold the precomputed per-token gate preactivations (emb@W_ih + b),
# lane-flattened to [B, T*GF] so step t is the static lane slice t*GF:(t+1)*GF.
# ---------------------------------------------------------------------------
def _fused_kernel(gxp_ref, gxh_ref, plen_ref, hlen_ref, whh_ref,
                  w1_ref, b1_ref, w2_ref, b2_ref, w3_ref, b3_ref, out_ref):
    B = out_ref.shape[0]
    TP = gxp_ref.shape[1] // GF
    TH = gxh_ref.shape[1] // GF
    TMAX = max(TP, TH)

    # Per-lane sequence length: premise lanes [0:HP) follow prem_len,
    # hypothesis lanes [HP:HF) follow hyp_len (pack_padded_sequence freeze).
    lane = lax.broadcasted_iota(jnp.int32, (B, HF), 1)
    lens = jnp.where(lane < HP, plen_ref[...], hlen_ref[...])      # [B, HF]

    h = jnp.zeros((B, HF), jnp.float32)
    c = jnp.zeros((B, HF), jnp.float32)

    # Fully unrolled fused recurrence: only h @ W_hh sits on the serial path.
    # whh_ref is read inside the step (not hoisted) so the 1 MiB weight streams
    # from VMEM per step instead of being pinned (and spilled) across vregs.
    for t in range(TMAX):
        gates = jnp.dot(h, whh_ref[...],
                        preferred_element_type=jnp.float32)        # [B, GF]
        if t < TP:
            gates = gates + gxp_ref[:, t * GF:(t + 1) * GF]
        if t < TH:
            gates = gates + gxh_ref[:, t * GF:(t + 1) * GF]
        # fused gate layout: i|f|g|o, each 256 lanes (prem 0:128 | hyp 128:256)
        i = jax.nn.sigmoid(gates[:, 0 * HF:1 * HF])
        f = jax.nn.sigmoid(gates[:, 1 * HF:2 * HF])
        g = jnp.tanh(gates[:, 2 * HF:3 * HF])
        o = jax.nn.sigmoid(gates[:, 3 * HF:4 * HF])
        c_new = f * c + i * g
        h_new = o * jnp.tanh(c_new)
        valid = lens > t                                           # [B, HF]
        h = jnp.where(valid, h_new, h)
        c = jnp.where(valid, c_new, c)

    # torch.cat((h_prem, h_hyp), dim=1) is exactly the fused h layout.
    x = jnp.tanh(jnp.dot(h, w1_ref[...], preferred_element_type=jnp.float32)
                 + b1_ref[...])
    x = jnp.tanh(jnp.dot(x, w2_ref[...], preferred_element_type=jnp.float32)
                 + b2_ref[...])
    out_ref[...] = jnp.tanh(jnp.dot(x, w3_ref[...],
                                    preferred_element_type=jnp.float32)
                            + b3_ref[...])


# ---------------------------------------------------------------------------
# Parameter construction (deterministic, synthetic) at ORIGINAL sizes.
# ---------------------------------------------------------------------------
def init_params(key):
    keys = jax.random.split(key, 12)
    s = 0.1

    def lstm_params(k0, k1, k2):
        # stored as [E, 4H] / [H, 4H] so the forward computes x @ W
        w_ih = jax.random.normal(k0, (EMBED_SIZE, 4 * HIDDEN_SIZE), jnp.float32) * s
        w_hh = jax.random.normal(k1, (HIDDEN_SIZE, 4 * HIDDEN_SIZE), jnp.float32) * s
        b = jax.random.normal(k2, (1, 4 * HIDDEN_SIZE), jnp.float32) * s  # b_ih+b_hh
        return w_ih, w_hh, b

    emb = jax.random.normal(keys[0], (VOCAB_SIZE, EMBED_SIZE), jnp.float32) * s
    emb = emb.at[PAD_ID].set(0.0)                  # padding_idx row is zero
    prem_lstm = lstm_params(keys[1], keys[2], keys[3])
    hyp_lstm = lstm_params(keys[4], keys[5], keys[6])
    w1 = jax.random.normal(keys[7], (2 * HIDDEN_SIZE, PROJ_DIM), jnp.float32) * s
    b1 = jax.random.normal(keys[8], (1, PROJ_DIM), jnp.float32) * s
    w2 = jax.random.normal(keys[9], (PROJ_DIM, PROJ_DIM), jnp.float32) * s
    b2 = jax.random.normal(keys[10], (1, PROJ_DIM), jnp.float32) * s
    w3 = jax.random.normal(keys[11], (PROJ_DIM, NUM_CLASSES), jnp.float32) * s
    b3 = jnp.zeros((1, NUM_CLASSES), jnp.float32)
    return dict(emb=emb, prem=prem_lstm, hyp=hyp_lstm,
                w1=w1, b1=b1, w2=w2, b2=b2, w3=w3, b3=b3)


# ---------------------------------------------------------------------------
# Pack parameters into the fused, 128-lane-aligned layout used by the kernel.
# Padded gate columns / rows are zero, so padded lanes of h/c stay exactly 0
# through the recurrence (preact 0 -> g=0 -> c=0 -> h=0); no masking needed.
# ---------------------------------------------------------------------------
def _scatter_gates(dst, src, row0, col_offsets):
    # src: [rows, 4*HIDDEN_SIZE] in the original i|f|g|o layout (100 each)
    for gi, off in enumerate(col_offsets):
        dst = dst.at[row0:row0 + src.shape[0], off:off + HIDDEN_SIZE].set(
            src[:, gi * HIDDEN_SIZE:(gi + 1) * HIDDEN_SIZE])
    return dst


def prepare_padded_params(params):
    emb = params["emb"]
    p_wih, p_whh, p_b = params["prem"]
    h_wih, h_whh, h_b = params["hyp"]

    # Per-token gate preactivation tables: emb @ W_ih + (b_ih + b_hh) folded.
    # (bias-in-table is exact: it only matters at valid steps, where it is the
    #  same term the reference adds once per step.)
    tbl_p_raw = emb @ p_wih + p_b                  # [VOCAB, 4H]
    tbl_h_raw = emb @ h_wih + h_b
    tbl_p = _scatter_gates(jnp.zeros((VOCAB_SIZE, GF), jnp.float32),
                           tbl_p_raw, 0, _PREM_OFF)
    tbl_h = _scatter_gates(jnp.zeros((VOCAB_SIZE, GF), jnp.float32),
                           tbl_h_raw, 0, _HYP_OFF)

    # Block-diagonal recurrent weight: prem h rows 0:100, hyp h rows 128:228.
    whh = jnp.zeros((HF, GF), jnp.float32)
    whh = _scatter_gates(whh, p_whh, 0, _PREM_OFF)
    whh = _scatter_gates(whh, h_whh, HP, _HYP_OFF)

    # MLP head: W1 rows follow the fused h layout (prem half / hyp half).
    w1 = jnp.zeros((HF, PP), jnp.float32)
    w1 = w1.at[:HIDDEN_SIZE, :PROJ_DIM].set(params["w1"][:HIDDEN_SIZE])
    w1 = w1.at[HP:HP + HIDDEN_SIZE, :PROJ_DIM].set(params["w1"][HIDDEN_SIZE:])
    b1 = jnp.zeros((1, PP), jnp.float32).at[:, :PROJ_DIM].set(params["b1"])
    w2 = jnp.zeros((PP, PP), jnp.float32).at[:PROJ_DIM, :PROJ_DIM].set(params["w2"])
    b2 = jnp.zeros((1, PP), jnp.float32).at[:, :PROJ_DIM].set(params["b2"])
    w3 = jnp.zeros((PP, OUT_P), jnp.float32).at[:PROJ_DIM, :NUM_CLASSES].set(params["w3"])
    b3 = jnp.zeros((1, OUT_P), jnp.float32).at[:, :NUM_CLASSES].set(params["b3"])
    return dict(tbl_p=tbl_p, tbl_h=tbl_h, whh=whh,
                w1=w1, b1=b1, w2=w2, b2=b2, w3=w3, b3=b3)


# ---------------------------------------------------------------------------
# Full forward: per-token gate-table gather (one jnp.take per side — the
# embedding lookup AND the input projection AND the bias, all in one gather),
# then ONE fused Pallas call for both recurrences + the MLP head.
# ---------------------------------------------------------------------------
@jax.jit
def baseline_forward(padded, prem_ids, prem_len, hyp_ids, hyp_len):
    B, TP = prem_ids.shape
    TH = hyp_ids.shape[1]

    # [B, T, GF] -> lane-flat [B, T*GF] (free row-major reshape) so the kernel
    # reads step t as a 128-aligned static lane slice.
    gx_p = jnp.take(padded["tbl_p"], prem_ids, axis=0).reshape(B, TP * GF)
    gx_h = jnp.take(padded["tbl_h"], hyp_ids, axis=0).reshape(B, TH * GF)
    plen = prem_len.reshape(B, 1).astype(jnp.int32)
    hlen = hyp_len.reshape(B, 1).astype(jnp.int32)

    vmem = pl.BlockSpec(memory_space=pltpu.MemorySpace.VMEM)
    out_pad = pl.pallas_call(
        _fused_kernel,
        out_shape=jax.ShapeDtypeStruct((B, OUT_P), jnp.float32),
        in_specs=[vmem] * 11,
        out_specs=vmem,
    )(gx_p, gx_h, plen, hlen,
      padded["whh"], padded["w1"], padded["b1"],
      padded["w2"], padded["b2"], padded["w3"], padded["b3"])
    return out_pad[:, :NUM_CLASSES]                                 # [B, 3]


# ---------------------------------------------------------------------------
# Pure-JAX reference (unpadded params, same math) to sanity-check the kernel.
# ---------------------------------------------------------------------------
def _ref_lstm(x_tbe, lengths, w_ih, w_hh, b):
    T, B, _ = x_tbe.shape
    H = w_hh.shape[0]
    h = jnp.zeros((B, H), jnp.float32)
    c = jnp.zeros((B, H), jnp.float32)
    for t in range(T):
        gates = x_tbe[t] @ w_ih + h @ w_hh + b
        i = jax.nn.sigmoid(gates[:, :H])
        f = jax.nn.sigmoid(gates[:, H:2 * H])
        g = jnp.tanh(gates[:, 2 * H:3 * H])
        o = jax.nn.sigmoid(gates[:, 3 * H:])
        c_new = f * c + i * g
        h_new = o * jnp.tanh(c_new)
        valid = (lengths > t)[:, None]
        h = jnp.where(valid, h_new, h)
        c = jnp.where(valid, c_new, c)
    return h


def _ref_forward(params, prem_ids, prem_len, hyp_ids, hyp_len):
    pe = jnp.transpose(jnp.take(params["emb"], prem_ids, axis=0), (1, 0, 2))
    he = jnp.transpose(jnp.take(params["emb"], hyp_ids, axis=0), (1, 0, 2))
    hp = _ref_lstm(pe, prem_len, *params["prem"])
    hh = _ref_lstm(he, hyp_len, *params["hyp"])
    x = jnp.concatenate([hp, hh], axis=1)
    x = jnp.tanh(x @ params["w1"] + params["b1"])
    x = jnp.tanh(x @ params["w2"] + params["b2"])
    return jnp.tanh(x @ params["w3"] + params["b3"])


if __name__ == "__main__":
    params = init_params(jax.random.PRNGKey(0))
    padded = prepare_padded_params(params)

    B, T_PREM, T_HYP = 2, 8, 6
    k1, k2 = jax.random.split(jax.random.PRNGKey(1))
    prem_ids = jax.random.randint(k1, (B, T_PREM), 1, VOCAB_SIZE, dtype=jnp.int32)
    hyp_ids = jax.random.randint(k2, (B, T_HYP), 1, VOCAB_SIZE, dtype=jnp.int32)
    # variable-length sequences (emulating pad_sequence + pack_padded_sequence)
    prem_len = jnp.array([5, 8], dtype=jnp.int32)
    hyp_len = jnp.array([6, 3], dtype=jnp.int32)
    prem_ids = jnp.where(jnp.arange(T_PREM)[None, :] < prem_len[:, None], prem_ids, PAD_ID)
    hyp_ids = jnp.where(jnp.arange(T_HYP)[None, :] < hyp_len[:, None], hyp_ids, PAD_ID)

    out = baseline_forward(padded, prem_ids, prem_len, hyp_ids, hyp_len)
    out = jax.block_until_ready(out)

    ref = _ref_forward(params, prem_ids, prem_len, hyp_ids, hyp_len)
    assert out.shape == (B, NUM_CLASSES)
    assert jnp.allclose(out, ref, atol=2e-3), "Pallas output mismatch vs JAX reference"

    print("KERNEL_OK")
</pallas_src>

<mosaic_0001>
module attributes {stable_mosaic.version = 11 : i64} {
  func.func @_fused_kernel(%arg0: memref<2x8192xf32, #tpu.memory_space<vmem>>, %arg1: memref<2x6144xf32, #tpu.memory_space<vmem>>, %arg2: memref<2x1xi32, #tpu.memory_space<vmem>>, %arg3: memref<2x1xi32, #tpu.memory_space<vmem>>, %arg4: memref<256x1024xf32, #tpu.memory_space<vmem>>, %arg5: memref<256x256xf32, #tpu.memory_space<vmem>>, %arg6: memref<1x256xf32, #tpu.memory_space<vmem>>, %arg7: memref<256x256xf32, #tpu.memory_space<vmem>>, %arg8: memref<1x256xf32, #tpu.memory_space<vmem>>, %arg9: memref<256x128xf32, #tpu.memory_space<vmem>>, %arg10: memref<1x128xf32, #tpu.memory_space<vmem>>, %arg11: memref<2x128xf32, #tpu.memory_space<vmem>>) attributes {dimension_semantics = [], scalar_prefetch = 0 : i64, scratch_operands = 0 : i64, tpu.core_type = #tpu.core_type<tc>} {
    %0 = tpu.iota {dimensions = array<i32: 1>} : vector<2x256xi32>
    %c128_i32 = arith.constant 128 : i32
    %1 = vector.broadcast %c128_i32 : i32 to vector<2x256xi32>
    %2 = arith.cmpi slt, %0, %1 : vector<2x256xi32>
    %c0 = arith.constant 0 : index
    %c0_0 = arith.constant 0 : index
    %3 = vector.load %arg2[%c0, %c0_0] : memref<2x1xi32, #tpu.memory_space<vmem>>, vector<2x1xi32>
    %c0_1 = arith.constant 0 : index
    %c0_2 = arith.constant 0 : index
    %4 = vector.load %arg3[%c0_1, %c0_2] : memref<2x1xi32, #tpu.memory_space<vmem>>, vector<2x1xi32>
    %5 = vector.shape_cast %3 : vector<2x1xi32> to vector<2x1xi32>
    %6 = vector.broadcast %5 : vector<2x1xi32> to vector<2x256xi32>
    %7 = vector.shape_cast %4 : vector<2x1xi32> to vector<2x1xi32>
    %8 = vector.broadcast %7 : vector<2x1xi32> to vector<2x256xi32>
    %9 = arith.select %2, %6, %8 : vector<2x256xi1>, vector<2x256xi32>
    %cst = arith.constant 0.000000e+00 : f32
    %10 = vector.broadcast %cst : f32 to vector<2x256xf32>
    %cst_3 = arith.constant 0.000000e+00 : f32
    %11 = vector.broadcast %cst_3 : f32 to vector<2x256xf32>
    %c0_4 = arith.constant 0 : index
    %c0_5 = arith.constant 0 : index
    %12 = vector.load %arg4[%c0_4, %c0_5] : memref<256x1024xf32, #tpu.memory_space<vmem>>, vector<256x1024xf32>
    %cst_6 = arith.constant dense<0.000000e+00> : vector<2x1024xf32>
    %13 = tpu.matmul %10, %12, %cst_6 {dimension_numbers = #tpu.dot_dimension_numbers<[1], [0], [0], [1], [0, 0, 1, 1], [], []>} : vector<2x256xf32>, vector<256x1024xf32>, vector<2x1024xf32> -> vector<2x1024xf32>
    %c0_7 = arith.constant 0 : index
    %c0_8 = arith.constant 0 : index
    %14 = vector.load %arg0[%c0_7, %c0_8] : memref<2x8192xf32, #tpu.memory_space<vmem>>, vector<2x1024xf32>
    %15 = arith.addf %13, %14 : vector<2x1024xf32>
    %c0_9 = arith.constant 0 : index
    %c0_10 = arith.constant 0 : index
    %16 = vector.load %arg1[%c0_9, %c0_10] : memref<2x6144xf32, #tpu.memory_space<vmem>>, vector<2x1024xf32>
    %17 = arith.addf %15, %16 : vector<2x1024xf32>
    %18 = vector.extract_strided_slice %17 {offsets = [0, 0], sizes = [2, 256], strides = [1, 1]} : vector<2x1024xf32> to vector<2x256xf32>
    %19 = arith.negf %18 : vector<2x256xf32>
    %20 = math.exp %19 : vector<2x256xf32>
    %cst_11 = arith.constant 1.000000e+00 : f32
    %21 = vector.broadcast %cst_11 : f32 to vector<2x256xf32>
    %22 = arith.addf %21, %20 : vector<2x256xf32>
    %23 = arith.divf %21, %22 : vector<2x256xf32>
    %24 = vector.extract_strided_slice %17 {offsets = [0, 256], sizes = [2, 256], strides = [1, 1]} : vector<2x1024xf32> to vector<2x256xf32>
    %25 = arith.negf %24 : vector<2x256xf32>
    %26 = math.exp %25 : vector<2x256xf32>
    %cst_12 = arith.constant 1.000000e+00 : f32
    %27 = vector.broadcast %cst_12 : f32 to vector<2x256xf32>
    %28 = arith.addf %27, %26 : vector<2x256xf32>
    %29 = arith.divf %27, %28 : vector<2x256xf32>
    %30 = vector.extract_strided_slice %17 {offsets = [0, 512], sizes = [2, 256], strides = [1, 1]} : vector<2x1024xf32> to vector<2x256xf32>
    %31 = math.tanh %30 : vector<2x256xf32>
    %32 = vector.extract_strided_slice %17 {offsets = [0, 768], sizes = [2, 256], strides = [1, 1]} : vector<2x1024xf32> to vector<2x256xf32>
    %33 = arith.negf %32 : vector<2x256xf32>
    %34 = math.exp %33 : vector<2x256xf32>
    %cst_13 = arith.constant 1.000000e+00 : f32
    %35 = vector.broadcast %cst_13 : f32 to vector<2x256xf32>
    %36 = arith.addf %35, %34 : vector<2x256xf32>
    %37 = arith.divf %35, %36 : vector<2x256xf32>
    %38 = arith.mulf %29, %11 : vector<2x256xf32>
    %39 = arith.mulf %23, %31 : vector<2x256xf32>
    %40 = arith.addf %38, %39 : vector<2x256xf32>
    %41 = math.tanh %40 : vector<2x256xf32>
    %42 = arith.mulf %37, %41 : vector<2x256xf32>
    %c0_i32 = arith.constant 0 : i32
    %43 = vector.broadcast %c0_i32 : i32 to vector<2x256xi32>
    %44 = arith.cmpi sgt, %9, %43 : vector<2x256xi32>
    %45 = arith.select %44, %42, %10 : vector<2x256xi1>, vector<2x256xf32>
    %46 = arith.select %44, %40, %11 : vector<2x256xi1>, vector<2x256xf32>
    %c0_14 = arith.constant 0 : index
    %c0_15 = arith.constant 0 : index
    %47 = vector.load %arg4[%c0_14, %c0_15] : memref<256x1024xf32, #tpu.memory_space<vmem>>, vector<256x1024xf32>
    %cst_16 = arith.constant dense<0.000000e+00> : vector<2x1024xf32>
    %48 = tpu.matmul %45, %47, %cst_16 {dimension_numbers = #tpu.dot_dimension_numbers<[1], [0], [0], [1], [0, 0, 1, 1], [], []>} : vector<2x256xf32>, vector<256x1024xf32>, vector<2x1024xf32> -> vector<2x1024xf32>
    %c0_17 = arith.constant 0 : index
    %c1024 = arith.constant 1024 : index
    %49 = vector.load %arg0[%c0_17, %c1024] : memref<2x8192xf32, #tpu.memory_space<vmem>>, vector<2x1024xf32>
    %50 = arith.addf %48, %49 : vector<2x1024xf32>
    %c0_18 = arith.constant 0 : index
    %c1024_19 = arith.constant 1024 : index
    %51 = vector.load %arg1[%c0_18, %c1024_19] : memref<2x6144xf32, #tpu.memory_space<vmem>>, vector<2x1024xf32>
    %52 = arith.addf %50, %51 : vector<2x1024xf32>
    %53 = vector.extract_strided_slice %52 {offsets = [0, 0], sizes = [2, 256], strides = [1, 1]} : vector<2x1024xf32> to vector<2x256xf32>
    %54 = arith.negf %53 : vector<2x256xf32>
    %55 = math.exp %54 : vector<2x256xf32>
    %cst_20 = arith.constant 1.000000e+00 : f32
    %56 = vector.broadcast %cst_20 : f32 to vector<2x256xf32>
    %57 = arith.addf %56, %55 : vector<2x256xf32>
    %58 = arith.divf %56, %57 : vector<2x256xf32>
    %59 = vector.extract_strided_slice %52 {offsets = [0, 256], sizes = [2, 256], strides = [1, 1]} : vector<2x1024xf32> to vector<2x256xf32>
    %60 = arith.negf %59 : vector<2x256xf32>
    %61 = math.exp %60 : vector<2x256xf32>
    %cst_21 = arith.constant 1.000000e+00 : f32
    %62 = vector.broadcast %cst_21 : f32 to vector<2x256xf32>
    %63 = arith.addf %62, %61 : vector<2x256xf32>
    %64 = arith.divf %62, %63 : vector<2x256xf32>
    %65 = vector.extract_strided_slice %52 {offsets = [0, 512], sizes = [2, 256], strides = [1, 1]} : vector<2x1024xf32> to vector<2x256xf32>
    %66 = math.tanh %65 : vector<2x256xf32>
    %67 = vector.extract_strided_slice %52 {offsets = [0, 768], sizes = [2, 256], strides = [1, 1]} : vector<2x1024xf32> to vector<2x256xf32>
    %68 = arith.negf %67 : vector<2x256xf32>
    %69 = math.exp %68 : vector<2x256xf32>
    %cst_22 = arith.constant 1.000000e+00 : f32
    %70 = vector.broadcast %cst_22 : f32 to vector<2x256xf32>
    %71 = arith.addf %70, %69 : vector<2x256xf32>
    %72 = arith.divf %70, %71 : vector<2x256xf32>
    %73 = arith.mulf %64, %46 : vector<2x256xf32>
    %74 = arith.mulf %58, %66 : vector<2x256xf32>
    %75 = arith.addf %73, %74 : vector<2x256xf32>
    %76 = math.tanh %75 : vector<2x256xf32>
    %77 = arith.mulf %72, %76 : vector<2x256xf32>
    %c1_i32 = arith.constant 1 : i32
    %78 = vector.broadcast %c1_i32 : i32 to vector<2x256xi32>
    %79 = arith.cmpi sgt, %9, %78 : vector<2x256xi32>
    %80 = arith.select %79, %77, %45 : vector<2x256xi1>, vector<2x256xf32>
    %81 = arith.select %79, %75, %46 : vector<2x256xi1>, vector<2x256xf32>
    %c0_23 = arith.constant 0 : index
    %c0_24 = arith.constant 0 : index
    %82 = vector.load %arg4[%c0_23, %c0_24] : memref<256x1024xf32, #tpu.memory_space<vmem>>, vector<256x1024xf32>
    %cst_25 = arith.constant dense<0.000000e+00> : vector<2x1024xf32>
    %83 = tpu.matmul %80, %82, %cst_25 {dimension_numbers = #tpu.dot_dimension_numbers<[1], [0], [0], [1], [0, 0, 1, 1], [], []>} : vector<2x256xf32>, vector<256x1024xf32>, vector<2x1024xf32> -> vector<2x1024xf32>
    %c0_26 = arith.constant 0 : index
    %c2048 = arith.constant 2048 : index
    %84 = vector.load %arg0[%c0_26, %c2048] : memref<2x8192xf32, #tpu.memory_space<vmem>>, vector<2x1024xf32>
    %85 = arith.addf %83, %84 : vector<2x1024xf32>
    %c0_27 = arith.constant 0 : index
    %c2048_28 = arith.constant 2048 : index
    %86 = vector.load %arg1[%c0_27, %c2048_28] : memref<2x6144xf32, #tpu.memory_space<vmem>>, vector<2x1024xf32>
    %87 = arith.addf %85, %86 : vector<2x1024xf32>
    %88 = vector.extract_strided_slice %87 {offsets = [0, 0], sizes = [2, 256], strides = [1, 1]} : vector<2x1024xf32> to vector<2x256xf32>
    %89 = arith.negf %88 : vector<2x256xf32>
    %90 = math.exp %89 : vector<2x256xf32>
    %cst_29 = arith.constant 1.000000e+00 : f32
    %91 = vector.broadcast %cst_29 : f32 to vector<2x256xf32>
    %92 = arith.addf %91, %90 : vector<2x256xf32>
    %93 = arith.divf %91, %92 : vector<2x256xf32>
    %94 = vector.extract_strided_slice %87 {offsets = [0, 256], sizes = [2, 256], strides = [1, 1]} : vector<2x1024xf32> to vector<2x256xf32>
    %95 = arith.negf %94 : vector<2x256xf32>
    %96 = math.exp %95 : vector<2x256xf32>
    %cst_30 = arith.constant 1.000000e+00 : f32
    %97 = vector.broadcast %cst_30 : f32 to vector<2x256xf32>
    %98 = arith.addf %97, %96 : vector<2x256xf32>
    %99 = arith.divf %97, %98 : vector<2x256xf32>
    %100 = vector.extract_strided_slice %87 {offsets = [0, 512], sizes = [2, 256], strides = [1, 1]} : vector<2x1024xf32> to vector<2x256xf32>
    %101 = math.tanh %100 : vector<2x256xf32>
    %102 = vector.extract_strided_slice %87 {offsets = [0, 768], sizes = [2, 256], strides = [1, 1]} : vector<2x1024xf32> to vector<2x256xf32>
    %103 = arith.negf %102 : vector<2x256xf32>
    %104 = math.exp %103 : vector<2x256xf32>
    %cst_31 = arith.constant 1.000000e+00 : f32
    %105 = vector.broadcast %cst_31 : f32 to vector<2x256xf32>
    %106 = arith.addf %105, %104 : vector<2x256xf32>
    %107 = arith.divf %105, %106 : vector<2x256xf32>
    %108 = arith.mulf %99, %81 : vector<2x256xf32>
    %109 = arith.mulf %93, %101 : vector<2x256xf32>
    %110 = arith.addf %108, %109 : vector<2x256xf32>
    %111 = math.tanh %110 : vector<2x256xf32>
    %112 = arith.mulf %107, %111 : vector<2x256xf32>
    %c2_i32 = arith.constant 2 : i32
    %113 = vector.broadcast %c2_i32 : i32 to vector<2x256xi32>
    %114 = arith.cmpi sgt, %9, %113 : vector<2x256xi32>
    %115 = arith.select %114, %112, %80 : vector<2x256xi1>, vector<2x256xf32>
    %116 = arith.select %114, %110, %81 : vector<2x256xi1>, vector<2x256xf32>
    %c0_32 = arith.constant 0 : index
    %c0_33 = arith.constant 0 : index
    %117 = vector.load %arg4[%c0_32, %c0_33] : memref<256x1024xf32, #tpu.memory_space<vmem>>, vector<256x1024xf32>
    %cst_34 = arith.constant dense<0.000000e+00> : vector<2x1024xf32>
    %118 = tpu.matmul %115, %117, %cst_34 {dimension_numbers = #tpu.dot_dimension_numbers<[1], [0], [0], [1], [0, 0, 1, 1], [], []>} : vector<2x256xf32>, vector<256x1024xf32>, vector<2x1024xf32> -> vector<2x1024xf32>
    %c0_35 = arith.constant 0 : index
    %c3072 = arith.constant 3072 : index
    %119 = vector.load %arg0[%c0_35, %c3072] : memref<2x8192xf32, #tpu.memory_space<vmem>>, vector<2x1024xf32>
    %120 = arith.addf %118, %119 : vector<2x1024xf32>
    %c0_36 = arith.constant 0 : index
    %c3072_37 = arith.constant 3072 : index
    %121 = vector.load %arg1[%c0_36, %c3072_37] : memref<2x6144xf32, #tpu.memory_space<vmem>>, vector<2x1024xf32>
    %122 = arith.addf %120, %121 : vector<2x1024xf32>
    %123 = vector.extract_strided_slice %122 {offsets = [0, 0], sizes = [2, 256], strides = [1, 1]} : vector<2x1024xf32> to vector<2x256xf32>
    %124 = arith.negf %123 : vector<2x256xf32>
    %125 = math.exp %124 : vector<2x256xf32>
    %cst_38 = arith.constant 1.000000e+00 : f32
    %126 = vector.broadcast %cst_38 : f32 to vector<2x256xf32>
    %127 = arith.addf %126, %125 : vector<2x256xf32>
    %128 = arith.divf %126, %127 : vector<2x256xf32>
    %129 = vector.extract_strided_slice %122 {offsets = [0, 256], sizes = [2, 256], strides = [1, 1]} : vector<2x1024xf32> to vector<2x256xf32>
    %130 = arith.negf %129 : vector<2x256xf32>
    %131 = math.exp %130 : vector<2x256xf32>
    %cst_39 = arith.constant 1.000000e+00 : f32
    %132 = vector.broadcast %cst_39 : f32 to vector<2x256xf32>
    %133 = arith.addf %132, %131 : vector<2x256xf32>
    %134 = arith.divf %132, %133 : vector<2x256xf32>
    %135 = vector.extract_strided_slice %122 {offsets = [0, 512], sizes = [2, 256], strides = [1, 1]} : vector<2x1024xf32> to vector<2x256xf32>
    %136 = math.tanh %135 : vector<2x256xf32>
    %137 = vector.extract_strided_slice %122 {offsets = [0, 768], sizes = [2, 256], strides = [1, 1]} : vector<2x1024xf32> to vector<2x256xf32>
    %138 = arith.negf %137 : vector<2x256xf32>
    %139 = math.exp %138 : vector<2x256xf32>
    %cst_40 = arith.constant 1.000000e+00 : f32
    %140 = vector.broadcast %cst_40 : f32 to vector<2x256xf32>
    %141 = arith.addf %140, %139 : vector<2x256xf32>
    %142 = arith.divf %140, %141 : vector<2x256xf32>
    %143 = arith.mulf %134, %116 : vector<2x256xf32>
    %144 = arith.mulf %128, %136 : vector<2x256xf32>
    %145 = arith.addf %143, %144 : vector<2x256xf32>
    %146 = math.tanh %145 : vector<2x256xf32>
    %147 = arith.mulf %142, %146 : vector<2x256xf32>
    %c3_i32 = arith.constant 3 : i32
    %148 = vector.broadcast %c3_i32 : i32 to vector<2x256xi32>
    %149 = arith.cmpi sgt, %9, %148 : vector<2x256xi32>
    %150 = arith.select %149, %147, %115 : vector<2x256xi1>, vector<2x256xf32>
    %151 = arith.select %149, %145, %116 : vector<2x256xi1>, vector<2x256xf32>
    %c0_41 = arith.constant 0 : index
    %c0_42 = arith.constant 0 : index
    %152 = vector.load %arg4[%c0_41, %c0_42] : memref<256x1024xf32, #tpu.memory_space<vmem>>, vector<256x1024xf32>
    %cst_43 = arith.constant dense<0.000000e+00> : vector<2x1024xf32>
    %153 = tpu.matmul %150, %152, %cst_43 {dimension_numbers = #tpu.dot_dimension_numbers<[1], [0], [0], [1], [0, 0, 1, 1], [], []>} : vector<2x256xf32>, vector<256x1024xf32>, vector<2x1024xf32> -> vector<2x1024xf32>
    %c0_44 = arith.constant 0 : index
    %c4096 = arith.constant 4096 : index
    %154 = vector.load %arg0[%c0_44, %c4096] : memref<2x8192xf32, #tpu.memory_space<vmem>>, vector<2x1024xf32>
    %155 = arith.addf %153, %154 : vector<2x1024xf32>
    %c0_45 = arith.constant 0 : index
    %c4096_46 = arith.constant 4096 : index
    %156 = vector.load %arg1[%c0_45, %c4096_46] : memref<2x6144xf32, #tpu.memory_space<vmem>>, vector<2x1024xf32>
    %157 = arith.addf %155, %156 : vector<2x1024xf32>
    %158 = vector.extract_strided_slice %157 {offsets = [0, 0], sizes = [2, 256], strides = [1, 1]} : vector<2x1024xf32> to vector<2x256xf32>
    %159 = arith.negf %158 : vector<2x256xf32>
    %160 = math.exp %159 : vector<2x256xf32>
    %cst_47 = arith.constant 1.000000e+00 : f32
    %161 = vector.broadcast %cst_47 : f32 to vector<2x256xf32>
    %162 = arith.addf %161, %160 : vector<2x256xf32>
    %163 = arith.divf %161, %162 : vector<2x256xf32>
    %164 = vector.extract_strided_slice %157 {offsets = [0, 256], sizes = [2, 256], strides = [1, 1]} : vector<2x1024xf32> to vector<2x256xf32>
    %165 = arith.negf %164 : vector<2x256xf32>
    %166 = math.exp %165 : vector<2x256xf32>
    %cst_48 = arith.constant 1.000000e+00 : f32
    %167 = vector.broadcast %cst_48 : f32 to vector<2x256xf32>
    %168 = arith.addf %167, %166 : vector<2x256xf32>
    %169 = arith.divf %167, %168 : vector<2x256xf32>
    %170 = vector.extract_strided_slice %157 {offsets = [0, 512], sizes = [2, 256], strides = [1, 1]} : vector<2x1024xf32> to vector<2x256xf32>
    %171 = math.tanh %170 : vector<2x256xf32>
    %172 = vector.extract_strided_slice %157 {offsets = [0, 768], sizes = [2, 256], strides = [1, 1]} : vector<2x1024xf32> to vector<2x256xf32>
    %173 = arith.negf %172 : vector<2x256xf32>
    %174 = math.exp %173 : vector<2x256xf32>
    %cst_49 = arith.constant 1.000000e+00 : f32
    %175 = vector.broadcast %cst_49 : f32 to vector<2x256xf32>
    %176 = arith.addf %175, %174 : vector<2x256xf32>
    %177 = arith.divf %175, %176 : vector<2x256xf32>
    %178 = arith.mulf %169, %151 : vector<2x256xf32>
    %179 = arith.mulf %163, %171 : vector<2x256xf32>
    %180 = arith.addf %178, %179 : vector<2x256xf32>
    %181 = math.tanh %180 : vector<2x256xf32>
    %182 = arith.mulf %177, %181 : vector<2x256xf32>
    %c4_i32 = arith.constant 4 : i32
    %183 = vector.broadcast %c4_i32 : i32 to vector<2x256xi32>
    %184 = arith.cmpi sgt, %9, %183 : vector<2x256xi32>
    %185 = arith.select %184, %182, %150 : vector<2x256xi1>, vector<2x256xf32>
    %186 = arith.select %184, %180, %151 : vector<2x256xi1>, vector<2x256xf32>
    %c0_50 = arith.constant 0 : index
    %c0_51 = arith.constant 0 : index
    %187 = vector.load %arg4[%c0_50, %c0_51] : memref<256x1024xf32, #tpu.memory_space<vmem>>, vector<256x1024xf32>
    %cst_52 = arith.constant dense<0.000000e+00> : vector<2x1024xf32>
    %188 = tpu.matmul %185, %187, %cst_52 {dimension_numbers = #tpu.dot_dimension_numbers<[1], [0], [0], [1], [0, 0, 1, 1], [], []>} : vector<2x256xf32>, vector<256x1024xf32>, vector<2x1024xf32> -> vector<2x1024xf32>
    %c0_53 = arith.constant 0 : index
    %c5120 = arith.constant 5120 : index
    %189 = vector.load %arg0[%c0_53, %c5120] : memref<2x8192xf32, #tpu.memory_space<vmem>>, vector<2x1024xf32>
    %190 = arith.addf %188, %189 : vector<2x1024xf32>
    %c0_54 = arith.constant 0 : index
    %c5120_55 = arith.constant 5120 : index
    %191 = vector.load %arg1[%c0_54, %c5120_55] : memref<2x6144xf32, #tpu.memory_space<vmem>>, vector<2x1024xf32>
    %192 = arith.addf %190, %191 : vector<2x1024xf32>
    %193 = vector.extract_strided_slice %192 {offsets = [0, 0], sizes = [2, 256], strides = [1, 1]} : vector<2x1024xf32> to vector<2x256xf32>
    %194 = arith.negf %193 : vector<2x256xf32>
    %195 = math.exp %194 : vector<2x256xf32>
    %cst_56 = arith.constant 1.000000e+00 : f32
    %196 = vector.broadcast %cst_56 : f32 to vector<2x256xf32>
    %197 = arith.addf %196, %195 : vector<2x256xf32>
    %198 = arith.divf %196, %197 : vector<2x256xf32>
    %199 = vector.extract_strided_slice %192 {offsets = [0, 256], sizes = [2, 256], strides = [1, 1]} : vector<2x1024xf32> to vector<2x256xf32>
    %200 = arith.negf %199 : vector<2x256xf32>
    %201 = math.exp %200 : vector<2x256xf32>
    %cst_57 = arith.constant 1.000000e+00 : f32
    %202 = vector.broadcast %cst_57 : f32 to vector<2x256xf32>
    %203 = arith.addf %202, %201 : vector<2x256xf32>
    %204 = arith.divf %202, %203 : vector<2x256xf32>
    %205 = vector.extract_strided_slice %192 {offsets = [0, 512], sizes = [2, 256], strides = [1, 1]} : vector<2x1024xf32> to vector<2x256xf32>
    %206 = math.tanh %205 : vector<2x256xf32>
    %207 = vector.extract_strided_slice %192 {offsets = [0, 768], sizes = [2, 256], strides = [1, 1]} : vector<2x1024xf32> to vector<2x256xf32>
    %208 = arith.negf %207 : vector<2x256xf32>
    %209 = math.exp %208 : vector<2x256xf32>
    %cst_58 = arith.constant 1.000000e+00 : f32
    %210 = vector.broadcast %cst_58 : f32 to vector<2x256xf32>
    %211 = arith.addf %210, %209 : vector<2x256xf32>
    %212 = arith.divf %210, %211 : vector<2x256xf32>
    %213 = arith.mulf %204, %186 : vector<2x256xf32>
    %214 = arith.mulf %198, %206 : vector<2x256xf32>
    %215 = arith.addf %213, %214 : vector<2x256xf32>
    %216 = math.tanh %215 : vector<2x256xf32>
    %217 = arith.mulf %212, %216 : vector<2x256xf32>
    %c5_i32 = arith.constant 5 : i32
    %218 = vector.broadcast %c5_i32 : i32 to vector<2x256xi32>
    %219 = arith.cmpi sgt, %9, %218 : vector<2x256xi32>
    %220 = arith.select %219, %217, %185 : vector<2x256xi1>, vector<2x256xf32>
    %221 = arith.select %219, %215, %186 : vector<2x256xi1>, vector<2x256xf32>
    %c0_59 = arith.constant 0 : index
    %c0_60 = arith.constant 0 : index
    %222 = vector.load %arg4[%c0_59, %c0_60] : memref<256x1024xf32, #tpu.memory_space<vmem>>, vector<256x1024xf32>
    %cst_61 = arith.constant dense<0.000000e+00> : vector<2x1024xf32>
    %223 = tpu.matmul %220, %222, %cst_61 {dimension_numbers = #tpu.dot_dimension_numbers<[1], [0], [0], [1], [0, 0, 1, 1], [], []>} : vector<2x256xf32>, vector<256x1024xf32>, vector<2x1024xf32> -> vector<2x1024xf32>
    %c0_62 = arith.constant 0 : index
    %c6144 = arith.constant 6144 : index
    %224 = vector.load %arg0[%c0_62, %c6144] : memref<2x8192xf32, #tpu.memory_space<vmem>>, vector<2x1024xf32>
    %225 = arith.addf %223, %224 : vector<2x1024xf32>
    %226 = vector.extract_strided_slice %225 {offsets = [0, 0], sizes = [2, 256], strides = [1, 1]} : vector<2x1024xf32> to vector<2x256xf32>
    %227 = arith.negf %226 : vector<2x256xf32>
    %228 = math.exp %227 : vector<2x256xf32>
    %cst_63 = arith.constant 1.000000e+00 : f32
    %229 = vector.broadcast %cst_63 : f32 to vector<2x256xf32>
    %230 = arith.addf %229, %228 : vector<2x256xf32>
    %231 = arith.divf %229, %230 : vector<2x256xf32>
    %232 = vector.extract_strided_slice %225 {offsets = [0, 256], sizes = [2, 256], strides = [1, 1]} : vector<2x1024xf32> to vector<2x256xf32>
    %233 = arith.negf %232 : vector<2x256xf32>
    %234 = math.exp %233 : vector<2x256xf32>
    %cst_64 = arith.constant 1.000000e+00 : f32
    %235 = vector.broadcast %cst_64 : f32 to vector<2x256xf32>
    %236 = arith.addf %235, %234 : vector<2x256xf32>
    %237 = arith.divf %235, %236 : vector<2x256xf32>
    %238 = vector.extract_strided_slice %225 {offsets = [0, 512], sizes = [2, 256], strides = [1, 1]} : vector<2x1024xf32> to vector<2x256xf32>
    %239 = math.tanh %238 : vector<2x256xf32>
    %240 = vector.extract_strided_slice %225 {offsets = [0, 768], sizes = [2, 256], strides = [1, 1]} : vector<2x1024xf32> to vector<2x256xf32>
    %241 = arith.negf %240 : vector<2x256xf32>
    %242 = math.exp %241 : vector<2x256xf32>
    %cst_65 = arith.constant 1.000000e+00 : f32
    %243 = vector.broadcast %cst_65 : f32 to vector<2x256xf32>
    %244 = arith.addf %243, %242 : vector<2x256xf32>
    %245 = arith.divf %243, %244 : vector<2x256xf32>
    %246 = arith.mulf %237, %221 : vector<2x256xf32>
    %247 = arith.mulf %231, %239 : vector<2x256xf32>
    %248 = arith.addf %246, %247 : vector<2x256xf32>
    %249 = math.tanh %248 : vector<2x256xf32>
    %250 = arith.mulf %245, %249 : vector<2x256xf32>
    %c6_i32 = arith.constant 6 : i32
    %251 = vector.broadcast %c6_i32 : i32 to vector<2x256xi32>
    %252 = arith.cmpi sgt, %9, %251 : vector<2x256xi32>
    %253 = arith.select %252, %250, %220 : vector<2x256xi1>, vector<2x256xf32>
    %254 = arith.select %252, %248, %221 : vector<2x256xi1>, vector<2x256xf32>
    %c0_66 = arith.constant 0 : index
    %c0_67 = arith.constant 0 : index
    %255 = vector.load %arg4[%c0_66, %c0_67] : memref<256x1024xf32, #tpu.memory_space<vmem>>, vector<256x1024xf32>
    %cst_68 = arith.constant dense<0.000000e+00> : vector<2x1024xf32>
    %256 = tpu.matmul %253, %255, %cst_68 {dimension_numbers = #tpu.dot_dimension_numbers<[1], [0], [0], [1], [0, 0, 1, 1], [], []>} : vector<2x256xf32>, vector<256x1024xf32>, vector<2x1024xf32> -> vector<2x1024xf32>
    %c0_69 = arith.constant 0 : index
    %c7168 = arith.constant 7168 : index
    %257 = vector.load %arg0[%c0_69, %c7168] : memref<2x8192xf32, #tpu.memory_space<vmem>>, vector<2x1024xf32>
    %258 = arith.addf %256, %257 : vector<2x1024xf32>
    %259 = vector.extract_strided_slice %258 {offsets = [0, 0], sizes = [2, 256], strides = [1, 1]} : vector<2x1024xf32> to vector<2x256xf32>
    %260 = arith.negf %259 : vector<2x256xf32>
    %261 = math.exp %260 : vector<2x256xf32>
    %cst_70 = arith.constant 1.000000e+00 : f32
    %262 = vector.broadcast %cst_70 : f32 to vector<2x256xf32>
    %263 = arith.addf %262, %261 : vector<2x256xf32>
    %264 = arith.divf %262, %263 : vector<2x256xf32>
    %265 = vector.extract_strided_slice %258 {offsets = [0, 256], sizes = [2, 256], strides = [1, 1]} : vector<2x1024xf32> to vector<2x256xf32>
    %266 = arith.negf %265 : vector<2x256xf32>
    %267 = math.exp %266 : vector<2x256xf32>
    %cst_71 = arith.constant 1.000000e+00 : f32
    %268 = vector.broadcast %cst_71 : f32 to vector<2x256xf32>
    %269 = arith.addf %268, %267 : vector<2x256xf32>
    %270 = arith.divf %268, %269 : vector<2x256xf32>
    %271 = vector.extract_strided_slice %258 {offsets = [0, 512], sizes = [2, 256], strides = [1, 1]} : vector<2x1024xf32> to vector<2x256xf32>
    %272 = math.tanh %271 : vector<2x256xf32>
    %273 = vector.extract_strided_slice %258 {offsets = [0, 768], sizes = [2, 256], strides = [1, 1]} : vector<2x1024xf32> to vector<2x256xf32>
    %274 = arith.negf %273 : vector<2x256xf32>
    %275 = math.exp %274 : vector<2x256xf32>
    %cst_72 = arith.constant 1.000000e+00 : f32
    %276 = vector.broadcast %cst_72 : f32 to vector<2x256xf32>
    %277 = arith.addf %276, %275 : vector<2x256xf32>
    %278 = arith.divf %276, %277 : vector<2x256xf32>
    %279 = arith.mulf %270, %254 : vector<2x256xf32>
    %280 = arith.mulf %264, %272 : vector<2x256xf32>
    %281 = arith.addf %279, %280 : vector<2x256xf32>
    %282 = math.tanh %281 : vector<2x256xf32>
    %283 = arith.mulf %278, %282 : vector<2x256xf32>
    %c7_i32 = arith.constant 7 : i32
    %284 = vector.broadcast %c7_i32 : i32 to vector<2x256xi32>
    %285 = arith.cmpi sgt, %9, %284 : vector<2x256xi32>
    %286 = arith.select %285, %283, %253 : vector<2x256xi1>, vector<2x256xf32>
    %c0_73 = arith.constant 0 : index
    %c0_74 = arith.constant 0 : index
    %287 = vector.load %arg5[%c0_73, %c0_74] : memref<256x256xf32, #tpu.memory_space<vmem>>, vector<256x256xf32>
    %cst_75 = arith.constant dense<0.000000e+00> : vector<2x256xf32>
    %288 = tpu.matmul %286, %287, %cst_75 {dimension_numbers = #tpu.dot_dimension_numbers<[1], [0], [0], [1], [0, 0, 1, 1], [], []>} : vector<2x256xf32>, vector<256x256xf32>, vector<2x256xf32> -> vector<2x256xf32>
    %c0_76 = arith.constant 0 : index
    %c0_77 = arith.constant 0 : index
    %289 = vector.load %arg6[%c0_76, %c0_77] : memref<1x256xf32, #tpu.memory_space<vmem>>, vector<1x256xf32>
    %290 = vector.broadcast %289 : vector<1x256xf32> to vector<2x256xf32>
    %291 = arith.addf %288, %290 : vector<2x256xf32>
    %292 = math.tanh %291 : vector<2x256xf32>
    %c0_78 = arith.constant 0 : index
    %c0_79 = arith.constant 0 : index
    %293 = vector.load %arg7[%c0_78, %c0_79] : memref<256x256xf32, #tpu.memory_space<vmem>>, vector<256x256xf32>
    %cst_80 = arith.constant dense<0.000000e+00> : vector<2x256xf32>
    %294 = tpu.matmul %292, %293, %cst_80 {dimension_numbers = #tpu.dot_dimension_numbers<[1], [0], [0], [1], [0, 0, 1, 1], [], []>} : vector<2x256xf32>, vector<256x256xf32>, vector<2x256xf32> -> vector<2x256xf32>
    %c0_81 = arith.constant 0 : index
    %c0_82 = arith.constant 0 : index
    %295 = vector.load %arg8[%c0_81, %c0_82] : memref<1x256xf32, #tpu.memory_space<vmem>>, vector<1x256xf32>
    %296 = vector.broadcast %295 : vector<1x256xf32> to vector<2x256xf32>
    %297 = arith.addf %294, %296 : vector<2x256xf32>
    %298 = math.tanh %297 : vector<2x256xf32>
    %c0_83 = arith.constant 0 : index
    %c0_84 = arith.constant 0 : index
    %299 = vector.load %arg9[%c0_83, %c0_84] : memref<256x128xf32, #tpu.memory_space<vmem>>, vector<256x128xf32>
    %cst_85 = arith.constant dense<0.000000e+00> : vector<2x128xf32>
    %300 = tpu.matmul %298, %299, %cst_85 {dimension_numbers = #tpu.dot_dimension_numbers<[1], [0], [0], [1], [0, 0, 1, 1], [], []>} : vector<2x256xf32>, vector<256x128xf32>, vector<2x128xf32> -> vector<2x128xf32>
    %c0_86 = arith.constant 0 : index
    %c0_87 = arith.constant 0 : index
    %301 = vector.load %arg10[%c0_86, %c0_87] : memref<1x128xf32, #tpu.memory_space<vmem>>, vector<1x128xf32>
    %302 = vector.broadcast %301 : vector<1x128xf32> to vector<2x128xf32>
    %303 = arith.addf %300, %302 : vector<2x128xf32>
    %304 = math.tanh %303 : vector<2x128xf32>
    %c0_88 = arith.constant 0 : index
    %c0_89 = arith.constant 0 : index
    %305 = vector.load %arg11[%c0_88, %c0_89] : memref<2x128xf32, #tpu.memory_space<vmem>>, vector<2x128xf32>
    tpu.vector_store %arg11[%c0_88, %c0_89], %304 {strides = array<i32>} : memref<2x128xf32, #tpu.memory_space<vmem>>, vector<2x128xf32>,
    return
  }
}

</mosaic_0001>

<llo_original>
// kernel: baseline_forward.1
$region0: #{baseline_forward.1}
  #allocation0 [shape = 'u32[]', space=smem, size = 0x4, offset = 0x4, fixed_abs, tag = 'smem constant byte address 0x4 - core index']
  #allocation1 [shape = 'u32[144,128]{1,0:T(1,128)}', space=vmem, size = 0x12000, scoped, tag = 'internal scratch']
  %s0 = inlined_call_operand.vmem [shape: f32[2,8192], index: 0, kind: input, shape index: {}]
  %s1 = inlined_call_operand.vmem [shape: f32[2,6144], index: 1, kind: input, shape index: {}]
  %s2 = inlined_call_operand.vmem [shape: s32[2,1], index: 2, kind: input, shape index: {}]
  %s3 = inlined_call_operand.vmem [shape: s32[2,1], index: 3, kind: input, shape index: {}]
  %s4 = inlined_call_operand.vmem [shape: f32[256,1024], index: 4, kind: input, shape index: {}]
  %s5 = inlined_call_operand.vmem [shape: f32[256,256], index: 5, kind: input, shape index: {}]
  %s6 = inlined_call_operand.vmem [shape: f32[1,256], index: 6, kind: input, shape index: {}]
  %s7 = inlined_call_operand.vmem [shape: f32[256,256], index: 7, kind: input, shape index: {}]
  %s8 = inlined_call_operand.vmem [shape: f32[1,256], index: 8, kind: input, shape index: {}]
  %s9 = inlined_call_operand.vmem [shape: f32[256,128], index: 9, kind: input, shape index: {}]
  %s10 = inlined_call_operand.vmem [shape: f32[1,128], index: 10, kind: input, shape index: {}]
  %s11 = inlined_call_operand.hbm [shape: f32[2,128], index: 11, kind: output, shape index: {}]
  %s12 = sld [smem:[#allocation0]]
  $region54: #{baseline_forward.1} parent=0
    _
  %s14 = ssub.s32 1, %s12
  %s15 = scalar_select 0, %s14, %s12
  $region1: #{baseline_forward.1} parent=0
    #allocation2 [shape = 'u8[1024]{0}', space=vmem, size = 0x400, scoped, tag = 'output window, operand 0, single buffered']
    #allocation3 [shape = 's32[1]{0}', space=sflag, size = 0x4, scoped, tag = 'scoped memory for baseline_forward.1']
    %16 = vsyncpa [#allocation3], 0
    // Predicated region
    $region2: #{baseline_forward.1} parent=1 // pred_check
      _
    $region3: #{baseline_forward.1} parent=1 // pred_check_branch
      %18 = sbr.rel (0) target = $region5
    $region4: #{baseline_forward.1} parent=1 // pred_region
      _
    $region5: #{baseline_forward.1} parent=1 // pred_fallthru
      _
    // Predicated region
    $region6: #{baseline_forward.1} parent=1 // pred_check
      _
    $region7: #{baseline_forward.1} parent=1 // pred_check_branch
      %20 = sbr.rel (0) target = $region9
    $region8: #{baseline_forward.1} parent=1 // pred_region
      _
    $region9: #{baseline_forward.1} parent=1 // pred_fallthru
      _
    // Predicated region
    $region10: #{baseline_forward.1} parent=1 // pred_check
      _
    $region11: #{baseline_forward.1} parent=1 // pred_check_branch
      %22 = sbr.rel (0) target = $region13
    $region12: #{baseline_forward.1} parent=1 // pred_region
      _
    $region13: #{baseline_forward.1} parent=1 // pred_fallthru
      _
    // Predicated region
    $region14: #{baseline_forward.1} parent=1 // pred_check
      _
    $region15: #{baseline_forward.1} parent=1 // pred_check_branch
      %24 = sbr.rel (0) target = $region17
    $region16: #{baseline_forward.1} parent=1 // pred_region
      _
    $region17: #{baseline_forward.1} parent=1 // pred_fallthru
      _
    // Predicated region
    $region18: #{baseline_forward.1} parent=1 // pred_check
      _
    $region19: #{baseline_forward.1} parent=1 // pred_check_branch
      %26 = sbr.rel (0) target = $region21
    $region20: #{baseline_forward.1} parent=1 // pred_region
      _
    $region21: #{baseline_forward.1} parent=1 // pred_fallthru
      _
    // Predicated region
    $region22: #{baseline_forward.1} parent=1 // pred_check
      _
    $region23: #{baseline_forward.1} parent=1 // pred_check_branch
      %28 = sbr.rel (0) target = $region25
    $region24: #{baseline_forward.1} parent=1 // pred_region
      _
    $region25: #{baseline_forward.1} parent=1 // pred_fallthru
      _
    // Predicated region
    $region26: #{baseline_forward.1} parent=1 // pred_check
      _
    $region27: #{baseline_forward.1} parent=1 // pred_check_branch
      %30 = sbr.rel (0) target = $region29
    $region28: #{baseline_forward.1} parent=1 // pred_region
      _
    $region29: #{baseline_forward.1} parent=1 // pred_fallthru
      _
    // Predicated region
    $region30: #{baseline_forward.1} parent=1 // pred_check
      _
    $region31: #{baseline_forward.1} parent=1 // pred_check_branch
      %32 = sbr.rel (0) target = $region33
    $region32: #{baseline_forward.1} parent=1 // pred_region
      _
    $region33: #{baseline_forward.1} parent=1 // pred_fallthru
      _
    // Predicated region
    $region34: #{baseline_forward.1} parent=1 // pred_check
      _
    $region35: #{baseline_forward.1} parent=1 // pred_check_branch
      %34 = sbr.rel (0) target = $region37
    $region36: #{baseline_forward.1} parent=1 // pred_region
      _
    $region37: #{baseline_forward.1} parent=1 // pred_fallthru
      _
    // Predicated region
    $region38: #{baseline_forward.1} parent=1 // pred_check
      _
    $region39: #{baseline_forward.1} parent=1 // pred_check_branch
      %36 = sbr.rel (0) target = $region41
    $region40: #{baseline_forward.1} parent=1 // pred_region
      _
    $region41: #{baseline_forward.1} parent=1 // pred_fallthru
      _
    // Predicated region
    $region42: #{baseline_forward.1} parent=1 // pred_check
      _
    $region43: #{baseline_forward.1} parent=1 // pred_check_branch
      %38 = sbr.rel (0) target = $region45
    $region44: #{baseline_forward.1} parent=1 // pred_region
      _
    $region45: #{baseline_forward.1} parent=1 // pred_fallthru
      _
    %v39 = vlaneseq
    %v40 = vand.u32 %v39, 127
    %v41 = vadd.s32 %v40, 128
    %vm42 = vcmp.lt.s32.totalorder %v40, 128
    %vm43 = vcmp.lt.s32.totalorder %v41, 128
    %v44 = vld [vmem:[%s2] sm:$0x3]
    %v45 = vld [vmem:[%s3] sm:$0x3]
    %46 = vset.pattern.permute.xlu0 0
    %47 = vperm.xlu0 %46, %v44
    %v48 = vpop.permute.xlu0 %47
    %49 = vset.pattern.permute.xlu0 0
    %50 = vperm.xlu0 %49, %v45
    %v51 = vpop.permute.xlu0 %50
    %v52 = vsel %vm42, %v48, %v51
    %v53 = vsel %vm43, %v48, %v51
    %v54 = vld [vmem:[%s4] sm:$0xff]
    %v55 = vld [vmem:[%s4 + $0x8] sm:$0xff]
    %v56 = vld [vmem:[%s4 + $0x10] sm:$0xff]
    %v57 = vld [vmem:[%s4 + $0x18] sm:$0xff]
    %v58 = vld [vmem:[%s4 + $0x20] sm:$0xff]
    %v59 = vld [vmem:[%s4 + $0x28] sm:$0xff]
    %v60 = vld [vmem:[%s4 + $0x30] sm:$0xff]
    %v61 = vld [vmem:[%s4 + $0x38] sm:$0xff]
    %v62 = vld [vmem:[%s4 + $0x40] sm:$0xff]
    %v63 = vld [vmem:[%s4 + $0x48] sm:$0xff]
    %v64 = vld [vmem:[%s4 + $0x50] sm:$0xff]
    %v65 = vld [vmem:[%s4 + $0x58] sm:$0xff]
    %v66 = vld [vmem:[%s4 + $0x60] sm:$0xff]
    %v67 = vld [vmem:[%s4 + $0x68] sm:$0xff]
    %v68 = vld [vmem:[%s4 + $0x70] sm:$0xff]
    %v69 = vld [vmem:[%s4 + $0x78] sm:$0xff]
    %v70 = vld [vmem:[%s4 + $0x80] sm:$0xff]
    %v71 = vld [vmem:[%s4 + $0x88] sm:$0xff]
    %v72 = vld [vmem:[%s4 + $0x90] sm:$0xff]
    %v73 = vld [vmem:[%s4 + $0x98] sm:$0xff]
    %v74 = vld [vmem:[%s4 + $0xa0] sm:$0xff]
    %v75 = vld [vmem:[%s4 + $0xa8] sm:$0xff]
    %v76 = vld [vmem:[%s4 + $0xb0] sm:$0xff]
    %v77 = vld [vmem:[%s4 + $0xb8] sm:$0xff]
    %v78 = vld [vmem:[%s4 + $0xc0] sm:$0xff]
    %v79 = vld [vmem:[%s4 + $0xc8] sm:$0xff]
    %v80 = vld [vmem:[%s4 + $0xd0] sm:$0xff]
    %v81 = vld [vmem:[%s4 + $0xd8] sm:$0xff]
    %v82 = vld [vmem:[%s4 + $0xe0] sm:$0xff]
    %v83 = vld [vmem:[%s4 + $0xe8] sm:$0xff]
    %v84 = vld [vmem:[%s4 + $0xf0] sm:$0xff]
    %v85 = vld [vmem:[%s4 + $0xf8] sm:$0xff]
    %v86 = vld [vmem:[%s4 + $0x100] sm:$0xff]
    %v87 = vld [vmem:[%s4 + $0x108] sm:$0xff]
    %v88 = vld [vmem:[%s4 + $0x110] sm:$0xff]
    %v89 = vld [vmem:[%s4 + $0x118] sm:$0xff]
    %v90 = vld [vmem:[%s4 + $0x120] sm:$0xff]
    %v91 = vld [vmem:[%s4 + $0x128] sm:$0xff]
    %v92 = vld [vmem:[%s4 + $0x130] sm:$0xff]
    %v93 = vld [vmem:[%s4 + $0x138] sm:$0xff]
    %v94 = vld [vmem:[%s4 + $0x140] sm:$0xff]
    %v95 = vld [vmem:[%s4 + $0x148] sm:$0xff]
    %v96 = vld [vmem:[%s4 + $0x150] sm:$0xff]
    %v97 = vld [vmem:[%s4 + $0x158] sm:$0xff]
    %v98 = vld [vmem:[%s4 + $0x160] sm:$0xff]
    %v99 = vld [vmem:[%s4 + $0x168] sm:$0xff]
    %v100 = vld [vmem:[%s4 + $0x170] sm:$0xff]
    %v101 = vld [vmem:[%s4 + $0x178] sm:$0xff]
    %v102 = vld [vmem:[%s4 + $0x180] sm:$0xff]
    %v103 = vld [vmem:[%s4 + $0x188] sm:$0xff]
    %v104 = vld [vmem:[%s4 + $0x190] sm:$0xff]
    %v105 = vld [vmem:[%s4 + $0x198] sm:$0xff]
    %v106 = vld [vmem:[%s4 + $0x1a0] sm:$0xff]
    %v107 = vld [vmem:[%s4 + $0x1a8] sm:$0xff]
    %v108 = vld [vmem:[%s4 + $0x1b0] sm:$0xff]
    %v109 = vld [vmem:[%s4 + $0x1b8] sm:$0xff]
    %v110 = vld [vmem:[%s4 + $0x1c0] sm:$0xff]
    %v111 = vld [vmem:[%s4 + $0x1c8] sm:$0xff]
    %v112 = vld [vmem:[%s4 + $0x1d0] sm:$0xff]
    %v113 = vld [vmem:[%s4 + $0x1d8] sm:$0xff]
    %v114 = vld [vmem:[%s4 + $0x1e0] sm:$0xff]
    %v115 = vld [vmem:[%s4 + $0x1e8] sm:$0xff]
    %v116 = vld [vmem:[%s4 + $0x1f0] sm:$0xff]
    %v117 = vld [vmem:[%s4 + $0x1f8] sm:$0xff]
    %v118 = vld [vmem:[%s4 + $0x200] sm:$0xff]
    %v119 = vld [vmem:[%s4 + $0x208] sm:$0xff]
    %v120 = vld [vmem:[%s4 + $0x210] sm:$0xff]
    %v121 = vld [vmem:[%s4 + $0x218] sm:$0xff]
    %v122 = vld [vmem:[%s4 + $0x220] sm:$0xff]
    %v123 = vld [vmem:[%s4 + $0x228] sm:$0xff]
    %v124 = vld [vmem:[%s4 + $0x230] sm:$0xff]
    %v125 = vld [vmem:[%s4 + $0x238] sm:$0xff]
    %v126 = vld [vmem:[%s4 + $0x240] sm:$0xff]
    %v127 = vld [vmem:[%s4 + $0x248] sm:$0xff]
    %v128 = vld [vmem:[%s4 + $0x250] sm:$0xff]
    %v129 = vld [vmem:[%s4 + $0x258] sm:$0xff]
    %v130 = vld [vmem:[%s4 + $0x260] sm:$0xff]
    %v131 = vld [vmem:[%s4 + $0x268] sm:$0xff]
    %v132 = vld [vmem:[%s4 + $0x270] sm:$0xff]
    %v133 = vld [vmem:[%s4 + $0x278] sm:$0xff]
    %v134 = vld [vmem:[%s4 + $0x280] sm:$0xff]
    %v135 = vld [vmem:[%s4 + $0x288] sm:$0xff]
    %v136 = vld [vmem:[%s4 + $0x290] sm:$0xff]
    %v137 = vld [vmem:[%s4 + $0x298] sm:$0xff]
    %v138 = vld [vmem:[%s4 + $0x2a0] sm:$0xff]
    %v139 = vld [vmem:[%s4 + $0x2a8] sm:$0xff]
    %v140 = vld [vmem:[%s4 + $0x2b0] sm:$0xff]
    %v141 = vld [vmem:[%s4 + $0x2b8] sm:$0xff]
    %v142 = vld [vmem:[%s4 + $0x2c0] sm:$0xff]
    %v143 = vld [vmem:[%s4 + $0x2c8] sm:$0xff]
    %v144 = vld [vmem:[%s4 + $0x2d0] sm:$0xff]
    %v145 = vld [vmem:[%s4 + $0x2d8] sm:$0xff]
    %v146 = vld [vmem:[%s4 + $0x2e0] sm:$0xff]
    %v147 = vld [vmem:[%s4 + $0x2e8] sm:$0xff]
    %v148 = vld [vmem:[%s4 + $0x2f0] sm:$0xff]
    %v149 = vld [vmem:[%s4 + $0x2f8] sm:$0xff]
    %v150 = vld [vmem:[%s4 + $0x300] sm:$0xff]
    %v151 = vld [vmem:[%s4 + $0x308] sm:$0xff]
    %v152 = vld [vmem:[%s4 + $0x310] sm:$0xff]
    %v153 = vld [vmem:[%s4 + $0x318] sm:$0xff]
    %v154 = vld [vmem:[%s4 + $0x320] sm:$0xff]
    %v155 = vld [vmem:[%s4 + $0x328] sm:$0xff]
    %v156 = vld [vmem:[%s4 + $0x330] sm:$0xff]
    %v157 = vld [vmem:[%s4 + $0x338] sm:$0xff]
    %v158 = vld [vmem:[%s4 + $0x340] sm:$0xff]
    %v159 = vld [vmem:[%s4 + $0x348] sm:$0xff]
    %v160 = vld [vmem:[%s4 + $0x350] sm:$0xff]
    %v161 = vld [vmem:[%s4 + $0x358] sm:$0xff]
    %v162 = vld [vmem:[%s4 + $0x360] sm:$0xff]
    %v163 = vld [vmem:[%s4 + $0x368] sm:$0xff]
    %v164 = vld [vmem:[%s4 + $0x370] sm:$0xff]
    %v165 = vld [vmem:[%s4 + $0x378] sm:$0xff]
    %v166 = vld [vmem:[%s4 + $0x380] sm:$0xff]
    %v167 = vld [vmem:[%s4 + $0x388] sm:$0xff]
    %v168 = vld [vmem:[%s4 + $0x390] sm:$0xff]
    %v169 = vld [vmem:[%s4 + $0x398] sm:$0xff]
    %v170 = vld [vmem:[%s4 + $0x3a0] sm:$0xff]
    %v171 = vld [vmem:[%s4 + $0x3a8] sm:$0xff]
    %v172 = vld [vmem:[%s4 + $0x3b0] sm:$0xff]
    %v173 = vld [vmem:[%s4 + $0x3b8] sm:$0xff]
    %v174 = vld [vmem:[%s4 + $0x3c0] sm:$0xff]
    %v175 = vld [vmem:[%s4 + $0x3c8] sm:$0xff]
    %v176 = vld [vmem:[%s4 + $0x3d0] sm:$0xff]
    %v177 = vld [vmem:[%s4 + $0x3d8] sm:$0xff]
    %v178 = vld [vmem:[%s4 + $0x3e0] sm:$0xff]
    %v179 = vld [vmem:[%s4 + $0x3e8] sm:$0xff]
    %v180 = vld [vmem:[%s4 + $0x3f0] sm:$0xff]
    %v181 = vld [vmem:[%s4 + $0x3f8] sm:$0xff]
    %v182 = vld [vmem:[%s4 + $0x400] sm:$0xff]
    %v183 = vld [vmem:[%s4 + $0x408] sm:$0xff]
    %v184 = vld [vmem:[%s4 + $0x410] sm:$0xff]
    %v185 = vld [vmem:[%s4 + $0x418] sm:$0xff]
    %v186 = vld [vmem:[%s4 + $0x420] sm:$0xff]
    %v187 = vld [vmem:[%s4 + $0x428] sm:$0xff]
    %v188 = vld [vmem:[%s4 + $0x430] sm:$0xff]
    %v189 = vld [vmem:[%s4 + $0x438] sm:$0xff]
    %v190 = vld [vmem:[%s4 + $0x440] sm:$0xff]
    %v191 = vld [vmem:[%s4 + $0x448] sm:$0xff]
    %v192 = vld [vmem:[%s4 + $0x450] sm:$0xff]
    %v193 = vld [vmem:[%s4 + $0x458] sm:$0xff]
    %v194 = vld [vmem:[%s4 + $0x460] sm:$0xff]
    %v195 = vld [vmem:[%s4 + $0x468] sm:$0xff]
    %v196 = vld [vmem:[%s4 + $0x470] sm:$0xff]
    %v197 = vld [vmem:[%s4 + $0x478] sm:$0xff]
    %v198 = vld [vmem:[%s4 + $0x480] sm:$0xff]
    %v199 = vld [vmem:[%s4 + $0x488] sm:$0xff]
    %v200 = vld [vmem:[%s4 + $0x490] sm:$0xff]
    %v201 = vld [vmem:[%s4 + $0x498] sm:$0xff]
    %v202 = vld [vmem:[%s4 + $0x4a0] sm:$0xff]
    %v203 = vld [vmem:[%s4 + $0x4a8] sm:$0xff]
    %v204 = vld [vmem:[%s4 + $0x4b0] sm:$0xff]
    %v205 = vld [vmem:[%s4 + $0x4b8] sm:$0xff]
    %v206 = vld [vmem:[%s4 + $0x4c0] sm:$0xff]
    %v207 = vld [vmem:[%s4 + $0x4c8] sm:$0xff]
    %v208 = vld [vmem:[%s4 + $0x4d0] sm:$0xff]
    %v209 = vld [vmem:[%s4 + $0x4d8] sm:$0xff]
    %v210 = vld [vmem:[%s4 + $0x4e0] sm:$0xff]
    %v211 = vld [vmem:[%s4 + $0x4e8] sm:$0xff]
    %v212 = vld [vmem:[%s4 + $0x4f0] sm:$0xff]
    %v213 = vld [vmem:[%s4 + $0x4f8] sm:$0xff]
    %v214 = vld [vmem:[%s4 + $0x500] sm:$0xff]
    %v215 = vld [vmem:[%s4 + $0x508] sm:$0xff]
    %v216 = vld [vmem:[%s4 + $0x510] sm:$0xff]
    %v217 = vld [vmem:[%s4 + $0x518] sm:$0xff]
    %v218 = vld [vmem:[%s4 + $0x520] sm:$0xff]
    %v219 = vld [vmem:[%s4 + $0x528] sm:$0xff]
    %v220 = vld [vmem:[%s4 + $0x530] sm:$0xff]
    %v221 = vld [vmem:[%s4 + $0x538] sm:$0xff]
    %v222 = vld [vmem:[%s4 + $0x540] sm:$0xff]
    %v223 = vld [vmem:[%s4 + $0x548] sm:$0xff]
    %v224 = vld [vmem:[%s4 + $0x550] sm:$0xff]
    %v225 = vld [vmem:[%s4 + $0x558] sm:$0xff]
    %v226 = vld [vmem:[%s4 + $0x560] sm:$0xff]
    %v227 = vld [vmem:[%s4 + $0x568] sm:$0xff]
    %v228 = vld [vmem:[%s4 + $0x570] sm:$0xff]
    %v229 = vld [vmem:[%s4 + $0x578] sm:$0xff]
    %v230 = vld [vmem:[%s4 + $0x580] sm:$0xff]
    %v231 = vld [vmem:[%s4 + $0x588] sm:$0xff]
    %v232 = vld [vmem:[%s4 + $0x590] sm:$0xff]
    %v233 = vld [vmem:[%s4 + $0x598] sm:$0xff]
    %v234 = vld [vmem:[%s4 + $0x5a0] sm:$0xff]
    %v235 = vld [vmem:[%s4 + $0x5a8] sm:$0xff]
    %v236 = vld [vmem:[%s4 + $0x5b0] sm:$0xff]
    %v237 = vld [vmem:[%s4 + $0x5b8] sm:$0xff]
    %v238 = vld [vmem:[%s4 + $0x5c0] sm:$0xff]
    %v239 = vld [vmem:[%s4 + $0x5c8] sm:$0xff]
    %v240 = vld [vmem:[%s4 + $0x5d0] sm:$0xff]
    %v241 = vld [vmem:[%s4 + $0x5d8] sm:$0xff]
    %v242 = vld [vmem:[%s4 + $0x5e0] sm:$0xff]
    %v243 = vld [vmem:[%s4 + $0x5e8] sm:$0xff]
    %v244 = vld [vmem:[%s4 + $0x5f0] sm:$0xff]
    %v245 = vld [vmem:[%s4 + $0x5f8] sm:$0xff]
    %v246 = vld [vmem:[%s4 + $0x600] sm:$0xff]
    %v247 = vld [vmem:[%s4 + $0x608] sm:$0xff]
    %v248 = vld [vmem:[%s4 + $0x610] sm:$0xff]
    %v249 = vld [vmem:[%s4 + $0x618] sm:$0xff]
    %v250 = vld [vmem:[%s4 + $0x620] sm:$0xff]
    %v251 = vld [vmem:[%s4 + $0x628] sm:$0xff]
    %v252 = vld [vmem:[%s4 + $0x630] sm:$0xff]
    %v253 = vld [vmem:[%s4 + $0x638] sm:$0xff]
    %v254 = vld [vmem:[%s4 + $0x640] sm:$0xff]
    %v255 = vld [vmem:[%s4 + $0x648] sm:$0xff]
    %v256 = vld [vmem:[%s4 + $0x650] sm:$0xff]
    %v257 = vld [vmem:[%s4 + $0x658] sm:$0xff]
    %v258 = vld [vmem:[%s4 + $0x660] sm:$0xff]
    %v259 = vld [vmem:[%s4 + $0x668] sm:$0xff]
    %v260 = vld [vmem:[%s4 + $0x670] sm:$0xff]
    %v261 = vld [vmem:[%s4 + $0x678] sm:$0xff]
    %v262 = vld [vmem:[%s4 + $0x680] sm:$0xff]
    %v263 = vld [vmem:[%s4 + $0x688] sm:$0xff]
    %v264 = vld [vmem:[%s4 + $0x690] sm:$0xff]
    %v265 = vld [vmem:[%s4 + $0x698] sm:$0xff]
    %v266 = vld [vmem:[%s4 + $0x6a0] sm:$0xff]
    %v267 = vld [vmem:[%s4 + $0x6a8] sm:$0xff]
    %v268 = vld [vmem:[%s4 + $0x6b0] sm:$0xff]
    %v269 = vld [vmem:[%s4 + $0x6b8] sm:$0xff]
    %v270 = vld [vmem:[%s4 + $0x6c0] sm:$0xff]
    %v271 = vld [vmem:[%s4 + $0x6c8] sm:$0xff]
    %v272 = vld [vmem:[%s4 + $0x6d0] sm:$0xff]
    %v273 = vld [vmem:[%s4 + $0x6d8] sm:$0xff]
    %v274 = vld [vmem:[%s4 + $0x6e0] sm:$0xff]
    %v275 = vld [vmem:[%s4 + $0x6e8] sm:$0xff]
    %v276 = vld [vmem:[%s4 + $0x6f0] sm:$0xff]
    %v277 = vld [vmem:[%s4 + $0x6f8] sm:$0xff]
    %v278 = vld [vmem:[%s4 + $0x700] sm:$0xff]
    %v279 = vld [vmem:[%s4 + $0x708] sm:$0xff]
    %v280 = vld [vmem:[%s4 + $0x710] sm:$0xff]
    %v281 = vld [vmem:[%s4 + $0x718] sm:$0xff]
    %v282 = vld [vmem:[%s4 + $0x720] sm:$0xff]
    %v283 = vld [vmem:[%s4 + $0x728] sm:$0xff]
    %v284 = vld [vmem:[%s4 + $0x730] sm:$0xff]
    %v285 = vld [vmem:[%s4 + $0x738] sm:$0xff]
    %v286 = vld [vmem:[%s4 + $0x740] sm:$0xff]
    %v287 = vld [vmem:[%s4 + $0x748] sm:$0xff]
    %v288 = vld [vmem:[%s4 + $0x750] sm:$0xff]
    %v289 = vld [vmem:[%s4 + $0x758] sm:$0xff]
    %v290 = vld [vmem:[%s4 + $0x760] sm:$0xff]
    %v291 = vld [vmem:[%s4 + $0x768] sm:$0xff]
    %v292 = vld [vmem:[%s4 + $0x770] sm:$0xff]
    %v293 = vld [vmem:[%s4 + $0x778] sm:$0xff]
    %v294 = vld [vmem:[%s4 + $0x780] sm:$0xff]
    %v295 = vld [vmem:[%s4 + $0x788] sm:$0xff]
    %v296 = vld [vmem:[%s4 + $0x790] sm:$0xff]
    %v297 = vld [vmem:[%s4 + $0x798] sm:$0xff]
    %v298 = vld [vmem:[%s4 + $0x7a0] sm:$0xff]
    %v299 = vld [vmem:[%s4 + $0x7a8] sm:$0xff]
    %v300 = vld [vmem:[%s4 + $0x7b0] sm:$0xff]
    %v301 = vld [vmem:[%s4 + $0x7b8] sm:$0xff]
    %v302 = vld [vmem:[%s4 + $0x7c0] sm:$0xff]
    %v303 = vld [vmem:[%s4 + $0x7c8] sm:$0xff]
    %v304 = vld [vmem:[%s4 + $0x7d0] sm:$0xff]
    %v305 = vld [vmem:[%s4 + $0x7d8] sm:$0xff]
    %v306 = vld [vmem:[%s4 + $0x7e0] sm:$0xff]
    %v307 = vld [vmem:[%s4 + $0x7e8] sm:$0xff]
    %v308 = vld [vmem:[%s4 + $0x7f0] sm:$0xff]
    %v309 = vld [vmem:[%s4 + $0x7f8] sm:$0xff]
    %v310 = vld [vmem:[%s0] sm:$0xff]
    %v311 = vld [vmem:[%s0 + $0x8] sm:$0xff]
    %v314 = vcombine.high %v310, %v310
    %v316 = vunpack.c.l.s4 1983009808
    %v317 = vunpack.c.0.s8 %v316
    %v318 = vlaneseq
    %v319 = vshrl.u32 %v318, 7
    %v320 = vsub.s32 %v317, %v319
    %v321 = vrot.slane %v310, %v320
    %v323 = vunpack.c.l.s4 1983009808
    %v324 = vunpack.c.0.s8 %v323
    %v325 = vlaneseq
    %v326 = vshrl.u32 %v325, 7
    %v327 = vsub.s32 %v324, %v326
    %v328 = vrot.slane %v314, %v327
    %v329 = vcombine.high %v321, %v321
    %v330 = vcombine.high %v328, %v328
    %v331 = vcombine.high %v311, %v311
    %v333 = vunpack.c.l.s4 1983009808
    %v334 = vunpack.c.0.s8 %v333
    %v335 = vlaneseq
    %v336 = vshrl.u32 %v335, 7
    %v337 = vsub.s32 %v334, %v336
    %v338 = vrot.slane %v311, %v337
    %v340 = vunpack.c.l.s4 1983009808
    %v341 = vunpack.c.0.s8 %v340
    %v342 = vlaneseq
    %v343 = vshrl.u32 %v342, 7
    %v344 = vsub.s32 %v341, %v343
    %v345 = vrot.slane %v331, %v344
    %v346 = vcombine.high %v338, %v338
    %v347 = vcombine.high %v345, %v345
    %356 = vmatprep.subr.mxu0 %v55
    %357 = vmatpush1.msra.mxu0 %v54
    %358 = vmatprep.subr.mxu0 %v63
    %359 = vmatpush1.msra.mxu0 %v62
    %360 = vmatprep.subr.mxu0 %v71
    %361 = vmatpush1.msra.mxu0 %v70
    %362 = vmatprep.subr.mxu0 %v79
    %363 = vmatpush1.msra.mxu0 %v78
    %364 = vmatprep.subr.mxu0 %v87
    %365 = vmatpush1.msra.mxu0 %v86
    %366 = vmatprep.subr.mxu0 %v95
    %367 = vmatpush1.msra.mxu0 %v94
    %368 = vmatprep.subr.mxu0 %v103
    %369 = vmatpush1.msra.mxu0 %v102
    %370 = vmatprep.subr.mxu0 %v111
    %371 = vmatpush1.msra.mxu0 %v110
    %372 = vmatprep.subr.mxu0 %v119
    %373 = vmatpush1.msra.mxu0 %v118
    %374 = vmatprep.subr.mxu0 %v127
    %375 = vmatpush1.msra.mxu0 %v126
    %376 = vmatprep.subr.mxu0 %v135
    %377 = vmatpush1.msra.mxu0 %v134
    %378 = vmatprep.subr.mxu0 %v143
    %379 = vmatpush1.msra.mxu0 %v142
    %380 = vmatprep.subr.mxu0 %v151
    %381 = vmatpush1.msra.mxu0 %v150
    %382 = vmatprep.subr.mxu0 %v159
    %383 = vmatpush1.msra.mxu0 %v158
    %384 = vmatprep.subr.mxu0 %v167
    %385 = vmatpush1.msra.mxu0 %v166
    %386 = vmatprep.subr.mxu0 %v175
    %387 = vmatpush1.msra.mxu0 %v174
    %388 = vmatprep.subr.mxu0 %v183
    %389 = vmatpush1.msra.mxu0 %v182
    %390 = vmatprep.subr.mxu0 %v191
    %391 = vmatpush1.msra.mxu0 %v190
    %392 = vmatprep.subr.mxu0 %v199
    %393 = vmatpush1.msra.mxu0 %v198
    %394 = vmatprep.subr.mxu0 %v207
    %395 = vmatpush1.msra.mxu0 %v206
    %396 = vmatprep.subr.mxu0 %v215
    %397 = vmatpush1.msra.mxu0 %v214
    %398 = vmatprep.subr.mxu0 %v223
    %399 = vmatpush1.msra.mxu0 %v222
    %400 = vmatprep.subr.mxu0 %v231
    %401 = vmatpush1.msra.mxu0 %v230
    %402 = vmatprep.subr.mxu0 %v239
    %403 = vmatpush1.msra.mxu0 %v238
    %404 = vmatprep.subr.mxu0 %v247
    %405 = vmatpush1.msra.mxu0 %v246
    %406 = vmatprep.subr.mxu0 %v255
    %407 = vmatpush1.msra.mxu0 %v254
    %408 = vmatprep.subr.mxu0 %v263
    %409 = vmatpush1.msra.mxu0 %v262
    %410 = vmatprep.subr.mxu0 %v271
    %411 = vmatpush1.msra.mxu0 %v270
    %412 = vmatprep.subr.mxu0 %v279
    %413 = vmatpush1.msra.mxu0 %v278
    %414 = vmatprep.subr.mxu0 %v287
    %415 = vmatpush1.msra.mxu0 %v286
    %416 = vmatprep.subr.mxu0 %v295
    %417 = vmatpush1.msra.mxu0 %v294
    %418 = vmatprep.subr.mxu0 %v303
    %419 = vmatpush1.msra.mxu0 %v302
    %420 = vmatprep.mubr.f32.mxu0 0.0
    %421 = vmatmul.mubr.f32.gmra.mrb[0].mxu0 0.0
    %v422 = vpop.f32.mrb[0].mxu0
    %v423 = vadd.f32 %v321, %v422
    %v424 = vpop.f32.mrb[0].mxu0
    %v425 = vadd.f32 %v329, %v424
    %426 = vdwg.mxu0
    %427 = vmatprep.subr.mxu0 %v57
    %428 = vmatpush1.msra.mxu0 %v56
    %429 = vmatprep.subr.mxu0 %v65
    %430 = vmatpush1.msra.mxu0 %v64
    %431 = vmatprep.subr.mxu0 %v73
    %432 = vmatpush1.msra.mxu0 %v72
    %433 = vmatprep.subr.mxu0 %v81
    %434 = vmatpush1.msra.mxu0 %v80
    %435 = vmatprep.subr.mxu0 %v89
    %436 = vmatpush1.msra.mxu0 %v88
    %437 = vmatprep.subr.mxu0 %v97
    %438 = vmatpush1.msra.mxu0 %v96
    %439 = vmatprep.subr.mxu0 %v105
    %440 = vmatpush1.msra.mxu0 %v104
    %441 = vmatprep.subr.mxu0 %v113
    %442 = vmatpush1.msra.mxu0 %v112
    %443 = vmatprep.subr.mxu0 %v121
    %444 = vmatpush1.msra.mxu0 %v120
    %445 = vmatprep.subr.mxu0 %v129
    %446 = vmatpush1.msra.mxu0 %v128
    %447 = vmatprep.subr.mxu0 %v137
    %448 = vmatpush1.msra.mxu0 %v136
    %449 = vmatprep.subr.mxu0 %v145
    %450 = vmatpush1.msra.mxu0 %v144
    %451 = vmatprep.subr.mxu0 %v153
    %452 = vmatpush1.msra.mxu0 %v152
    %453 = vmatprep.subr.mxu0 %v161
    %454 = vmatpush1.msra.mxu0 %v160
    %455 = vmatprep.subr.mxu0 %v169
    %456 = vmatpush1.msra.mxu0 %v168
    %457 = vmatprep.subr.mxu0 %v177
    %458 = vmatpush1.msra.mxu0 %v176
    %459 = vmatprep.subr.mxu0 %v185
    %460 = vmatpush1.msra.mxu0 %v184
    %461 = vmatprep.subr.mxu0 %v193
    %462 = vmatpush1.msra.mxu0 %v192
    %463 = vmatprep.subr.mxu0 %v201
    %464 = vmatpush1.msra.mxu0 %v200
    %465 = vmatprep.subr.mxu0 %v209
    %466 = vmatpush1.msra.mxu0 %v208
    %467 = vmatprep.subr.mxu0 %v217
    %468 = vmatpush1.msra.mxu0 %v216
    %469 = vmatprep.subr.mxu0 %v225
    %470 = vmatpush1.msra.mxu0 %v224
    %471 = vmatprep.subr.mxu0 %v233
    %472 = vmatpush1.msra.mxu0 %v232
    %473 = vmatprep.subr.mxu0 %v241
    %474 = vmatpush1.msra.mxu0 %v240
    %475 = vmatprep.subr.mxu0 %v249
    %476 = vmatpush1.msra.mxu0 %v248
    %477 = vmatprep.subr.mxu0 %v257
    %478 = vmatpush1.msra.mxu0 %v256
    %479 = vmatprep.subr.mxu0 %v265
    %480 = vmatpush1.msra.mxu0 %v264
    %481 = vmatprep.subr.mxu0 %v273
    %482 = vmatpush1.msra.mxu0 %v272
    %483 = vmatprep.subr.mxu0 %v281
    %484 = vmatpush1.msra.mxu0 %v280
    %485 = vmatprep.subr.mxu0 %v289
    %486 = vmatpush1.msra.mxu0 %v288
    %487 = vmatprep.subr.mxu0 %v297
    %488 = vmatpush1.msra.mxu0 %v296
    %489 = vmatprep.subr.mxu0 %v305
    %490 = vmatpush1.msra.mxu0 %v304
    %491 = vmatprep.mubr.f32.mxu0 0.0
    %492 = vmatmul.mubr.f32.gmra.mrb[0].mxu0 0.0
    %v493 = vpop.f32.mrb[0].mxu0
    %v494 = vadd.f32 %v328, %v493
    %v495 = vpop.f32.mrb[0].mxu0
    %v496 = vadd.f32 %v330, %v495
    %497 = vdwg.mxu0
    %498 = vmatprep.subr.mxu0 %v59
    %499 = vmatpush1.msra.mxu0 %v58
    %500 = vmatprep.subr.mxu0 %v67
    %501 = vmatpush1.msra.mxu0 %v66
    %502 = vmatprep.subr.mxu0 %v75
    %503 = vmatpush1.msra.mxu0 %v74
    %504 = vmatprep.subr.mxu0 %v83
    %505 = vmatpush1.msra.mxu0 %v82
    %506 = vmatprep.subr.mxu0 %v91
    %507 = vmatpush1.msra.mxu0 %v90
    %508 = vmatprep.subr.mxu0 %v99
    %509 = vmatpush1.msra.mxu0 %v98
    %510 = vmatprep.subr.mxu0 %v107
    %511 = vmatpush1.msra.mxu0 %v106
    %512 = vmatprep.subr.mxu0 %v115
    %513 = vmatpush1.msra.mxu0 %v114
    %514 = vmatprep.subr.mxu0 %v123
    %515 = vmatpush1.msra.mxu0 %v122
    %516 = vmatprep.subr.mxu0 %v131
    %517 = vmatpush1.msra.mxu0 %v130
    %518 = vmatprep.subr.mxu0 %v139
    %519 = vmatpush1.msra.mxu0 %v138
    %520 = vmatprep.subr.mxu0 %v147
    %521 = vmatpush1.msra.mxu0 %v146
    %522 = vmatprep.subr.mxu0 %v155
    %523 = vmatpush1.msra.mxu0 %v154
    %524 = vmatprep.subr.mxu0 %v163
    %525 = vmatpush1.msra.mxu0 %v162
    %526 = vmatprep.subr.mxu0 %v171
    %527 = vmatpush1.msra.mxu0 %v170
    %528 = vmatprep.subr.mxu0 %v179
    %529 = vmatpush1.msra.mxu0 %v178
    %530 = vmatprep.subr.mxu0 %v187
    %531 = vmatpush1.msra.mxu0 %v186
    %532 = vmatprep.subr.mxu0 %v195
    %533 = vmatpush1.msra.mxu0 %v194
    %534 = vmatprep.subr.mxu0 %v203
    %535 = vmatpush1.msra.mxu0 %v202
    %536 = vmatprep.subr.mxu0 %v211
    %537 = vmatpush1.msra.mxu0 %v210
    %538 = vmatprep.subr.mxu0 %v219
    %539 = vmatpush1.msra.mxu0 %v218
    %540 = vmatprep.subr.mxu0 %v227
    %541 = vmatpush1.msra.mxu0 %v226
    %542 = vmatprep.subr.mxu0 %v235
    %543 = vmatpush1.msra.mxu0 %v234
    %544 = vmatprep.subr.mxu0 %v243
    %545 = vmatpush1.msra.mxu0 %v242
    %546 = vmatprep.subr.mxu0 %v251
    %547 = vmatpush1.msra.mxu0 %v250
    %548 = vmatprep.subr.mxu0 %v259
    %549 = vmatpush1.msra.mxu0 %v258
    %550 = vmatprep.subr.mxu0 %v267
    %551 = vmatpush1.msra.mxu0 %v266
    %552 = vmatprep.subr.mxu0 %v275
    %553 = vmatpush1.msra.mxu0 %v274
    %554 = vmatprep.subr.mxu0 %v283
    %555 = vmatpush1.msra.mxu0 %v282
    %556 = vmatprep.subr.mxu0 %v291
    %557 = vmatpush1.msra.mxu0 %v290
    %558 = vmatprep.subr.mxu0 %v299
    %559 = vmatpush1.msra.mxu0 %v298
    %560 = vmatprep.subr.mxu0 %v307
    %561 = vmatpush1.msra.mxu0 %v306
    %562 = vmatprep.mubr.f32.mxu0 0.0
    %563 = vmatmul.mubr.f32.gmra.mrb[0].mxu0 0.0
    %v564 = vpop.f32.mrb[0].mxu0
    %v565 = vadd.f32 %v338, %v564
    %v566 = vpop.f32.mrb[0].mxu0
    %v567 = vadd.f32 %v346, %v566
    %568 = vdwg.mxu0
    %569 = vmatprep.subr.mxu0 %v61
    %570 = vmatpush1.msra.mxu0 %v60
    %571 = vmatprep.subr.mxu0 %v69
    %572 = vmatpush1.msra.mxu0 %v68
    %573 = vmatprep.subr.mxu0 %v77
    %574 = vmatpush1.msra.mxu0 %v76
    %575 = vmatprep.subr.mxu0 %v85
    %576 = vmatpush1.msra.mxu0 %v84
    %577 = vmatprep.subr.mxu0 %v93
    %578 = vmatpush1.msra.mxu0 %v92
    %579 = vmatprep.subr.mxu0 %v101
    %580 = vmatpush1.msra.mxu0 %v100
    %581 = vmatprep.subr.mxu0 %v109
    %582 = vmatpush1.msra.mxu0 %v108
    %583 = vmatprep.subr.mxu0 %v117
    %584 = vmatpush1.msra.mxu0 %v116
    %585 = vmatprep.subr.mxu0 %v125
    %586 = vmatpush1.msra.mxu0 %v124
    %587 = vmatprep.subr.mxu0 %v133
    %588 = vmatpush1.msra.mxu0 %v132
    %589 = vmatprep.subr.mxu0 %v141
    %590 = vmatpush1.msra.mxu0 %v140
    %591 = vmatprep.subr.mxu0 %v149
    %592 = vmatpush1.msra.mxu0 %v148
    %593 = vmatprep.subr.mxu0 %v157
    %594 = vmatpush1.msra.mxu0 %v156
    %595 = vmatprep.subr.mxu0 %v165
    %596 = vmatpush1.msra.mxu0 %v164
    %597 = vmatprep.subr.mxu0 %v173
    %598 = vmatpush1.msra.mxu0 %v172
    %599 = vmatprep.subr.mxu0 %v181
    %600 = vmatpush1.msra.mxu0 %v180
    %601 = vmatprep.subr.mxu0 %v189
    %602 = vmatpush1.msra.mxu0 %v188
    %603 = vmatprep.subr.mxu0 %v197
    %604 = vmatpush1.msra.mxu0 %v196
    %605 = vmatprep.subr.mxu0 %v205
    %606 = vmatpush1.msra.mxu0 %v204
    %607 = vmatprep.subr.mxu0 %v213
    %608 = vmatpush1.msra.mxu0 %v212
    %609 = vmatprep.subr.mxu0 %v221
    %610 = vmatpush1.msra.mxu0 %v220
    %611 = vmatprep.subr.mxu0 %v229
    %612 = vmatpush1.msra.mxu0 %v228
    %613 = vmatprep.subr.mxu0 %v237
    %614 = vmatpush1.msra.mxu0 %v236
    %615 = vmatprep.subr.mxu0 %v245
    %616 = vmatpush1.msra.mxu0 %v244
    %617 = vmatprep.subr.mxu0 %v253
    %618 = vmatpush1.msra.mxu0 %v252
    %619 = vmatprep.subr.mxu0 %v261
    %620 = vmatpush1.msra.mxu0 %v260
    %621 = vmatprep.subr.mxu0 %v269
    %622 = vmatpush1.msra.mxu0 %v268
    %623 = vmatprep.subr.mxu0 %v277
    %624 = vmatpush1.msra.mxu0 %v276
    %625 = vmatprep.subr.mxu0 %v285
    %626 = vmatpush1.msra.mxu0 %v284
    %627 = vmatprep.subr.mxu0 %v293
    %628 = vmatpush1.msra.mxu0 %v292
    %629 = vmatprep.subr.mxu0 %v301
    %630 = vmatpush1.msra.mxu0 %v300
    %631 = vmatprep.subr.mxu0 %v309
    %632 = vmatpush1.msra.mxu0 %v308
    %633 = vmatprep.mubr.f32.mxu0 0.0
    %634 = vmatmul.mubr.f32.gmra.mrb[0].mxu0 0.0
    %v635 = vpop.f32.mrb[0].mxu0
    %v636 = vadd.f32 %v345, %v635
    %v637 = vpop.f32.mrb[0].mxu0
    %v638 = vadd.f32 %v347, %v637
    %639 = vdwg.mxu0
    %v640 = vld [vmem:[%s1] sm:$0xff]
    %v641 = vld [vmem:[%s1 + $0x8] sm:$0xff]
    %v644 = vcombine.high %v640, %v640
    %v646 = vunpack.c.l.s4 1983009808
    %v647 = vunpack.c.0.s8 %v646
    %v648 = vlaneseq
    %v649 = vshrl.u32 %v648, 7
    %v650 = vsub.s32 %v647, %v649
    %v651 = vrot.slane %v640, %v650
    %v653 = vunpack.c.l.s4 1983009808
    %v654 = vunpack.c.0.s8 %v653
    %v655 = vlaneseq
    %v656 = vshrl.u32 %v655, 7
    %v657 = vsub.s32 %v654, %v656
    %v658 = vrot.slane %v644, %v657
    %v659 = vcombine.high %v651, %v651
    %v660 = vcombine.high %v658, %v658
    %v661 = vcombine.high %v641, %v641
    %v663 = vunpack.c.l.s4 1983009808
    %v664 = vunpack.c.0.s8 %v663
    %v665 = vlaneseq
    %v666 = vshrl.u32 %v665, 7
    %v667 = vsub.s32 %v664, %v666
    %v668 = vrot.slane %v641, %v667
    %v670 = vunpack.c.l.s4 1983009808
    %v671 = vunpack.c.0.s8 %v670
    %v672 = vlaneseq
    %v673 = vshrl.u32 %v672, 7
    %v674 = vsub.s32 %v671, %v673
    %v675 = vrot.slane %v661, %v674
    %v676 = vcombine.high %v668, %v668
    %v677 = vcombine.high %v675, %v675
    %v686 = vadd.f32 %v423, %v651
    %v687 = vadd.f32 %v425, %v659
    %v688 = vadd.f32 %v494, %v658
    %v689 = vadd.f32 %v496, %v660
    %v690 = vadd.f32 %v565, %v668
    %v691 = vadd.f32 %v567, %v676
    %v692 = vadd.f32 %v636, %v675
    %v693 = vadd.f32 %v638, %v677
    %v694 = vxor.u32 %v686, 2147483648
    %v695 = vxor.u32 %v687, 2147483648
    %v696 = vmul.f32 %v694, 1.442695
    %v697 = vpow.pop %v696
    %v698 = vmul.f32 %v695, 1.442695
    %v699 = vpow.pop %v698
    %v700 = vadd.f32 %v697, 1.0
    %v701 = vadd.f32 %v699, 1.0
    %v702 = vrcp.pop %v700
    %v703 = vmul.f32 1.0, %v702
    %v704 = vrcp.pop %v701
    %v705 = vmul.f32 1.0, %v704
    %v706 = vxor.u32 %v688, 2147483648
    %v707 = vxor.u32 %v689, 2147483648
    %v708 = vmul.f32 %v706, 1.442695
    %v709 = vpow.pop %v708
    %v710 = vmul.f32 %v707, 1.442695
    %v711 = vpow.pop %v710
    %v712 = vadd.f32 %v709, 1.0
    %v713 = vadd.f32 %v711, 1.0
    %v714 = vrcp.pop %v712
    %v715 = vmul.f32 1.0, %v714
    %v716 = vrcp.pop %v713
    %v717 = vmul.f32 1.0, %v716
    %v718 = vtanh.pop %v690
    %v719 = vtanh.pop %v691
    %v720 = vxor.u32 %v692, 2147483648
    %v721 = vxor.u32 %v693, 2147483648
    %v722 = vmul.f32 %v720, 1.442695
    %v723 = vpow.pop %v722
    %v724 = vmul.f32 %v721, 1.442695
    %v725 = vpow.pop %v724
    %v726 = vadd.f32 %v723, 1.0
    %v727 = vadd.f32 %v725, 1.0
    %v728 = vrcp.pop %v726
    %v729 = vmul.f32 1.0, %v728
    %v730 = vrcp.pop %v727
    %v731 = vmul.f32 1.0, %v730
    %v732 = vmul.f32 %v715, 0.0
    %v733 = vmul.f32 %v717, 0.0
    %v734 = vmul.f32 %v703, %v718
    %v735 = vmul.f32 %v705, %v719
    %v736 = vadd.f32 %v732, %v734
    %v737 = vadd.f32 %v733, %v735
    %v738 = vtanh.pop %v736
    %v739 = vtanh.pop %v737
    %v740 = vmul.f32 %v729, %v738
    %v741 = vmul.f32 %v731, %v739
    %vm742 = vcmp.gt.s32.totalorder %v52, 0
    %vm743 = vcmp.gt.s32.totalorder %v53, 0
    %v744 = vsel %vm742, %v740, 0.0
    %v745 = vsel %vm743, %v741, 0.0
    %v746 = vsel %vm742, %v736, 0.0
    %v747 = vsel %vm743, %v737, 0.0
    %v748 = vld [vmem:[%s0 + $0x10] sm:$0xff]
    %v749 = vld [vmem:[%s0 + $0x18] sm:$0xff]
    %v752 = vcombine.high %v748, %v748
    %v754 = vunpack.c.l.s4 1983009808
    %v755 = vunpack.c.0.s8 %v754
    %v756 = vlaneseq
    %v757 = vshrl.u32 %v756, 7
    %v758 = vsub.s32 %v755, %v757
    %v759 = vrot.slane %v748, %v758
    %v761 = vunpack.c.l.s4 1983009808
    %v762 = vunpack.c.0.s8 %v761
    %v763 = vlaneseq
    %v764 = vshrl.u32 %v763, 7
    %v765 = vsub.s32 %v762, %v764
    %v766 = vrot.slane %v752, %v765
    %v767 = vcombine.high %v759, %v759
    %v768 = vcombine.high %v766, %v766
    %v769 = vcombine.high %v749, %v749
    %v771 = vunpack.c.l.s4 1983009808
    %v772 = vunpack.c.0.s8 %v771
    %v773 = vlaneseq
    %v774 = vshrl.u32 %v773, 7
    %v775 = vsub.s32 %v772, %v774
    %v776 = vrot.slane %v749, %v775
    %v778 = vunpack.c.l.s4 1983009808
    %v779 = vunpack.c.0.s8 %v778
    %v780 = vlaneseq
    %v781 = vshrl.u32 %v780, 7
    %v782 = vsub.s32 %v779, %v781
    %v783 = vrot.slane %v769, %v782
    %v784 = vcombine.high %v776, %v776
    %v785 = vcombine.high %v783, %v783
    %794 = vmatprep.subr.mxu0 %v55
    %795 = vmatpush1.msra.mxu0 %v54
    %796 = vmatprep.subr.mxu0 %v63
    %797 = vmatpush1.msra.mxu0 %v62
    %798 = vmatprep.subr.mxu0 %v71
    %799 = vmatpush1.msra.mxu0 %v70
    %800 = vmatprep.subr.mxu0 %v79
    %801 = vmatpush1.msra.mxu0 %v78
    %802 = vmatprep.subr.mxu0 %v87
    %803 = vmatpush1.msra.mxu0 %v86
    %804 = vmatprep.subr.mxu0 %v95
    %805 = vmatpush1.msra.mxu0 %v94
    %806 = vmatprep.subr.mxu0 %v103
    %807 = vmatpush1.msra.mxu0 %v102
    %808 = vmatprep.subr.mxu0 %v111
    %809 = vmatpush1.msra.mxu0 %v110
    %810 = vmatprep.subr.mxu0 %v119
    %811 = vmatpush1.msra.mxu0 %v118
    %812 = vmatprep.subr.mxu0 %v127
    %813 = vmatpush1.msra.mxu0 %v126
    %814 = vmatprep.subr.mxu0 %v135
    %815 = vmatpush1.msra.mxu0 %v134
    %816 = vmatprep.subr.mxu0 %v143
    %817 = vmatpush1.msra.mxu0 %v142
    %818 = vmatprep.subr.mxu0 %v151
    %819 = vmatpush1.msra.mxu0 %v150
    %820 = vmatprep.subr.mxu0 %v159
    %821 = vmatpush1.msra.mxu0 %v158
    %822 = vmatprep.subr.mxu0 %v167
    %823 = vmatpush1.msra.mxu0 %v166
    %824 = vmatprep.subr.mxu0 %v175
    %825 = vmatpush1.msra.mxu0 %v174
    %826 = vmatprep.subr.mxu0 %v183
    %827 = vmatpush1.msra.mxu0 %v182
    %828 = vmatprep.subr.mxu0 %v191
    %829 = vmatpush1.msra.mxu0 %v190
    %830 = vmatprep.subr.mxu0 %v199
    %831 = vmatpush1.msra.mxu0 %v198
    %832 = vmatprep.subr.mxu0 %v207
    %833 = vmatpush1.msra.mxu0 %v206
    %834 = vmatprep.subr.mxu0 %v215
    %835 = vmatpush1.msra.mxu0 %v214
    %836 = vmatprep.subr.mxu0 %v223
    %837 = vmatpush1.msra.mxu0 %v222
    %838 = vmatprep.subr.mxu0 %v231
    %839 = vmatpush1.msra.mxu0 %v230
    %840 = vmatprep.subr.mxu0 %v239
    %841 = vmatpush1.msra.mxu0 %v238
    %842 = vmatprep.subr.mxu0 %v247
    %843 = vmatpush1.msra.mxu0 %v246
    %844 = vmatprep.subr.mxu0 %v255
    %845 = vmatpush1.msra.mxu0 %v254
    %846 = vmatprep.subr.mxu0 %v263
    %847 = vmatpush1.msra.mxu0 %v262
    %848 = vmatprep.subr.mxu0 %v271
    %849 = vmatpush1.msra.mxu0 %v270
    %850 = vmatprep.subr.mxu0 %v279
    %851 = vmatpush1.msra.mxu0 %v278
    %852 = vmatprep.subr.mxu0 %v287
    %853 = vmatpush1.msra.mxu0 %v286
    %854 = vmatprep.subr.mxu0 %v295
    %855 = vmatpush1.msra.mxu0 %v294
    %856 = vmatprep.subr.mxu0 %v303
    %857 = vmatpush1.msra.mxu0 %v302
    %858 = vmatprep.mubr.f32.mxu0 %v745
    %859 = vmatmul.mubr.f32.gmra.mrb[0].mxu0 %v744
    %v860 = vpop.f32.mrb[0].mxu0
    %v861 = vadd.f32 %v759, %v860
    %v862 = vpop.f32.mrb[0].mxu0
    %v863 = vadd.f32 %v767, %v862
    %864 = vdwg.mxu0
    %865 = vmatprep.subr.mxu0 %v57
    %866 = vmatpush1.msra.mxu0 %v56
    %867 = vmatprep.subr.mxu0 %v65
    %868 = vmatpush1.msra.mxu0 %v64
    %869 = vmatprep.subr.mxu0 %v73
    %870 = vmatpush1.msra.mxu0 %v72
    %871 = vmatprep.subr.mxu0 %v81
    %872 = vmatpush1.msra.mxu0 %v80
    %873 = vmatprep.subr.mxu0 %v89
    %874 = vmatpush1.msra.mxu0 %v88
    %875 = vmatprep.subr.mxu0 %v97
    %876 = vmatpush1.msra.mxu0 %v96
    %877 = vmatprep.subr.mxu0 %v105
    %878 = vmatpush1.msra.mxu0 %v104
    %879 = vmatprep.subr.mxu0 %v113
    %880 = vmatpush1.msra.mxu0 %v112
    %881 = vmatprep.subr.mxu0 %v121
    %882 = vmatpush1.msra.mxu0 %v120
    %883 = vmatprep.subr.mxu0 %v129
    %884 = vmatpush1.msra.mxu0 %v128
    %885 = vmatprep.subr.mxu0 %v137
    %886 = vmatpush1.msra.mxu0 %v136
    %887 = vmatprep.subr.mxu0 %v145
    %888 = vmatpush1.msra.mxu0 %v144
    %889 = vmatprep.subr.mxu0 %v153
    %890 = vmatpush1.msra.mxu0 %v152
    %891 = vmatprep.subr.mxu0 %v161
    %892 = vmatpush1.msra.mxu0 %v160
    %893 = vmatprep.subr.mxu0 %v169
    %894 = vmatpush1.msra.mxu0 %v168
    %895 = vmatprep.subr.mxu0 %v177
    %896 = vmatpush1.msra.mxu0 %v176
    %897 = vmatprep.subr.mxu0 %v185
    %898 = vmatpush1.msra.mxu0 %v184
    %899 = vmatprep.subr.mxu0 %v193
    %900 = vmatpush1.msra.mxu0 %v192
    %901 = vmatprep.subr.mxu0 %v201
    %902 = vmatpush1.msra.mxu0 %v200
    %903 = vmatprep.subr.mxu0 %v209
    %904 = vmatpush1.msra.mxu0 %v208
    %905 = vmatprep.subr.mxu0 %v217
    %906 = vmatpush1.msra.mxu0 %v216
    %907 = vmatprep.subr.mxu0 %v225
    %908 = vmatpush1.msra.mxu0 %v224
    %909 = vmatprep.subr.mxu0 %v233
    %910 = vmatpush1.msra.mxu0 %v232
    %911 = vmatprep.subr.mxu0 %v241
    %912 = vmatpush1.msra.mxu0 %v240
    %913 = vmatprep.subr.mxu0 %v249
    %914 = vmatpush1.msra.mxu0 %v248
    %915 = vmatprep.subr.mxu0 %v257
    %916 = vmatpush1.msra.mxu0 %v256
    %917 = vmatprep.subr.mxu0 %v265
    %918 = vmatpush1.msra.mxu0 %v264
    %919 = vmatprep.subr.mxu0 %v273
    %920 = vmatpush1.msra.mxu0 %v272
    %921 = vmatprep.subr.mxu0 %v281
    %922 = vmatpush1.msra.mxu0 %v280
    %923 = vmatprep.subr.mxu0 %v289
    %924 = vmatpush1.msra.mxu0 %v288
    %925 = vmatprep.subr.mxu0 %v297
    %926 = vmatpush1.msra.mxu0 %v296
    %927 = vmatprep.subr.mxu0 %v305
    %928 = vmatpush1.msra.mxu0 %v304
    %929 = vmatprep.mubr.f32.mxu0 %v745
    %930 = vmatmul.mubr.f32.gmra.mrb[0].mxu0 %v744
    %v931 = vpop.f32.mrb[0].mxu0
    %v932 = vadd.f32 %v766, %v931
    %v933 = vpop.f32.mrb[0].mxu0
    %v934 = vadd.f32 %v768, %v933
    %935 = vdwg.mxu0
    %936 = vmatprep.subr.mxu0 %v59
    %937 = vmatpush1.msra.mxu0 %v58
    %938 = vmatprep.subr.mxu0 %v67
    %939 = vmatpush1.msra.mxu0 %v66
    %940 = vmatprep.subr.mxu0 %v75
    %941 = vmatpush1.msra.mxu0 %v74
    %942 = vmatprep.subr.mxu0 %v83
    %943 = vmatpush1.msra.mxu0 %v82
    %944 = vmatprep.subr.mxu0 %v91
    %945 = vmatpush1.msra.mxu0 %v90
    %946 = vmatprep.subr.mxu0 %v99
    %947 = vmatpush1.msra.mxu0 %v98
    %948 = vmatprep.subr.mxu0 %v107
    %949 = vmatpush1.msra.mxu0 %v106
    %950 = vmatprep.subr.mxu0 %v115
    %951 = vmatpush1.msra.mxu0 %v114
    %952 = vmatprep.subr.mxu0 %v123
    %953 = vmatpush1.msra.mxu0 %v122
    %954 = vmatprep.subr.mxu0 %v131
    %955 = vmatpush1.msra.mxu0 %v130
    %956 = vmatprep.subr.mxu0 %v139
    %957 = vmatpush1.msra.mxu0 %v138
    %958 = vmatprep.subr.mxu0 %v147
    %959 = vmatpush1.msra.mxu0 %v146
    %960 = vmatprep.subr.mxu0 %v155
    %961 = vmatpush1.msra.mxu0 %v154
    %962 = vmatprep.subr.mxu0 %v163
    %963 = vmatpush1.msra.mxu0 %v162
    %964 = vmatprep.subr.mxu0 %v171
    %965 = vmatpush1.msra.mxu0 %v170
    %966 = vmatprep.subr.mxu0 %v179
    %967 = vmatpush1.msra.mxu0 %v178
    %968 = vmatprep.subr.mxu0 %v187
    %969 = vmatpush1.msra.mxu0 %v186
    %970 = vmatprep.subr.mxu0 %v195
    %971 = vmatpush1.msra.mxu0 %v194
    %972 = vmatprep.subr.mxu0 %v203
    %973 = vmatpush1.msra.mxu0 %v202
    %974 = vmatprep.subr.mxu0 %v211
    %975 = vmatpush1.msra.mxu0 %v210
    %976 = vmatprep.subr.mxu0 %v219
    %977 = vmatpush1.msra.mxu0 %v218
    %978 = vmatprep.subr.mxu0 %v227
    %979 = vmatpush1.msra.mxu0 %v226
    %980 = vmatprep.subr.mxu0 %v235
    %981 = vmatpush1.msra.mxu0 %v234
    %982 = vmatprep.subr.mxu0 %v243
    %983 = vmatpush1.msra.mxu0 %v242
    %984 = vmatprep.subr.mxu0 %v251
    %985 = vmatpush1.msra.mxu0 %v250
    %986 = vmatprep.subr.mxu0 %v259
    %987 = vmatpush1.msra.mxu0 %v258
    %988 = vmatprep.subr.mxu0 %v267
    %989 = vmatpush1.msra.mxu0 %v266
    %990 = vmatprep.subr.mxu0 %v275
    %991 = vmatpush1.msra.mxu0 %v274
    %992 = vmatprep.subr.mxu0 %v283
    %993 = vmatpush1.msra.mxu0 %v282
    %994 = vmatprep.subr.mxu0 %v291
    %995 = vmatpush1.msra.mxu0 %v290
    %996 = vmatprep.subr.mxu0 %v299
    %997 = vmatpush1.msra.mxu0 %v298
    %998 = vmatprep.subr.mxu0 %v307
    %999 = vmatpush1.msra.mxu0 %v306
    %1000 = vmatprep.mubr.f32.mxu0 %v745
    %1001 = vmatmul.mubr.f32.gmra.mrb[0].mxu0 %v744
    %v1002 = vpop.f32.mrb[0].mxu0
    %v1003 = vadd.f32 %v776, %v1002
    %v1004 = vpop.f32.mrb[0].mxu0
    %v1005 = vadd.f32 %v784, %v1004
    %1006 = vdwg.mxu0
    %1007 = vmatprep.subr.mxu0 %v61
    %1008 = vmatpush1.msra.mxu0 %v60
    %1009 = vmatprep.subr.mxu0 %v69
    %1010 = vmatpush1.msra.mxu0 %v68
    %1011 = vmatprep.subr.mxu0 %v77
    %1012 = vmatpush1.msra.mxu0 %v76
    %1013 = vmatprep.subr.mxu0 %v85
    %1014 = vmatpush1.msra.mxu0 %v84
    %1015 = vmatprep.subr.mxu0 %v93
    %1016 = vmatpush1.msra.mxu0 %v92
    %1017 = vmatprep.subr.mxu0 %v101
    %1018 = vmatpush1.msra.mxu0 %v100
    %1019 = vmatprep.subr.mxu0 %v109
    %1020 = vmatpush1.msra.mxu0 %v108
    %1021 = vmatprep.subr.mxu0 %v117
    %1022 = vmatpush1.msra.mxu0 %v116
    %1023 = vmatprep.subr.mxu0 %v125
    %1024 = vmatpush1.msra.mxu0 %v124
    %1025 = vmatprep.subr.mxu0 %v133
    %1026 = vmatpush1.msra.mxu0 %v132
    %1027 = vmatprep.subr.mxu0 %v141
    %1028 = vmatpush1.msra.mxu0 %v140
    %1029 = vmatprep.subr.mxu0 %v149
    %1030 = vmatpush1.msra.mxu0 %v148
    %1031 = vmatprep.subr.mxu0 %v157
    %1032 = vmatpush1.msra.mxu0 %v156
    %1033 = vmatprep.subr.mxu0 %v165
    %1034 = vmatpush1.msra.mxu0 %v164
    %1035 = vmatprep.subr.mxu0 %v173
    %1036 = vmatpush1.msra.mxu0 %v172
    %1037 = vmatprep.subr.mxu0 %v181
    %1038 = vmatpush1.msra.mxu0 %v180
    %1039 = vmatprep.subr.mxu0 %v189
    %1040 = vmatpush1.msra.mxu0 %v188
    %1041 = vmatprep.subr.mxu0 %v197
    %1042 = vmatpush1.msra.mxu0 %v196
    %1043 = vmatprep.subr.mxu0 %v205
    %1044 = vmatpush1.msra.mxu0 %v204
    %1045 = vmatprep.subr.mxu0 %v213
    %1046 = vmatpush1.msra.mxu0 %v212
    %1047 = vmatprep.subr.mxu0 %v221
    %1048 = vmatpush1.msra.mxu0 %v220
    %1049 = vmatprep.subr.mxu0 %v229
    %1050 = vmatpush1.msra.mxu0 %v228
    %1051 = vmatprep.subr.mxu0 %v237
    %1052 = vmatpush1.msra.mxu0 %v236
    %1053 = vmatprep.subr.mxu0 %v245
    %1054 = vmatpush1.msra.mxu0 %v244
    %1055 = vmatprep.subr.mxu0 %v253
    %1056 = vmatpush1.msra.mxu0 %v252
    %1057 = vmatprep.subr.mxu0 %v261
    %1058 = vmatpush1.msra.mxu0 %v260
    %1059 = vmatprep.subr.mxu0 %v269
    %1060 = vmatpush1.msra.mxu0 %v268
    %1061 = vmatprep.subr.mxu0 %v277
    %1062 = vmatpush1.msra.mxu0 %v276
    %1063 = vmatprep.subr.mxu0 %v285
    %1064 = vmatpush1.msra.mxu0 %v284
    %1065 = vmatprep.subr.mxu0 %v293
    %1066 = vmatpush1.msra.mxu0 %v292
    %1067 = vmatprep.subr.mxu0 %v301
    %1068 = vmatpush1.msra.mxu0 %v300
    %1069 = vmatprep.subr.mxu0 %v309
    %1070 = vmatpush1.msra.mxu0 %v308
    %1071 = vmatprep.mubr.f32.mxu0 %v745
    %1072 = vmatmul.mubr.f32.gmra.mrb[0].mxu0 %v744
    %v1073 = vpop.f32.mrb[0].mxu0
    %v1074 = vadd.f32 %v783, %v1073
    %v1075 = vpop.f32.mrb[0].mxu0
    %v1076 = vadd.f32 %v785, %v1075
    %1077 = vdwg.mxu0
    %v1078 = vld [vmem:[%s1 + $0x10] sm:$0xff]
    %v1079 = vld [vmem:[%s1 + $0x18] sm:$0xff]
    %v1082 = vcombine.high %v1078, %v1078
    %v1084 = vunpack.c.l.s4 1983009808
    %v1085 = vunpack.c.0.s8 %v1084
    %v1086 = vlaneseq
    %v1087 = vshrl.u32 %v1086, 7
    %v1088 = vsub.s32 %v1085, %v1087
    %v1089 = vrot.slane %v1078, %v1088
    %v1091 = vunpack.c.l.s4 1983009808
    %v1092 = vunpack.c.0.s8 %v1091
    %v1093 = vlaneseq
    %v1094 = vshrl.u32 %v1093, 7
    %v1095 = vsub.s32 %v1092, %v1094
    %v1096 = vrot.slane %v1082, %v1095
    %v1097 = vcombine.high %v1089, %v1089
    %v1098 = vcombine.high %v1096, %v1096
    %v1099 = vcombine.high %v1079, %v1079
    %v1101 = vunpack.c.l.s4 1983009808
    %v1102 = vunpack.c.0.s8 %v1101
    %v1103 = vlaneseq
    %v1104 = vshrl.u32 %v1103, 7
    %v1105 = vsub.s32 %v1102, %v1104
    %v1106 = vrot.slane %v1079, %v1105
    %v1108 = vunpack.c.l.s4 1983009808
    %v1109 = vunpack.c.0.s8 %v1108
    %v1110 = vlaneseq
    %v1111 = vshrl.u32 %v1110, 7
    %v1112 = vsub.s32 %v1109, %v1111
    %v1113 = vrot.slane %v1099, %v1112
    %v1114 = vcombine.high %v1106, %v1106
    %v1115 = vcombine.high %v1113, %v1113
    %v1124 = vadd.f32 %v861, %v1089
    %v1125 = vadd.f32 %v863, %v1097
    %v1126 = vadd.f32 %v932, %v1096
    %v1127 = vadd.f32 %v934, %v1098
    %v1128 = vadd.f32 %v1003, %v1106
    %v1129 = vadd.f32 %v1005, %v1114
    %v1130 = vadd.f32 %v1074, %v1113
    %v1131 = vadd.f32 %v1076, %v1115
    %v1132 = vxor.u32 %v1124, 2147483648
    %v1133 = vxor.u32 %v1125, 2147483648
    %v1134 = vmul.f32 %v1132, 1.442695
    %v1135 = vpow.pop %v1134
    %v1136 = vmul.f32 %v1133, 1.442695
    %v1137 = vpow.pop %v1136
    %v1138 = vadd.f32 %v1135, 1.0
    %v1139 = vadd.f32 %v1137, 1.0
    %v1140 = vrcp.pop %v1138
    %v1141 = vmul.f32 1.0, %v1140
    %v1142 = vrcp.pop %v1139
    %v1143 = vmul.f32 1.0, %v1142
    %v1144 = vxor.u32 %v1126, 2147483648
    %v1145 = vxor.u32 %v1127, 2147483648
    %v1146 = vmul.f32 %v1144, 1.442695
    %v1147 = vpow.pop %v1146
    %v1148 = vmul.f32 %v1145, 1.442695
    %v1149 = vpow.pop %v1148
    %v1150 = vadd.f32 %v1147, 1.0
    %v1151 = vadd.f32 %v1149, 1.0
    %v1152 = vrcp.pop %v1150
    %v1153 = vmul.f32 1.0, %v1152
    %v1154 = vrcp.pop %v1151
    %v1155 = vmul.f32 1.0, %v1154
    %v1156 = vtanh.pop %v1128
    %v1157 = vtanh.pop %v1129
    %v1158 = vxor.u32 %v1130, 2147483648
    %v1159 = vxor.u32 %v1131, 2147483648
    %v1160 = vmul.f32 %v1158, 1.442695
    %v1161 = vpow.pop %v1160
    %v1162 = vmul.f32 %v1159, 1.442695
    %v1163 = vpow.pop %v1162
    %v1164 = vadd.f32 %v1161, 1.0
    %v1165 = vadd.f32 %v1163, 1.0
    %v1166 = vrcp.pop %v1164
    %v1167 = vmul.f32 1.0, %v1166
    %v1168 = vrcp.pop %v1165
    %v1169 = vmul.f32 1.0, %v1168
    %v1170 = vmul.f32 %v1153, %v746
    %v1171 = vmul.f32 %v1155, %v747
    %v1172 = vmul.f32 %v1141, %v1156
    %v1173 = vmul.f32 %v1143, %v1157
    %v1174 = vadd.f32 %v1170, %v1172
    %v1175 = vadd.f32 %v1171, %v1173
    %v1176 = vtanh.pop %v1174
    %v1177 = vtanh.pop %v1175
    %v1178 = vmul.f32 %v1167, %v1176
    %v1179 = vmul.f32 %v1169, %v1177
    %vm1180 = vcmp.gt.s32.totalorder %v52, 1
    %vm1181 = vcmp.gt.s32.totalorder %v53, 1
    %v1182 = vsel %vm1180, %v1178, %v744
    %v1183 = vsel %vm1181, %v1179, %v745
    %v1184 = vsel %vm1180, %v1174, %v746
    %v1185 = vsel %vm1181, %v1175, %v747
    %v1186 = vld [vmem:[%s0 + $0x20] sm:$0xff]
    %v1187 = vld [vmem:[%s0 + $0x28] sm:$0xff]
    %v1190 = vcombine.high %v1186, %v1186
    %v1192 = vunpack.c.l.s4 1983009808
    %v1193 = vunpack.c.0.s8 %v1192
    %v1194 = vlaneseq
    %v1195 = vshrl.u32 %v1194, 7
    %v1196 = vsub.s32 %v1193, %v1195
    %v1197 = vrot.slane %v1186, %v1196
    %v1199 = vunpack.c.l.s4 1983009808
    %v1200 = vunpack.c.0.s8 %v1199
    %v1201 = vlaneseq
    %v1202 = vshrl.u32 %v1201, 7
    %v1203 = vsub.s32 %v1200, %v1202
    %v1204 = vrot.slane %v1190, %v1203
    %v1205 = vcombine.high %v1197, %v1197
    %v1206 = vcombine.high %v1204, %v1204
    %v1207 = vcombine.high %v1187, %v1187
    %v1209 = vunpack.c.l.s4 1983009808
    %v1210 = vunpack.c.0.s8 %v1209
    %v1211 = vlaneseq
    %v1212 = vshrl.u32 %v1211, 7
    %v1213 = vsub.s32 %v1210, %v1212
    %v1214 = vrot.slane %v1187, %v1213
    %v1216 = vunpack.c.l.s4 1983009808
    %v1217 = vunpack.c.0.s8 %v1216
    %v1218 = vlaneseq
    %v1219 = vshrl.u32 %v1218, 7
    %v1220 = vsub.s32 %v1217, %v1219
    %v1221 = vrot.slane %v1207, %v1220
    %v1222 = vcombine.high %v1214, %v1214
    %v1223 = vcombine.high %v1221, %v1221
    %1232 = vmatprep.subr.mxu0 %v55
    %1233 = vmatpush1.msra.mxu0 %v54
    %1234 = vmatprep.subr.mxu0 %v63
    %1235 = vmatpush1.msra.mxu0 %v62
    %1236 = vmatprep.subr.mxu0 %v71
    %1237 = vmatpush1.msra.mxu0 %v70
    %1238 = vmatprep.subr.mxu0 %v79
    %1239 = vmatpush1.msra.mxu0 %v78
    %1240 = vmatprep.subr.mxu0 %v87
    %1241 = vmatpush1.msra.mxu0 %v86
    %1242 = vmatprep.subr.mxu0 %v95
    %1243 = vmatpush1.msra.mxu0 %v94
    %1244 = vmatprep.subr.mxu0 %v103
    %1245 = vmatpush1.msra.mxu0 %v102
    %1246 = vmatprep.subr.mxu0 %v111
    %1247 = vmatpush1.msra.mxu0 %v110
    %1248 = vmatprep.subr.mxu0 %v119
    %1249 = vmatpush1.msra.mxu0 %v118
    %1250 = vmatprep.subr.mxu0 %v127
    %1251 = vmatpush1.msra.mxu0 %v126
    %1252 = vmatprep.subr.mxu0 %v135
    %1253 = vmatpush1.msra.mxu0 %v134
    %1254 = vmatprep.subr.mxu0 %v143
    %1255 = vmatpush1.msra.mxu0 %v142
    %1256 = vmatprep.subr.mxu0 %v151
    %1257 = vmatpush1.msra.mxu0 %v150
    %1258 = vmatprep.subr.mxu0 %v159
    %1259 = vmatpush1.msra.mxu0 %v158
    %1260 = vmatprep.subr.mxu0 %v167
    %1261 = vmatpush1.msra.mxu0 %v166
    %1262 = vmatprep.subr.mxu0 %v175
    %1263 = vmatpush1.msra.mxu0 %v174
    %1264 = vmatprep.subr.mxu0 %v183
    %1265 = vmatpush1.msra.mxu0 %v182
    %1266 = vmatprep.subr.mxu0 %v191
    %1267 = vmatpush1.msra.mxu0 %v190
    %1268 = vmatprep.subr.mxu0 %v199
    %1269 = vmatpush1.msra.mxu0 %v198
    %1270 = vmatprep.subr.mxu0 %v207
    %1271 = vmatpush1.msra.mxu0 %v206
    %1272 = vmatprep.subr.mxu0 %v215
    %1273 = vmatpush1.msra.mxu0 %v214
    %1274 = vmatprep.subr.mxu0 %v223
    %1275 = vmatpush1.msra.mxu0 %v222
    %1276 = vmatprep.subr.mxu0 %v231
    %1277 = vmatpush1.msra.mxu0 %v230
    %1278 = vmatprep.subr.mxu0 %v239
    %1279 = vmatpush1.msra.mxu0 %v238
    %1280 = vmatprep.subr.mxu0 %v247
    %1281 = vmatpush1.msra.mxu0 %v246
    %1282 = vmatprep.subr.mxu0 %v255
    %1283 = vmatpush1.msra.mxu0 %v254
    %1284 = vmatprep.subr.mxu0 %v263
    %1285 = vmatpush1.msra.mxu0 %v262
    %1286 = vmatprep.subr.mxu0 %v271
    %1287 = vmatpush1.msra.mxu0 %v270
    %1288 = vmatprep.subr.mxu0 %v279
    %1289 = vmatpush1.msra.mxu0 %v278
    %1290 = vmatprep.subr.mxu0 %v287
    %1291 = vmatpush1.msra.mxu0 %v286
    %1292 = vmatprep.subr.mxu0 %v295
    %1293 = vmatpush1.msra.mxu0 %v294
    %1294 = vmatprep.subr.mxu0 %v303
    %1295 = vmatpush1.msra.mxu0 %v302
    %1296 = vmatprep.mubr.f32.mxu0 %v1183
    %1297 = vmatmul.mubr.f32.gmra.mrb[0].mxu0 %v1182
    %v1298 = vpop.f32.mrb[0].mxu0
    %v1299 = vadd.f32 %v1197, %v1298
    %v1300 = vpop.f32.mrb[0].mxu0
    %v1301 = vadd.f32 %v1205, %v1300
    %1302 = vdwg.mxu0
    %1303 = vmatprep.subr.mxu0 %v57
    %1304 = vmatpush1.msra.mxu0 %v56
    %1305 = vmatprep.subr.mxu0 %v65
    %1306 = vmatpush1.msra.mxu0 %v64
    %1307 = vmatprep.subr.mxu0 %v73
    %1308 = vmatpush1.msra.mxu0 %v72
    %1309 = vmatprep.subr.mxu0 %v81
    %1310 = vmatpush1.msra.mxu0 %v80
    %1311 = vmatprep.subr.mxu0 %v89
    %1312 = vmatpush1.msra.mxu0 %v88
    %1313 = vmatprep.subr.mxu0 %v97
    %1314 = vmatpush1.msra.mxu0 %v96
    %1315 = vmatprep.subr.mxu0 %v105
    %1316 = vmatpush1.msra.mxu0 %v104
    %1317 = vmatprep.subr.mxu0 %v113
    %1318 = vmatpush1.msra.mxu0 %v112
    %1319 = vmatprep.subr.mxu0 %v121
    %1320 = vmatpush1.msra.mxu0 %v120
    %1321 = vmatprep.subr.mxu0 %v129
    %1322 = vmatpush1.msra.mxu0 %v128
    %1323 = vmatprep.subr.mxu0 %v137
    %1324 = vmatpush1.msra.mxu0 %v136
    %1325 = vmatprep.subr.mxu0 %v145
    %1326 = vmatpush1.msra.mxu0 %v144
    %1327 = vmatprep.subr.mxu0 %v153
    %1328 = vmatpush1.msra.mxu0 %v152
    %1329 = vmatprep.subr.mxu0 %v161
    %1330 = vmatpush1.msra.mxu0 %v160
    %1331 = vmatprep.subr.mxu0 %v169
    %1332 = vmatpush1.msra.mxu0 %v168
    %1333 = vmatprep.subr.mxu0 %v177
    %1334 = vmatpush1.msra.mxu0 %v176
    %1335 = vmatprep.subr.mxu0 %v185
    %1336 = vmatpush1.msra.mxu0 %v184
    %1337 = vmatprep.subr.mxu0 %v193
    %1338 = vmatpush1.msra.mxu0 %v192
    %1339 = vmatprep.subr.mxu0 %v201
    %1340 = vmatpush1.msra.mxu0 %v200
    %1341 = vmatprep.subr.mxu0 %v209
    %1342 = vmatpush1.msra.mxu0 %v208
    %1343 = vmatprep.subr.mxu0 %v217
    %1344 = vmatpush1.msra.mxu0 %v216
    %1345 = vmatprep.subr.mxu0 %v225
    %1346 = vmatpush1.msra.mxu0 %v224
    %1347 = vmatprep.subr.mxu0 %v233
    %1348 = vmatpush1.msra.mxu0 %v232
    %1349 = vmatprep.subr.mxu0 %v241
    %1350 = vmatpush1.msra.mxu0 %v240
    %1351 = vmatprep.subr.mxu0 %v249
    %1352 = vmatpush1.msra.mxu0 %v248
    %1353 = vmatprep.subr.mxu0 %v257
    %1354 = vmatpush1.msra.mxu0 %v256
    %1355 = vmatprep.subr.mxu0 %v265
    %1356 = vmatpush1.msra.mxu0 %v264
    %1357 = vmatprep.subr.mxu0 %v273
    %1358 = vmatpush1.msra.mxu0 %v272
    %1359 = vmatprep.subr.mxu0 %v281
    %1360 = vmatpush1.msra.mxu0 %v280
    %1361 = vmatprep.subr.mxu0 %v289
    %1362 = vmatpush1.msra.mxu0 %v288
    %1363 = vmatprep.subr.mxu0 %v297
    %1364 = vmatpush1.msra.mxu0 %v296
    %1365 = vmatprep.subr.mxu0 %v305
    %1366 = vmatpush1.msra.mxu0 %v304
    %1367 = vmatprep.mubr.f32.mxu0 %v1183
    %1368 = vmatmul.mubr.f32.gmra.mrb[0].mxu0 %v1182
    %v1369 = vpop.f32.mrb[0].mxu0
    %v1370 = vadd.f32 %v1204, %v1369
    %v1371 = vpop.f32.mrb[0].mxu0
    %v1372 = vadd.f32 %v1206, %v1371
    %1373 = vdwg.mxu0
    %1374 = vmatprep.subr.mxu0 %v59
    %1375 = vmatpush1.msra.mxu0 %v58
    %1376 = vmatprep.subr.mxu0 %v67
    %1377 = vmatpush1.msra.mxu0 %v66
    %1378 = vmatprep.subr.mxu0 %v75
    %1379 = vmatpush1.msra.mxu0 %v74
    %1380 = vmatprep.subr.mxu0 %v83
    %1381 = vmatpush1.msra.mxu0 %v82
    %1382 = vmatprep.subr.mxu0 %v91
    %1383 = vmatpush1.msra.mxu0 %v90
    %1384 = vmatprep.subr.mxu0 %v99
    %1385 = vmatpush1.msra.mxu0 %v98
    %1386 = vmatprep.subr.mxu0 %v107
    %1387 = vmatpush1.msra.mxu0 %v106
    %1388 = vmatprep.subr.mxu0 %v115
    %1389 = vmatpush1.msra.mxu0 %v114
    %1390 = vmatprep.subr.mxu0 %v123
    %1391 = vmatpush1.msra.mxu0 %v122
    %1392 = vmatprep.subr.mxu0 %v131
    %1393 = vmatpush1.msra.mxu0 %v130
    %1394 = vmatprep.subr.mxu0 %v139
    %1395 = vmatpush1.msra.mxu0 %v138
    %1396 = vmatprep.subr.mxu0 %v147
    %1397 = vmatpush1.msra.mxu0 %v146
    %1398 = vmatprep.subr.mxu0 %v155
    %1399 = vmatpush1.msra.mxu0 %v154
    %1400 = vmatprep.subr.mxu0 %v163
    %1401 = vmatpush1.msra.mxu0 %v162
    %1402 = vmatprep.subr.mxu0 %v171
    %1403 = vmatpush1.msra.mxu0 %v170
    %1404 = vmatprep.subr.mxu0 %v179
    %1405 = vmatpush1.msra.mxu0 %v178
    %1406 = vmatprep.subr.mxu0 %v187
    %1407 = vmatpush1.msra.mxu0 %v186
    %1408 = vmatprep.subr.mxu0 %v195
    %1409 = vmatpush1.msra.mxu0 %v194
    %1410 = vmatprep.subr.mxu0 %v203
    %1411 = vmatpush1.msra.mxu0 %v202
    %1412 = vmatprep.subr.mxu0 %v211
    %1413 = vmatpush1.msra.mxu0 %v210
    %1414 = vmatprep.subr.mxu0 %v219
    %1415 = vmatpush1.msra.mxu0 %v218
    %1416 = vmatprep.subr.mxu0 %v227
    %1417 = vmatpush1.msra.mxu0 %v226
    %1418 = vmatprep.subr.mxu0 %v235
    %1419 = vmatpush1.msra.mxu0 %v234
    %1420 = vmatprep.subr.mxu0 %v243
    %1421 = vmatpush1.msra.mxu0 %v242
    %1422 = vmatprep.subr.mxu0 %v251
    %1423 = vmatpush1.msra.mxu0 %v250
    %1424 = vmatprep.subr.mxu0 %v259
    %1425 = vmatpush1.msra.mxu0 %v258
    %1426 = vmatprep.subr.mxu0 %v267
    %1427 = vmatpush1.msra.mxu0 %v266
    %1428 = vmatprep.subr.mxu0 %v275
    %1429 = vmatpush1.msra.mxu0 %v274
    %1430 = vmatprep.subr.mxu0 %v283
    %1431 = vmatpush1.msra.mxu0 %v282
    %1432 = vmatprep.subr.mxu0 %v291
    %1433 = vmatpush1.msra.mxu0 %v290
    %1434 = vmatprep.subr.mxu0 %v299
    %1435 = vmatpush1.msra.mxu0 %v298
    %1436 = vmatprep.subr.mxu0 %v307
    %1437 = vmatpush1.msra.mxu0 %v306
    %1438 = vmatprep.mubr.f32.mxu0 %v1183
    %1439 = vmatmul.mubr.f32.gmra.mrb[0].mxu0 %v1182
    %v1440 = vpop.f32.mrb[0].mxu0
    %v1441 = vadd.f32 %v1214, %v1440
    %v1442 = vpop.f32.mrb[0].mxu0
    %v1443 = vadd.f32 %v1222, %v1442
    %1444 = vdwg.mxu0
    %1445 = vmatprep.subr.mxu0 %v61
    %1446 = vmatpush1.msra.mxu0 %v60
    %1447 = vmatprep.subr.mxu0 %v69
    %1448 = vmatpush1.msra.mxu0 %v68
    %1449 = vmatprep.subr.mxu0 %v77
    %1450 = vmatpush1.msra.mxu0 %v76
    %1451 = vmatprep.subr.mxu0 %v85
    %1452 = vmatpush1.msra.mxu0 %v84
    %1453 = vmatprep.subr.mxu0 %v93
    %1454 = vmatpush1.msra.mxu0 %v92
    %1455 = vmatprep.subr.mxu0 %v101
    %1456 = vmatpush1.msra.mxu0 %v100
    %1457 = vmatprep.subr.mxu0 %v109
    %1458 = vmatpush1.msra.mxu0 %v108
    %1459 = vmatprep.subr.mxu0 %v117
    %1460 = vmatpush1.msra.mxu0 %v116
    %1461 = vmatprep.subr.mxu0 %v125
    %1462 = vmatpush1.msra.mxu0 %v124
    %1463 = vmatprep.subr.mxu0 %v133
    %1464 = vmatpush1.msra.mxu0 %v132
    %1465 = vmatprep.subr.mxu0 %v141
    %1466 = vmatpush1.msra.mxu0 %v140
    %1467 = vmatprep.subr.mxu0 %v149
    %1468 = vmatpush1.msra.mxu0 %v148
    %1469 = vmatprep.subr.mxu0 %v157
    %1470 = vmatpush1.msra.mxu0 %v156
    %1471 = vmatprep.subr.mxu0 %v165
    %1472 = vmatpush1.msra.mxu0 %v164
    %1473 = vmatprep.subr.mxu0 %v173
    %1474 = vmatpush1.msra.mxu0 %v172
    %1475 = vmatprep.subr.mxu0 %v181
    %1476 = vmatpush1.msra.mxu0 %v180
    %1477 = vmatprep.subr.mxu0 %v189
    %1478 = vmatpush1.msra.mxu0 %v188
    %1479 = vmatprep.subr.mxu0 %v197
    %1480 = vmatpush1.msra.mxu0 %v196
    %1481 = vmatprep.subr.mxu0 %v205
    %1482 = vmatpush1.msra.mxu0 %v204
    %1483 = vmatprep.subr.mxu0 %v213
    %1484 = vmatpush1.msra.mxu0 %v212
    %1485 = vmatprep.subr.mxu0 %v221
    %1486 = vmatpush1.msra.mxu0 %v220
    %1487 = vmatprep.subr.mxu0 %v229
    %1488 = vmatpush1.msra.mxu0 %v228
    %1489 = vmatprep.subr.mxu0 %v237
    %1490 = vmatpush1.msra.mxu0 %v236
    %1491 = vmatprep.subr.mxu0 %v245
    %1492 = vmatpush1.msra.mxu0 %v244
    %1493 = vmatprep.subr.mxu0 %v253
    %1494 = vmatpush1.msra.mxu0 %v252
    %1495 = vmatprep.subr.mxu0 %v261
    %1496 = vmatpush1.msra.mxu0 %v260
    %1497 = vmatprep.subr.mxu0 %v269
    %1498 = vmatpush1.msra.mxu0 %v268
    %1499 = vmatprep.subr.mxu0 %v277
    %1500 = vmatpush1.msra.mxu0 %v276
    %1501 = vmatprep.subr.mxu0 %v285
    %1502 = vmatpush1.msra.mxu0 %v284
    %1503 = vmatprep.subr.mxu0 %v293
    %1504 = vmatpush1.msra.mxu0 %v292
    %1505 = vmatprep.subr.mxu0 %v301
    %1506 = vmatpush1.msra.mxu0 %v300
    %1507 = vmatprep.subr.mxu0 %v309
    %1508 = vmatpush1.msra.mxu0 %v308
    %1509 = vmatprep.mubr.f32.mxu0 %v1183
    %1510 = vmatmul.mubr.f32.gmra.mrb[0].mxu0 %v1182
    %v1511 = vpop.f32.mrb[0].mxu0
    %v1512 = vadd.f32 %v1221, %v1511
    %v1513 = vpop.f32.mrb[0].mxu0
    %v1514 = vadd.f32 %v1223, %v1513
    %1515 = vdwg.mxu0
    %v1516 = vld [vmem:[%s1 + $0x20] sm:$0xff]
    %v1517 = vld [vmem:[%s1 + $0x28] sm:$0xff]
    %v1520 = vcombine.high %v1516, %v1516
    %v1522 = vunpack.c.l.s4 1983009808
    %v1523 = vunpack.c.0.s8 %v1522
    %v1524 = vlaneseq
    %v1525 = vshrl.u32 %v1524, 7
    %v1526 = vsub.s32 %v1523, %v1525
    %v1527 = vrot.slane %v1516, %v1526
    %v1529 = vunpack.c.l.s4 1983009808
    %v1530 = vunpack.c.0.s8 %v1529
    %v1531 = vlaneseq
    %v1532 = vshrl.u32 %v1531, 7
    %v1533 = vsub.s32 %v1530, %v1532
    %v1534 = vrot.slane %v1520, %v1533
    %v1535 = vcombine.high %v1527, %v1527
    %v1536 = vcombine.high %v1534, %v1534
    %v1537 = vcombine.high %v1517, %v1517
    %v1539 = vunpack.c.l.s4 1983009808
    %v1540 = vunpack.c.0.s8 %v1539
    %v1541 = vlaneseq
    %v1542 = vshrl.u32 %v1541, 7
    %v1543 = vsub.s32 %v1540, %v1542
    %v1544 = vrot.slane %v1517, %v1543
    %v1546 = vunpack.c.l.s4 1983009808
    %v1547 = vunpack.c.0.s8 %v1546
    %v1548 = vlaneseq
    %v1549 = vshrl.u32 %v1548, 7
    %v1550 = vsub.s32 %v1547, %v1549
    %v1551 = vrot.slane %v1537, %v1550
    %v1552 = vcombine.high %v1544, %v1544
    %v1553 = vcombine.high %v1551, %v1551
    %v1562 = vadd.f32 %v1299, %v1527
    %v1563 = vadd.f32 %v1301, %v1535
    %v1564 = vadd.f32 %v1370, %v1534
    %v1565 = vadd.f32 %v1372, %v1536
    %v1566 = vadd.f32 %v1441, %v1544
    %v1567 = vadd.f32 %v1443, %v1552
    %v1568 = vadd.f32 %v1512, %v1551
    %v1569 = vadd.f32 %v1514, %v1553
    %v1570 = vxor.u32 %v1562, 2147483648
    %v1571 = vxor.u32 %v1563, 2147483648
    %v1572 = vmul.f32 %v1570, 1.442695
    %v1573 = vpow.pop %v1572
    %v1574 = vmul.f32 %v1571, 1.442695
    %v1575 = vpow.pop %v1574
    %v1576 = vadd.f32 %v1573, 1.0
    %v1577 = vadd.f32 %v1575, 1.0
    %v1578 = vrcp.pop %v1576
    %v1579 = vmul.f32 1.0, %v1578
    %v1580 = vrcp.pop %v1577
    %v1581 = vmul.f32 1.0, %v1580
    %v1582 = vxor.u32 %v1564, 2147483648
    %v1583 = vxor.u32 %v1565, 2147483648
    %v1584 = vmul.f32 %v1582, 1.442695
    %v1585 = vpow.pop %v1584
    %v1586 = vmul.f32 %v1583, 1.442695
    %v1587 = vpow.pop %v1586
    %v1588 = vadd.f32 %v1585, 1.0
    %v1589 = vadd.f32 %v1587, 1.0
    %v1590 = vrcp.pop %v1588
    %v1591 = vmul.f32 1.0, %v1590
    %v1592 = vrcp.pop %v1589
    %v1593 = vmul.f32 1.0, %v1592
    %v1594 = vtanh.pop %v1566
    %v1595 = vtanh.pop %v1567
    %v1596 = vxor.u32 %v1568, 2147483648
    %v1597 = vxor.u32 %v1569, 2147483648
    %v1598 = vmul.f32 %v1596, 1.442695
    %v1599 = vpow.pop %v1598
    %v1600 = vmul.f32 %v1597, 1.442695
    %v1601 = vpow.pop %v1600
    %v1602 = vadd.f32 %v1599, 1.0
    %v1603 = vadd.f32 %v1601, 1.0
    %v1604 = vrcp.pop %v1602
    %v1605 = vmul.f32 1.0, %v1604
    %v1606 = vrcp.pop %v1603
    %v1607 = vmul.f32 1.0, %v1606
    %v1608 = vmul.f32 %v1591, %v1184
    %v1609 = vmul.f32 %v1593, %v1185
    %v1610 = vmul.f32 %v1579, %v1594
    %v1611 = vmul.f32 %v1581, %v1595
    %v1612 = vadd.f32 %v1608, %v1610
    %v1613 = vadd.f32 %v1609, %v1611
    %v1614 = vtanh.pop %v1612
    %v1615 = vtanh.pop %v1613
    %v1616 = vmul.f32 %v1605, %v1614
    %v1617 = vmul.f32 %v1607, %v1615
    %vm1618 = vcmp.gt.s32.totalorder %v52, 2
    %vm1619 = vcmp.gt.s32.totalorder %v53, 2
    %v1620 = vsel %vm1618, %v1616, %v1182
    %v1621 = vsel %vm1619, %v1617, %v1183
    %v1622 = vsel %vm1618, %v1612, %v1184
    %v1623 = vsel %vm1619, %v1613, %v1185
    %v1624 = vld [vmem:[%s0 + $0x30] sm:$0xff]
    %v1625 = vld [vmem:[%s0 + $0x38] sm:$0xff]
    %v1628 = vcombine.high %v1624, %v1624
    %v1630 = vunpack.c.l.s4 1983009808
    %v1631 = vunpack.c.0.s8 %v1630
    %v1632 = vlaneseq
    %v1633 = vshrl.u32 %v1632, 7
    %v1634 = vsub.s32 %v1631, %v1633
    %v1635 = vrot.slane %v1624, %v1634
    %v1637 = vunpack.c.l.s4 1983009808
    %v1638 = vunpack.c.0.s8 %v1637
    %v1639 = vlaneseq
    %v1640 = vshrl.u32 %v1639, 7
    %v1641 = vsub.s32 %v1638, %v1640
    %v1642 = vrot.slane %v1628, %v1641
    %v1643 = vcombine.high %v1635, %v1635
    %v1644 = vcombine.high %v1642, %v1642
    %v1645 = vcombine.high %v1625, %v1625
    %v1647 = vunpack.c.l.s4 1983009808
    %v1648 = vunpack.c.0.s8 %v1647
    %v1649 = vlaneseq
    %v1650 = vshrl.u32 %v1649, 7
    %v1651 = vsub.s32 %v1648, %v1650
    %v1652 = vrot.slane %v1625, %v1651
    %v1654 = vunpack.c.l.s4 1983009808
    %v1655 = vunpack.c.0.s8 %v1654
    %v1656 = vlaneseq
    %v1657 = vshrl.u32 %v1656, 7
    %v1658 = vsub.s32 %v1655, %v1657
    %v1659 = vrot.slane %v1645, %v1658
    %v1660 = vcombine.high %v1652, %v1652
    %v1661 = vcombine.high %v1659, %v1659
    %1670 = vmatprep.subr.mxu0 %v55
    %1671 = vmatpush1.msra.mxu0 %v54
    %1672 = vmatprep.subr.mxu0 %v63
    %1673 = vmatpush1.msra.mxu0 %v62
    %1674 = vmatprep.subr.mxu0 %v71
    %1675 = vmatpush1.msra.mxu0 %v70
    %1676 = vmatprep.subr.mxu0 %v79
    %1677 = vmatpush1.msra.mxu0 %v78
    %1678 = vmatprep.subr.mxu0 %v87
    %1679 = vmatpush1.msra.mxu0 %v86
    %1680 = vmatprep.subr.mxu0 %v95
    %1681 = vmatpush1.msra.mxu0 %v94
    %1682 = vmatprep.subr.mxu0 %v103
    %1683 = vmatpush1.msra.mxu0 %v102
    %1684 = vmatprep.subr.mxu0 %v111
    %1685 = vmatpush1.msra.mxu0 %v110
    %1686 = vmatprep.subr.mxu0 %v119
    %1687 = vmatpush1.msra.mxu0 %v118
    %1688 = vmatprep.subr.mxu0 %v127
    %1689 = vmatpush1.msra.mxu0 %v126
    %1690 = vmatprep.subr.mxu0 %v135
    %1691 = vmatpush1.msra.mxu0 %v134
    %1692 = vmatprep.subr.mxu0 %v143
    %1693 = vmatpush1.msra.mxu0 %v142
    %1694 = vmatprep.subr.mxu0 %v151
    %1695 = vmatpush1.msra.mxu0 %v150
    %1696 = vmatprep.subr.mxu0 %v159
    %1697 = vmatpush1.msra.mxu0 %v158
    %1698 = vmatprep.subr.mxu0 %v167
    %1699 = vmatpush1.msra.mxu0 %v166
    %1700 = vmatprep.subr.mxu0 %v175
    %1701 = vmatpush1.msra.mxu0 %v174
    %1702 = vmatprep.subr.mxu0 %v183
    %1703 = vmatpush1.msra.mxu0 %v182
    %1704 = vmatprep.subr.mxu0 %v191
    %1705 = vmatpush1.msra.mxu0 %v190
    %1706 = vmatprep.subr.mxu0 %v199
    %1707 = vmatpush1.msra.mxu0 %v198
    %1708 = vmatprep.subr.mxu0 %v207
    %1709 = vmatpush1.msra.mxu0 %v206
    %1710 = vmatprep.subr.mxu0 %v215
    %1711 = vmatpush1.msra.mxu0 %v214
    %1712 = vmatprep.subr.mxu0 %v223
    %1713 = vmatpush1.msra.mxu0 %v222
    %1714 = vmatprep.subr.mxu0 %v231
    %1715 = vmatpush1.msra.mxu0 %v230
    %1716 = vmatprep.subr.mxu0 %v239
    %1717 = vmatpush1.msra.mxu0 %v238
    %1718 = vmatprep.subr.mxu0 %v247
    %1719 = vmatpush1.msra.mxu0 %v246
    %1720 = vmatprep.subr.mxu0 %v255
    %1721 = vmatpush1.msra.mxu0 %v254
    %1722 = vmatprep.subr.mxu0 %v263
    %1723 = vmatpush1.msra.mxu0 %v262
    %1724 = vmatprep.subr.mxu0 %v271
    %1725 = vmatpush1.msra.mxu0 %v270
    %1726 = vmatprep.subr.mxu0 %v279
    %1727 = vmatpush1.msra.mxu0 %v278
    %1728 = vmatprep.subr.mxu0 %v287
    %1729 = vmatpush1.msra.mxu0 %v286
    %1730 = vmatprep.subr.mxu0 %v295
    %1731 = vmatpush1.msra.mxu0 %v294
    %1732 = vmatprep.subr.mxu0 %v303
    %1733 = vmatpush1.msra.mxu0 %v302
    %1734 = vmatprep.mubr.f32.mxu0 %v1621
    %1735 = vmatmul.mubr.f32.gmra.mrb[0].mxu0 %v1620
    %v1736 = vpop.f32.mrb[0].mxu0
    %v1737 = vadd.f32 %v1635, %v1736
    %v1738 = vpop.f32.mrb[0].mxu0
    %v1739 = vadd.f32 %v1643, %v1738
    %1740 = vdwg.mxu0
    %1741 = vmatprep.subr.mxu0 %v57
    %1742 = vmatpush1.msra.mxu0 %v56
    %1743 = vmatprep.subr.mxu0 %v65
    %1744 = vmatpush1.msra.mxu0 %v64
    %1745 = vmatprep.subr.mxu0 %v73
    %1746 = vmatpush1.msra.mxu0 %v72
    %1747 = vmatprep.subr.mxu0 %v81
    %1748 = vmatpush1.msra.mxu0 %v80
    %1749 = vmatprep.subr.mxu0 %v89
    %1750 = vmatpush1.msra.mxu0 %v88
    %1751 = vmatprep.subr.mxu0 %v97
    %1752 = vmatpush1.msra.mxu0 %v96
    %1753 = vmatprep.subr.mxu0 %v105
    %1754 = vmatpush1.msra.mxu0 %v104
    %1755 = vmatprep.subr.mxu0 %v113
    %1756 = vmatpush1.msra.mxu0 %v112
    %1757 = vmatprep.subr.mxu0 %v121
    %1758 = vmatpush1.msra.mxu0 %v120
    %1759 = vmatprep.subr.mxu0 %v129
    %1760 = vmatpush1.msra.mxu0 %v128
    %1761 = vmatprep.subr.mxu0 %v137
    %1762 = vmatpush1.msra.mxu0 %v136
    %1763 = vmatprep.subr.mxu0 %v145
    %1764 = vmatpush1.msra.mxu0 %v144
    %1765 = vmatprep.subr.mxu0 %v153
    %1766 = vmatpush1.msra.mxu0 %v152
    %1767 = vmatprep.subr.mxu0 %v161
    %1768 = vmatpush1.msra.mxu0 %v160
    %1769 = vmatprep.subr.mxu0 %v169
    %1770 = vmatpush1.msra.mxu0 %v168
    %1771 = vmatprep.subr.mxu0 %v177
    %1772 = vmatpush1.msra.mxu0 %v176
    %1773 = vmatprep.subr.mxu0 %v185
    %1774 = vmatpush1.msra.mxu0 %v184
    %1775 = vmatprep.subr.mxu0 %v193
    %1776 = vmatpush1.msra.mxu0 %v192
    %1777 = vmatprep.subr.mxu0 %v201
    %1778 = vmatpush1.msra.mxu0 %v200
    %1779 = vmatprep.subr.mxu0 %v209
    %1780 = vmatpush1.msra.mxu0 %v208
    %1781 = vmatprep.subr.mxu0 %v217
    %1782 = vmatpush1.msra.mxu0 %v216
    %1783 = vmatprep.subr.mxu0 %v225
    %1784 = vmatpush1.msra.mxu0 %v224
    %1785 = vmatprep.subr.mxu0 %v233
    %1786 = vmatpush1.msra.mxu0 %v232
    %1787 = vmatprep.subr.mxu0 %v241
    %1788 = vmatpush1.msra.mxu0 %v240
    %1789 = vmatprep.subr.mxu0 %v249
    %1790 = vmatpush1.msra.mxu0 %v248
    %1791 = vmatprep.subr.mxu0 %v257
    %1792 = vmatpush1.msra.mxu0 %v256
    %1793 = vmatprep.subr.mxu0 %v265
    %1794 = vmatpush1.msra.mxu0 %v264
    %1795 = vmatprep.subr.mxu0 %v273
    %1796 = vmatpush1.msra.mxu0 %v272
    %1797 = vmatprep.subr.mxu0 %v281
    %1798 = vmatpush1.msra.mxu0 %v280
    %1799 = vmatprep.subr.mxu0 %v289
    %1800 = vmatpush1.msra.mxu0 %v288
    %1801 = vmatprep.subr.mxu0 %v297
    %1802 = vmatpush1.msra.mxu0 %v296
    %1803 = vmatprep.subr.mxu0 %v305
    %1804 = vmatpush1.msra.mxu0 %v304
    %1805 = vmatprep.mubr.f32.mxu0 %v1621
    %1806 = vmatmul.mubr.f32.gmra.mrb[0].mxu0 %v1620
    %v1807 = vpop.f32.mrb[0].mxu0
    %v1808 = vadd.f32 %v1642, %v1807
    %v1809 = vpop.f32.mrb[0].mxu0
    %v1810 = vadd.f32 %v1644, %v1809
    %1811 = vdwg.mxu0
    %1812 = vmatprep.subr.mxu0 %v59
    %1813 = vmatpush1.msra.mxu0 %v58
    %1814 = vmatprep.subr.mxu0 %v67
    %1815 = vmatpush1.msra.mxu0 %v66
    %1816 = vmatprep.subr.mxu0 %v75
    %1817 = vmatpush1.msra.mxu0 %v74
    %1818 = vmatprep.subr.mxu0 %v83
    %1819 = vmatpush1.msra.mxu0 %v82
    %1820 = vmatprep.subr.mxu0 %v91
    %1821 = vmatpush1.msra.mxu0 %v90
    %1822 = vmatprep.subr.mxu0 %v99
    %1823 = vmatpush1.msra.mxu0 %v98
    %1824 = vmatprep.subr.mxu0 %v107
    %1825 = vmatpush1.msra.mxu0 %v106
    %1826 = vmatprep.subr.mxu0 %v115
    %1827 = vmatpush1.msra.mxu0 %v114
    %1828 = vmatprep.subr.mxu0 %v123
    %1829 = vmatpush1.msra.mxu0 %v122
    %1830 = vmatprep.subr.mxu0 %v131
    %1831 = vmatpush1.msra.mxu0 %v130
    %1832 = vmatprep.subr.mxu0 %v139
    %1833 = vmatpush1.msra.mxu0 %v138
    %1834 = vmatprep.subr.mxu0 %v147
    %1835 = vmatpush1.msra.mxu0 %v146
    %1836 = vmatprep.subr.mxu0 %v155
    %1837 = vmatpush1.msra.mxu0 %v154
    %1838 = vmatprep.subr.mxu0 %v163
    %1839 = vmatpush1.msra.mxu0 %v162
    %1840 = vmatprep.subr.mxu0 %v171
    %1841 = vmatpush1.msra.mxu0 %v170
    %1842 = vmatprep.subr.mxu0 %v179
    %1843 = vmatpush1.msra.mxu0 %v178
    %1844 = vmatprep.subr.mxu0 %v187
    %1845 = vmatpush1.msra.mxu0 %v186
    %1846 = vmatprep.subr.mxu0 %v195
    %1847 = vmatpush1.msra.mxu0 %v194
    %1848 = vmatprep.subr.mxu0 %v203
    %1849 = vmatpush1.msra.mxu0 %v202
    %1850 = vmatprep.subr.mxu0 %v211
    %1851 = vmatpush1.msra.mxu0 %v210
    %1852 = vmatprep.subr.mxu0 %v219
    %1853 = vmatpush1.msra.mxu0 %v218
    %1854 = vmatprep.subr.mxu0 %v227
    %1855 = vmatpush1.msra.mxu0 %v226
    %1856 = vmatprep.subr.mxu0 %v235
    %1857 = vmatpush1.msra.mxu0 %v234
    %1858 = vmatprep.subr.mxu0 %v243
    %1859 = vmatpush1.msra.mxu0 %v242
    %1860 = vmatprep.subr.mxu0 %v251
    %1861 = vmatpush1.msra.mxu0 %v250
    %1862 = vmatprep.subr.mxu0 %v259
    %1863 = vmatpush1.msra.mxu0 %v258
    %1864 = vmatprep.subr.mxu0 %v267
    %1865 = vmatpush1.msra.mxu0 %v266
    %1866 = vmatprep.subr.mxu0 %v275
    %1867 = vmatpush1.msra.mxu0 %v274
    %1868 = vmatprep.subr.mxu0 %v283
    %1869 = vmatpush1.msra.mxu0 %v282
    %1870 = vmatprep.subr.mxu0 %v291
    %1871 = vmatpush1.msra.mxu0 %v290
    %1872 = vmatprep.subr.mxu0 %v299
    %1873 = vmatpush1.msra.mxu0 %v298
    %1874 = vmatprep.subr.mxu0 %v307
    %1875 = vmatpush1.msra.mxu0 %v306
    %1876 = vmatprep.mubr.f32.mxu0 %v1621
    %1877 = vmatmul.mubr.f32.gmra.mrb[0].mxu0 %v1620
    %v1878 = vpop.f32.mrb[0].mxu0
    %v1879 = vadd.f32 %v1652, %v1878
    %v1880 = vpop.f32.mrb[0].mxu0
    %v1881 = vadd.f32 %v1660, %v1880
    %1882 = vdwg.mxu0
    %1883 = vmatprep.subr.mxu0 %v61
    %1884 = vmatpush1.msra.mxu0 %v60
    %1885 = vmatprep.subr.mxu0 %v69
    %1886 = vmatpush1.msra.mxu0 %v68
    %1887 = vmatprep.subr.mxu0 %v77
    %1888 = vmatpush1.msra.mxu0 %v76
    %1889 = vmatprep.subr.mxu0 %v85
    %1890 = vmatpush1.msra.mxu0 %v84
    %1891 = vmatprep.subr.mxu0 %v93
    %1892 = vmatpush1.msra.mxu0 %v92
    %1893 = vmatprep.subr.mxu0 %v101
    %1894 = vmatpush1.msra.mxu0 %v100
    %1895 = vmatprep.subr.mxu0 %v109
    %1896 = vmatpush1.msra.mxu0 %v108
    %1897 = vmatprep.subr.mxu0 %v117
    %1898 = vmatpush1.msra.mxu0 %v116
    %1899 = vmatprep.subr.mxu0 %v125
    %1900 = vmatpush1.msra.mxu0 %v124
    %1901 = vmatprep.subr.mxu0 %v133
    %1902 = vmatpush1.msra.mxu0 %v132
    %1903 = vmatprep.subr.mxu0 %v141
    %1904 = vmatpush1.msra.mxu0 %v140
    %1905 = vmatprep.subr.mxu0 %v149
    %1906 = vmatpush1.msra.mxu0 %v148
    %1907 = vmatprep.subr.mxu0 %v157
    %1908 = vmatpush1.msra.mxu0 %v156
    %1909 = vmatprep.subr.mxu0 %v165
    %1910 = vmatpush1.msra.mxu0 %v164
    %1911 = vmatprep.subr.mxu0 %v173
    %1912 = vmatpush1.msra.mxu0 %v172
    %1913 = vmatprep.subr.mxu0 %v181
    %1914 = vmatpush1.msra.mxu0 %v180
    %1915 = vmatprep.subr.mxu0 %v189
    %1916 = vmatpush1.msra.mxu0 %v188
    %1917 = vmatprep.subr.mxu0 %v197
    %1918 = vmatpush1.msra.mxu0 %v196
    %1919 = vmatprep.subr.mxu0 %v205
    %1920 = vmatpush1.msra.mxu0 %v204
    %1921 = vmatprep.subr.mxu0 %v213
    %1922 = vmatpush1.msra.mxu0 %v212
    %1923 = vmatprep.subr.mxu0 %v221
    %1924 = vmatpush1.msra.mxu0 %v220
    %1925 = vmatprep.subr.mxu0 %v229
    %1926 = vmatpush1.msra.mxu0 %v228
    %1927 = vmatprep.subr.mxu0 %v237
    %1928 = vmatpush1.msra.mxu0 %v236
    %1929 = vmatprep.subr.mxu0 %v245
    %1930 = vmatpush1.msra.mxu0 %v244
    %1931 = vmatprep.subr.mxu0 %v253
    %1932 = vmatpush1.msra.mxu0 %v252
    %1933 = vmatprep.subr.mxu0 %v261
    %1934 = vmatpush1.msra.mxu0 %v260
    %1935 = vmatprep.subr.mxu0 %v269
    %1936 = vmatpush1.msra.mxu0 %v268
    %1937 = vmatprep.subr.mxu0 %v277
    %1938 = vmatpush1.msra.mxu0 %v276
    %1939 = vmatprep.subr.mxu0 %v285
    %1940 = vmatpush1.msra.mxu0 %v284
    %1941 = vmatprep.subr.mxu0 %v293
    %1942 = vmatpush1.msra.mxu0 %v292
    %1943 = vmatprep.subr.mxu0 %v301
    %1944 = vmatpush1.msra.mxu0 %v300
    %1945 = vmatprep.subr.mxu0 %v309
    %1946 = vmatpush1.msra.mxu0 %v308
    %1947 = vmatprep.mubr.f32.mxu0 %v1621
    %1948 = vmatmul.mubr.f32.gmra.mrb[0].mxu0 %v1620
    %v1949 = vpop.f32.mrb[0].mxu0
    %v1950 = vadd.f32 %v1659, %v1949
    %v1951 = vpop.f32.mrb[0].mxu0
    %v1952 = vadd.f32 %v1661, %v1951
    %1953 = vdwg.mxu0
    %v1954 = vld [vmem:[%s1 + $0x30] sm:$0xff]
    %v1955 = vld [vmem:[%s1 + $0x38] sm:$0xff]
    %v1958 = vcombine.high %v1954, %v1954
    %v1960 = vunpack.c.l.s4 1983009808
    %v1961 = vunpack.c.0.s8 %v1960
    %v1962 = vlaneseq
    %v1963 = vshrl.u32 %v1962, 7
    %v1964 = vsub.s32 %v1961, %v1963
    %v1965 = vrot.slane %v1954, %v1964
    %v1967 = vunpack.c.l.s4 1983009808
    %v1968 = vunpack.c.0.s8 %v1967
    %v1969 = vlaneseq
    %v1970 = vshrl.u32 %v1969, 7
    %v1971 = vsub.s32 %v1968, %v1970
    %v1972 = vrot.slane %v1958, %v1971
    %v1973 = vcombine.high %v1965, %v1965
    %v1974 = vcombine.high %v1972, %v1972
    %v1975 = vcombine.high %v1955, %v1955
    %v1977 = vunpack.c.l.s4 1983009808
    %v1978 = vunpack.c.0.s8 %v1977
    %v1979 = vlaneseq
    %v1980 = vshrl.u32 %v1979, 7
    %v1981 = vsub.s32 %v1978, %v1980
    %v1982 = vrot.slane %v1955, %v1981
    %v1984 = vunpack.c.l.s4 1983009808
    %v1985 = vunpack.c.0.s8 %v1984
    %v1986 = vlaneseq
    %v1987 = vshrl.u32 %v1986, 7
    %v1988 = vsub.s32 %v1985, %v1987
    %v1989 = vrot.slane %v1975, %v1988
    %v1990 = vcombine.high %v1982, %v1982
    %v1991 = vcombine.high %v1989, %v1989
    %v2000 = vadd.f32 %v1737, %v1965
    %v2001 = vadd.f32 %v1739, %v1973
    %v2002 = vadd.f32 %v1808, %v1972
    %v2003 = vadd.f32 %v1810, %v1974
    %v2004 = vadd.f32 %v1879, %v1982
    %v2005 = vadd.f32 %v1881, %v1990
    %v2006 = vadd.f32 %v1950, %v1989
    %v2007 = vadd.f32 %v1952, %v1991
    %v2008 = vxor.u32 %v2000, 2147483648
    %v2009 = vxor.u32 %v2001, 2147483648
    %v2010 = vmul.f32 %v2008, 1.442695
    %v2011 = vpow.pop %v2010
    %v2012 = vmul.f32 %v2009, 1.442695
    %v2013 = vpow.pop %v2012
    %v2014 = vadd.f32 %v2011, 1.0
    %v2015 = vadd.f32 %v2013, 1.0
    %v2016 = vrcp.pop %v2014
    %v2017 = vmul.f32 1.0, %v2016
    %v2018 = vrcp.pop %v2015
    %v2019 = vmul.f32 1.0, %v2018
    %v2020 = vxor.u32 %v2002, 2147483648
    %v2021 = vxor.u32 %v2003, 2147483648
    %v2022 = vmul.f32 %v2020, 1.442695
    %v2023 = vpow.pop %v2022
    %v2024 = vmul.f32 %v2021, 1.442695
    %v2025 = vpow.pop %v2024
    %v2026 = vadd.f32 %v2023, 1.0
    %v2027 = vadd.f32 %v2025, 1.0
    %v2028 = vrcp.pop %v2026
    %v2029 = vmul.f32 1.0, %v2028
    %v2030 = vrcp.pop %v2027
    %v2031 = vmul.f32 1.0, %v2030
    %v2032 = vtanh.pop %v2004
    %v2033 = vtanh.pop %v2005
    %v2034 = vxor.u32 %v2006, 2147483648
    %v2035 = vxor.u32 %v2007, 2147483648
    %v2036 = vmul.f32 %v2034, 1.442695
    %v2037 = vpow.pop %v2036
    %v2038 = vmul.f32 %v2035, 1.442695
    %v2039 = vpow.pop %v2038
    %v2040 = vadd.f32 %v2037, 1.0
    %v2041 = vadd.f32 %v2039, 1.0
    %v2042 = vrcp.pop %v2040
    %v2043 = vmul.f32 1.0, %v2042
    %v2044 = vrcp.pop %v2041
    %v2045 = vmul.f32 1.0, %v2044
    %v2046 = vmul.f32 %v2029, %v1622
    %v2047 = vmul.f32 %v2031, %v1623
    %v2048 = vmul.f32 %v2017, %v2032
    %v2049 = vmul.f32 %v2019, %v2033
    %v2050 = vadd.f32 %v2046, %v2048
    %v2051 = vadd.f32 %v2047, %v2049
    %v2052 = vtanh.pop %v2050
    %v2053 = vtanh.pop %v2051
    %v2054 = vmul.f32 %v2043, %v2052
    %v2055 = vmul.f32 %v2045, %v2053
    %vm2056 = vcmp.gt.s32.totalorder %v52, 3
    %vm2057 = vcmp.gt.s32.totalorder %v53, 3
    %v2058 = vsel %vm2056, %v2054, %v1620
    %v2059 = vsel %vm2057, %v2055, %v1621
    %v2060 = vsel %vm2056, %v2050, %v1622
    %v2061 = vsel %vm2057, %v2051, %v1623
    %v2062 = vld [vmem:[%s0 + $0x40] sm:$0xff]
    %v2063 = vld [vmem:[%s0 + $0x48] sm:$0xff]
    %v2066 = vcombine.high %v2062, %v2062
    %v2068 = vunpack.c.l.s4 1983009808
    %v2069 = vunpack.c.0.s8 %v2068
    %v2070 = vlaneseq
    %v2071 = vshrl.u32 %v2070, 7
    %v2072 = vsub.s32 %v2069, %v2071
    %v2073 = vrot.slane %v2062, %v2072
    %v2075 = vunpack.c.l.s4 1983009808
    %v2076 = vunpack.c.0.s8 %v2075
    %v2077 = vlaneseq
    %v2078 = vshrl.u32 %v2077, 7
    %v2079 = vsub.s32 %v2076, %v2078
    %v2080 = vrot.slane %v2066, %v2079
    %v2081 = vcombine.high %v2073, %v2073
    %v2082 = vcombine.high %v2080, %v2080
    %v2083 = vcombine.high %v2063, %v2063
    %v2085 = vunpack.c.l.s4 1983009808
    %v2086 = vunpack.c.0.s8 %v2085
    %v2087 = vlaneseq
    %v2088 = vshrl.u32 %v2087, 7
    %v2089 = vsub.s32 %v2086, %v2088
    %v2090 = vrot.slane %v2063, %v2089
    %v2092 = vunpack.c.l.s4 1983009808
    %v2093 = vunpack.c.0.s8 %v2092
    %v2094 = vlaneseq
    %v2095 = vshrl.u32 %v2094, 7
    %v2096 = vsub.s32 %v2093, %v2095
    %v2097 = vrot.slane %v2083, %v2096
    %v2098 = vcombine.high %v2090, %v2090
    %v2099 = vcombine.high %v2097, %v2097
    %2108 = vmatprep.subr.mxu0 %v55
    %2109 = vmatpush1.msra.mxu0 %v54
    %2110 = vmatprep.subr.mxu0 %v63
    %2111 = vmatpush1.msra.mxu0 %v62
    %2112 = vmatprep.subr.mxu0 %v71
    %2113 = vmatpush1.msra.mxu0 %v70
    %2114 = vmatprep.subr.mxu0 %v79
    %2115 = vmatpush1.msra.mxu0 %v78
    %2116 = vmatprep.subr.mxu0 %v87
    %2117 = vmatpush1.msra.mxu0 %v86
    %2118 = vmatprep.subr.mxu0 %v95
    %2119 = vmatpush1.msra.mxu0 %v94
    %2120 = vmatprep.subr.mxu0 %v103
    %2121 = vmatpush1.msra.mxu0 %v102
    %2122 = vmatprep.subr.mxu0 %v111
    %2123 = vmatpush1.msra.mxu0 %v110
    %2124 = vmatprep.subr.mxu0 %v119
    %2125 = vmatpush1.msra.mxu0 %v118
    %2126 = vmatprep.subr.mxu0 %v127
    %2127 = vmatpush1.msra.mxu0 %v126
    %2128 = vmatprep.subr.mxu0 %v135
    %2129 = vmatpush1.msra.mxu0 %v134
    %2130 = vmatprep.subr.mxu0 %v143
    %2131 = vmatpush1.msra.mxu0 %v142
    %2132 = vmatprep.subr.mxu0 %v151
    %2133 = vmatpush1.msra.mxu0 %v150
    %2134 = vmatprep.subr.mxu0 %v159
    %2135 = vmatpush1.msra.mxu0 %v158
    %2136 = vmatprep.subr.mxu0 %v167
    %2137 = vmatpush1.msra.mxu0 %v166
    %2138 = vmatprep.subr.mxu0 %v175
    %2139 = vmatpush1.msra.mxu0 %v174
    %2140 = vmatprep.subr.mxu0 %v183
    %2141 = vmatpush1.msra.mxu0 %v182
    %2142 = vmatprep.subr.mxu0 %v191
    %2143 = vmatpush1.msra.mxu0 %v190
    %2144 = vmatprep.subr.mxu0 %v199
    %2145 = vmatpush1.msra.mxu0 %v198
    %2146 = vmatprep.subr.mxu0 %v207
    %2147 = vmatpush1.msra.mxu0 %v206
    %2148 = vmatprep.subr.mxu0 %v215
    %2149 = vmatpush1.msra.mxu0 %v214
    %2150 = vmatprep.subr.mxu0 %v223
    %2151 = vmatpush1.msra.mxu0 %v222
    %2152 = vmatprep.subr.mxu0 %v231
    %2153 = vmatpush1.msra.mxu0 %v230
    %2154 = vmatprep.subr.mxu0 %v239
    %2155 = vmatpush1.msra.mxu0 %v238
    %2156 = vmatprep.subr.mxu0 %v247
    %2157 = vmatpush1.msra.mxu0 %v246
    %2158 = vmatprep.subr.mxu0 %v255
    %2159 = vmatpush1.msra.mxu0 %v254
    %2160 = vmatprep.subr.mxu0 %v263
    %2161 = vmatpush1.msra.mxu0 %v262
    %2162 = vmatprep.subr.mxu0 %v271
    %2163 = vmatpush1.msra.mxu0 %v270
    %2164 = vmatprep.subr.mxu0 %v279
    %2165 = vmatpush1.msra.mxu0 %v278
    %2166 = vmatprep.subr.mxu0 %v287
    %2167 = vmatpush1.msra.mxu0 %v286
    %2168 = vmatprep.subr.mxu0 %v295
    %2169 = vmatpush1.msra.mxu0 %v294
    %2170 = vmatprep.subr.mxu0 %v303
    %2171 = vmatpush1.msra.mxu0 %v302
    %2172 = vmatprep.mubr.f32.mxu0 %v2059
    %2173 = vmatmul.mubr.f32.gmra.mrb[0].mxu0 %v2058
    %v2174 = vpop.f32.mrb[0].mxu0
    %v2175 = vadd.f32 %v2073, %v2174
    %v2176 = vpop.f32.mrb[0].mxu0
    %v2177 = vadd.f32 %v2081, %v2176
    %2178 = vdwg.mxu0
    %2179 = vmatprep.subr.mxu0 %v57
    %2180 = vmatpush1.msra.mxu0 %v56
    %2181 = vmatprep.subr.mxu0 %v65
    %2182 = vmatpush1.msra.mxu0 %v64
    %2183 = vmatprep.subr.mxu0 %v73
    %2184 = vmatpush1.msra.mxu0 %v72
    %2185 = vmatprep.subr.mxu0 %v81
    %2186 = vmatpush1.msra.mxu0 %v80
    %2187 = vmatprep.subr.mxu0 %v89
    %2188 = vmatpush1.msra.mxu0 %v88
    %2189 = vmatprep.subr.mxu0 %v97
    %2190 = vmatpush1.msra.mxu0 %v96
    %2191 = vmatprep.subr.mxu0 %v105
    %2192 = vmatpush1.msra.mxu0 %v104
    %2193 = vmatprep.subr.mxu0 %v113
    %2194 = vmatpush1.msra.mxu0 %v112
    %2195 = vmatprep.subr.mxu0 %v121
    %2196 = vmatpush1.msra.mxu0 %v120
    %2197 = vmatprep.subr.mxu0 %v129
    %2198 = vmatpush1.msra.mxu0 %v128
    %2199 = vmatprep.subr.mxu0 %v137
    %2200 = vmatpush1.msra.mxu0 %v136
    %2201 = vmatprep.subr.mxu0 %v145
    %2202 = vmatpush1.msra.mxu0 %v144
    %2203 = vmatprep.subr.mxu0 %v153
    %2204 = vmatpush1.msra.mxu0 %v152
    %2205 = vmatprep.subr.mxu0 %v161
    %2206 = vmatpush1.msra.mxu0 %v160
    %2207 = vmatprep.subr.mxu0 %v169
    %2208 = vmatpush1.msra.mxu0 %v168
    %2209 = vmatprep.subr.mxu0 %v177
    %2210 = vmatpush1.msra.mxu0 %v176
    %2211 = vmatprep.subr.mxu0 %v185
    %2212 = vmatpush1.msra.mxu0 %v184
    %2213 = vmatprep.subr.mxu0 %v193
    %2214 = vmatpush1.msra.mxu0 %v192
    %2215 = vmatprep.subr.mxu0 %v201
    %2216 = vmatpush1.msra.mxu0 %v200
    %2217 = vmatprep.subr.mxu0 %v209
    %2218 = vmatpush1.msra.mxu0 %v208
    %2219 = vmatprep.subr.mxu0 %v217
    %2220 = vmatpush1.msra.mxu0 %v216
    %2221 = vmatprep.subr.mxu0 %v225
    %2222 = vmatpush1.msra.mxu0 %v224
    %2223 = vmatprep.subr.mxu0 %v233
    %2224 = vmatpush1.msra.mxu0 %v232
    %2225 = vmatprep.subr.mxu0 %v241
    %2226 = vmatpush1.msra.mxu0 %v240
    %2227 = vmatprep.subr.mxu0 %v249
    %2228 = vmatpush1.msra.mxu0 %v248
    %2229 = vmatprep.subr.mxu0 %v257
    %2230 = vmatpush1.msra.mxu0 %v256
    %2231 = vmatprep.subr.mxu0 %v265
    %2232 = vmatpush1.msra.mxu0 %v264
    %2233 = vmatprep.subr.mxu0 %v273
    %2234 = vmatpush1.msra.mxu0 %v272
    %2235 = vmatprep.subr.mxu0 %v281
    %2236 = vmatpush1.msra.mxu0 %v280
    %2237 = vmatprep.subr.mxu0 %v289
    %2238 = vmatpush1.msra.mxu0 %v288
    %2239 = vmatprep.subr.mxu0 %v297
    %2240 = vmatpush1.msra.mxu0 %v296
    %2241 = vmatprep.subr.mxu0 %v305
    %2242 = vmatpush1.msra.mxu0 %v304
    %2243 = vmatprep.mubr.f32.mxu0 %v2059
    %2244 = vmatmul.mubr.f32.gmra.mrb[0].mxu0 %v2058
    %v2245 = vpop.f32.mrb[0].mxu0
    %v2246 = vadd.f32 %v2080, %v2245
    %v2247 = vpop.f32.mrb[0].mxu0
    %v2248 = vadd.f32 %v2082, %v2247
    %2249 = vdwg.mxu0
    %2250 = vmatprep.subr.mxu0 %v59
    %2251 = vmatpush1.msra.mxu0 %v58
    %2252 = vmatprep.subr.mxu0 %v67
    %2253 = vmatpush1.msra.mxu0 %v66
    %2254 = vmatprep.subr.mxu0 %v75
    %2255 = vmatpush1.msra.mxu0 %v74
    %2256 = vmatprep.subr.mxu0 %v83
    %2257 = vmatpush1.msra.mxu0 %v82
    %2258 = vmatprep.subr.mxu0 %v91
    %2259 = vmatpush1.msra.mxu0 %v90
    %2260 = vmatprep.subr.mxu0 %v99
    %2261 = vmatpush1.msra.mxu0 %v98
    %2262 = vmatprep.subr.mxu0 %v107
    %2263 = vmatpush1.msra.mxu0 %v106
    %2264 = vmatprep.subr.mxu0 %v115
    %2265 = vmatpush1.msra.mxu0 %v114
    %2266 = vmatprep.subr.mxu0 %v123
    %2267 = vmatpush1.msra.mxu0 %v122
    %2268 = vmatprep.subr.mxu0 %v131
    %2269 = vmatpush1.msra.mxu0 %v130
    %2270 = vmatprep.subr.mxu0 %v139
    %2271 = vmatpush1.msra.mxu0 %v138
    %2272 = vmatprep.subr.mxu0 %v147
    %2273 = vmatpush1.msra.mxu0 %v146
    %2274 = vmatprep.subr.mxu0 %v155
    %2275 = vmatpush1.msra.mxu0 %v154
    %2276 = vmatprep.subr.mxu0 %v163
    %2277 = vmatpush1.msra.mxu0 %v162
    %2278 = vmatprep.subr.mxu0 %v171
    %2279 = vmatpush1.msra.mxu0 %v170
    %2280 = vmatprep.subr.mxu0 %v179
    %2281 = vmatpush1.msra.mxu0 %v178
    %2282 = vmatprep.subr.mxu0 %v187
    %2283 = vmatpush1.msra.mxu0 %v186
    %2284 = vmatprep.subr.mxu0 %v195
    %2285 = vmatpush1.msra.mxu0 %v194
    %2286 = vmatprep.subr.mxu0 %v203
    %2287 = vmatpush1.msra.mxu0 %v202
    %2288 = vmatprep.subr.mxu0 %v211
    %2289 = vmatpush1.msra.mxu0 %v210
    %2290 = vmatprep.subr.mxu0 %v219
    %2291 = vmatpush1.msra.mxu0 %v218
    %2292 = vmatprep.subr.mxu0 %v227
    %2293 = vmatpush1.msra.mxu0 %v226
    %2294 = vmatprep.subr.mxu0 %v235
    %2295 = vmatpush1.msra.mxu0 %v234
    %2296 = vmatprep.subr.mxu0 %v243
    %2297 = vmatpush1.msra.mxu0 %v242
    %2298 = vmatprep.subr.mxu0 %v251
    %2299 = vmatpush1.msra.mxu0 %v250
    %2300 = vmatprep.subr.mxu0 %v259
    %2301 = vmatpush1.msra.mxu0 %v258
    %2302 = vmatprep.subr.mxu0 %v267
    %2303 = vmatpush1.msra.mxu0 %v266
    %2304 = vmatprep.subr.mxu0 %v275
    %2305 = vmatpush1.msra.mxu0 %v274
    %2306 = vmatprep.subr.mxu0 %v283
    %2307 = vmatpush1.msra.mxu0 %v282
    %2308 = vmatprep.subr.mxu0 %v291
    %2309 = vmatpush1.msra.mxu0 %v290
    %2310 = vmatprep.subr.mxu0 %v299
    %2311 = vmatpush1.msra.mxu0 %v298
    %2312 = vmatprep.subr.mxu0 %v307
    %2313 = vmatpush1.msra.mxu0 %v306
    %2314 = vmatprep.mubr.f32.mxu0 %v2059
    %2315 = vmatmul.mubr.f32.gmra.mrb[0].mxu0 %v2058
    %v2316 = vpop.f32.mrb[0].mxu0
    %v2317 = vadd.f32 %v2090, %v2316
    %v2318 = vpop.f32.mrb[0].mxu0
    %v2319 = vadd.f32 %v2098, %v2318
    %2320 = vdwg.mxu0
    %2321 = vmatprep.subr.mxu0 %v61
    %2322 = vmatpush1.msra.mxu0 %v60
    %2323 = vmatprep.subr.mxu0 %v69
    %2324 = vmatpush1.msra.mxu0 %v68
    %2325 = vmatprep.subr.mxu0 %v77
    %2326 = vmatpush1.msra.mxu0 %v76
    %2327 = vmatprep.subr.mxu0 %v85
    %2328 = vmatpush1.msra.mxu0 %v84
    %2329 = vmatprep.subr.mxu0 %v93
    %2330 = vmatpush1.msra.mxu0 %v92
    %2331 = vmatprep.subr.mxu0 %v101
    %2332 = vmatpush1.msra.mxu0 %v100
    %2333 = vmatprep.subr.mxu0 %v109
    %2334 = vmatpush1.msra.mxu0 %v108
    %2335 = vmatprep.subr.mxu0 %v117
    %2336 = vmatpush1.msra.mxu0 %v116
    %2337 = vmatprep.subr.mxu0 %v125
    %2338 = vmatpush1.msra.mxu0 %v124
    %2339 = vmatprep.subr.mxu0 %v133
    %2340 = vmatpush1.msra.mxu0 %v132
    %2341 = vmatprep.subr.mxu0 %v141
    %2342 = vmatpush1.msra.mxu0 %v140
    %2343 = vmatprep.subr.mxu0 %v149
    %2344 = vmatpush1.msra.mxu0 %v148
    %2345 = vmatprep.subr.mxu0 %v157
    %2346 = vmatpush1.msra.mxu0 %v156
    %2347 = vmatprep.subr.mxu0 %v165
    %2348 = vmatpush1.msra.mxu0 %v164
    %2349 = vmatprep.subr.mxu0 %v173
    %2350 = vmatpush1.msra.mxu0 %v172
    %2351 = vmatprep.subr.mxu0 %v181
    %2352 = vmatpush1.msra.mxu0 %v180
    %2353 = vmatprep.subr.mxu0 %v189
    %2354 = vmatpush1.msra.mxu0 %v188
    %2355 = vmatprep.subr.mxu0 %v197
    %2356 = vmatpush1.msra.mxu0 %v196
    %2357 = vmatprep.subr.mxu0 %v205
    %2358 = vmatpush1.msra.mxu0 %v204
    %2359 = vmatprep.subr.mxu0 %v213
    %2360 = vmatpush1.msra.mxu0 %v212
    %2361 = vmatprep.subr.mxu0 %v221
    %2362 = vmatpush1.msra.mxu0 %v220
    %2363 = vmatprep.subr.mxu0 %v229
    %2364 = vmatpush1.msra.mxu0 %v228
    %2365 = vmatprep.subr.mxu0 %v237
    %2366 = vmatpush1.msra.mxu0 %v236
    %2367 = vmatprep.subr.mxu0 %v245
    %2368 = vmatpush1.msra.mxu0 %v244
    %2369 = vmatprep.subr.mxu0 %v253
    %2370 = vmatpush1.msra.mxu0 %v252
    %2371 = vmatprep.subr.mxu0 %v261
    %2372 = vmatpush1.msra.mxu0 %v260
    %2373 = vmatprep.subr.mxu0 %v269
    %2374 = vmatpush1.msra.mxu0 %v268
    %2375 = vmatprep.subr.mxu0 %v277
    %2376 = vmatpush1.msra.mxu0 %v276
    %2377 = vmatprep.subr.mxu0 %v285
    %2378 = vmatpush1.msra.mxu0 %v284
    %2379 = vmatprep.subr.mxu0 %v293
    %2380 = vmatpush1.msra.mxu0 %v292
    %2381 = vmatprep.subr.mxu0 %v301
    %2382 = vmatpush1.msra.mxu0 %v300
    %2383 = vmatprep.subr.mxu0 %v309
    %2384 = vmatpush1.msra.mxu0 %v308
    %2385 = vmatprep.mubr.f32.mxu0 %v2059
    %2386 = vmatmul.mubr.f32.gmra.mrb[0].mxu0 %v2058
    %v2387 = vpop.f32.mrb[0].mxu0
    %v2388 = vadd.f32 %v2097, %v2387
    %v2389 = vpop.f32.mrb[0].mxu0
    %v2390 = vadd.f32 %v2099, %v2389
    %2391 = vdwg.mxu0
    %v2392 = vld [vmem:[%s1 + $0x40] sm:$0xff]
    %v2393 = vld [vmem:[%s1 + $0x48] sm:$0xff]
    %v2396 = vcombine.high %v2392, %v2392
    %v2398 = vunpack.c.l.s4 1983009808
    %v2399 = vunpack.c.0.s8 %v2398
    %v2400 = vlaneseq
    %v2401 = vshrl.u32 %v2400, 7
    %v2402 = vsub.s32 %v2399, %v2401
    %v2403 = vrot.slane %v2392, %v2402
    %v2405 = vunpack.c.l.s4 1983009808
    %v2406 = vunpack.c.0.s8 %v2405
    %v2407 = vlaneseq
    %v2408 = vshrl.u32 %v2407, 7
    %v2409 = vsub.s32 %v2406, %v2408
    %v2410 = vrot.slane %v2396, %v2409
    %v2411 = vcombine.high %v2403, %v2403
    %v2412 = vcombine.high %v2410, %v2410
    %v2413 = vcombine.high %v2393, %v2393
    %v2415 = vunpack.c.l.s4 1983009808
    %v2416 = vunpack.c.0.s8 %v2415
    %v2417 = vlaneseq
    %v2418 = vshrl.u32 %v2417, 7
    %v2419 = vsub.s32 %v2416, %v2418
    %v2420 = vrot.slane %v2393, %v2419
    %v2422 = vunpack.c.l.s4 1983009808
    %v2423 = vunpack.c.0.s8 %v2422
    %v2424 = vlaneseq
    %v2425 = vshrl.u32 %v2424, 7
    %v2426 = vsub.s32 %v2423, %v2425
    %v2427 = vrot.slane %v2413, %v2426
    %v2428 = vcombine.high %v2420, %v2420
    %v2429 = vcombine.high %v2427, %v2427
    %v2438 = vadd.f32 %v2175, %v2403
    %v2439 = vadd.f32 %v2177, %v2411
    %v2440 = vadd.f32 %v2246, %v2410
    %v2441 = vadd.f32 %v2248, %v2412
    %v2442 = vadd.f32 %v2317, %v2420
    %v2443 = vadd.f32 %v2319, %v2428
    %v2444 = vadd.f32 %v2388, %v2427
    %v2445 = vadd.f32 %v2390, %v2429
    %v2446 = vxor.u32 %v2438, 2147483648
    %v2447 = vxor.u32 %v2439, 2147483648
    %v2448 = vmul.f32 %v2446, 1.442695
    %v2449 = vpow.pop %v2448
    %v2450 = vmul.f32 %v2447, 1.442695
    %v2451 = vpow.pop %v2450
    %v2452 = vadd.f32 %v2449, 1.0
    %v2453 = vadd.f32 %v2451, 1.0
    %v2454 = vrcp.pop %v2452
    %v2455 = vmul.f32 1.0, %v2454
    %v2456 = vrcp.pop %v2453
    %v2457 = vmul.f32 1.0, %v2456
    %v2458 = vxor.u32 %v2440, 2147483648
    %v2459 = vxor.u32 %v2441, 2147483648
    %v2460 = vmul.f32 %v2458, 1.442695
    %v2461 = vpow.pop %v2460
    %v2462 = vmul.f32 %v2459, 1.442695
    %v2463 = vpow.pop %v2462
    %v2464 = vadd.f32 %v2461, 1.0
    %v2465 = vadd.f32 %v2463, 1.0
    %v2466 = vrcp.pop %v2464
    %v2467 = vmul.f32 1.0, %v2466
    %v2468 = vrcp.pop %v2465
    %v2469 = vmul.f32 1.0, %v2468
    %v2470 = vtanh.pop %v2442
    %v2471 = vtanh.pop %v2443
    %v2472 = vxor.u32 %v2444, 2147483648
    %v2473 = vxor.u32 %v2445, 2147483648
    %v2474 = vmul.f32 %v2472, 1.442695
    %v2475 = vpow.pop %v2474
    %v2476 = vmul.f32 %v2473, 1.442695
    %v2477 = vpow.pop %v2476
    %v2478 = vadd.f32 %v2475, 1.0
    %v2479 = vadd.f32 %v2477, 1.0
    %v2480 = vrcp.pop %v2478
    %v2481 = vmul.f32 1.0, %v2480
    %v2482 = vrcp.pop %v2479
    %v2483 = vmul.f32 1.0, %v2482
    %v2484 = vmul.f32 %v2467, %v2060
    %v2485 = vmul.f32 %v2469, %v2061
    %v2486 = vmul.f32 %v2455, %v2470
    %v2487 = vmul.f32 %v2457, %v2471
    %v2488 = vadd.f32 %v2484, %v2486
    %v2489 = vadd.f32 %v2485, %v2487
    %v2490 = vtanh.pop %v2488
    %v2491 = vtanh.pop %v2489
    %v2492 = vmul.f32 %v2481, %v2490
    %v2493 = vmul.f32 %v2483, %v2491
    %vm2494 = vcmp.gt.s32.totalorder %v52, 4
    %vm2495 = vcmp.gt.s32.totalorder %v53, 4
    %v2496 = vsel %vm2494, %v2492, %v2058
    %v2497 = vsel %vm2495, %v2493, %v2059
    %v2498 = vsel %vm2494, %v2488, %v2060
    %v2499 = vsel %vm2495, %v2489, %v2061
    %v2500 = vld [vmem:[%s0 + $0x50] sm:$0xff]
    %v2501 = vld [vmem:[%s0 + $0x58] sm:$0xff]
    %v2504 = vcombine.high %v2500, %v2500
    %v2506 = vunpack.c.l.s4 1983009808
    %v2507 = vunpack.c.0.s8 %v2506
    %v2508 = vlaneseq
    %v2509 = vshrl.u32 %v2508, 7
    %v2510 = vsub.s32 %v2507, %v2509
    %v2511 = vrot.slane %v2500, %v2510
    %v2513 = vunpack.c.l.s4 1983009808
    %v2514 = vunpack.c.0.s8 %v2513
    %v2515 = vlaneseq
    %v2516 = vshrl.u32 %v2515, 7
    %v2517 = vsub.s32 %v2514, %v2516
    %v2518 = vrot.slane %v2504, %v2517
    %v2519 = vcombine.high %v2511, %v2511
    %v2520 = vcombine.high %v2518, %v2518
    %v2521 = vcombine.high %v2501, %v2501
    %v2523 = vunpack.c.l.s4 1983009808
    %v2524 = vunpack.c.0.s8 %v2523
    %v2525 = vlaneseq
    %v2526 = vshrl.u32 %v2525, 7
    %v2527 = vsub.s32 %v2524, %v2526
    %v2528 = vrot.slane %v2501, %v2527
    %v2530 = vunpack.c.l.s4 1983009808
    %v2531 = vunpack.c.0.s8 %v2530
    %v2532 = vlaneseq
    %v2533 = vshrl.u32 %v2532, 7
    %v2534 = vsub.s32 %v2531, %v2533
    %v2535 = vrot.slane %v2521, %v2534
    %v2536 = vcombine.high %v2528, %v2528
    %v2537 = vcombine.high %v2535, %v2535
    %2546 = vmatprep.subr.mxu0 %v55
    %2547 = vmatpush1.msra.mxu0 %v54
    %2548 = vmatprep.subr.mxu0 %v63
    %2549 = vmatpush1.msra.mxu0 %v62
    %2550 = vmatprep.subr.mxu0 %v71
    %2551 = vmatpush1.msra.mxu0 %v70
    %2552 = vmatprep.subr.mxu0 %v79
    %2553 = vmatpush1.msra.mxu0 %v78
    %2554 = vmatprep.subr.mxu0 %v87
    %2555 = vmatpush1.msra.mxu0 %v86
    %2556 = vmatprep.subr.mxu0 %v95
    %2557 = vmatpush1.msra.mxu0 %v94
    %2558 = vmatprep.subr.mxu0 %v103
    %2559 = vmatpush1.msra.mxu0 %v102
    %2560 = vmatprep.subr.mxu0 %v111
    %2561 = vmatpush1.msra.mxu0 %v110
    %2562 = vmatprep.subr.mxu0 %v119
    %2563 = vmatpush1.msra.mxu0 %v118
    %2564 = vmatprep.subr.mxu0 %v127
    %2565 = vmatpush1.msra.mxu0 %v126
    %2566 = vmatprep.subr.mxu0 %v135
    %2567 = vmatpush1.msra.mxu0 %v134
    %2568 = vmatprep.subr.mxu0 %v143
    %2569 = vmatpush1.msra.mxu0 %v142
    %2570 = vmatprep.subr.mxu0 %v151
    %2571 = vmatpush1.msra.mxu0 %v150
    %2572 = vmatprep.subr.mxu0 %v159
    %2573 = vmatpush1.msra.mxu0 %v158
    %2574 = vmatprep.subr.mxu0 %v167
    %2575 = vmatpush1.msra.mxu0 %v166
    %2576 = vmatprep.subr.mxu0 %v175
    %2577 = vmatpush1.msra.mxu0 %v174
    %2578 = vmatprep.subr.mxu0 %v183
    %2579 = vmatpush1.msra.mxu0 %v182
    %2580 = vmatprep.subr.mxu0 %v191
    %2581 = vmatpush1.msra.mxu0 %v190
    %2582 = vmatprep.subr.mxu0 %v199
    %2583 = vmatpush1.msra.mxu0 %v198
    %2584 = vmatprep.subr.mxu0 %v207
    %2585 = vmatpush1.msra.mxu0 %v206
    %2586 = vmatprep.subr.mxu0 %v215
    %2587 = vmatpush1.msra.mxu0 %v214
    %2588 = vmatprep.subr.mxu0 %v223
    %2589 = vmatpush1.msra.mxu0 %v222
    %2590 = vmatprep.subr.mxu0 %v231
    %2591 = vmatpush1.msra.mxu0 %v230
    %2592 = vmatprep.subr.mxu0 %v239
    %2593 = vmatpush1.msra.mxu0 %v238
    %2594 = vmatprep.subr.mxu0 %v247
    %2595 = vmatpush1.msra.mxu0 %v246
    %2596 = vmatprep.subr.mxu0 %v255
    %2597 = vmatpush1.msra.mxu0 %v254
    %2598 = vmatprep.subr.mxu0 %v263
    %2599 = vmatpush1.msra.mxu0 %v262
    %2600 = vmatprep.subr.mxu0 %v271
    %2601 = vmatpush1.msra.mxu0 %v270
    %2602 = vmatprep.subr.mxu0 %v279
    %2603 = vmatpush1.msra.mxu0 %v278
    %2604 = vmatprep.subr.mxu0 %v287
    %2605 = vmatpush1.msra.mxu0 %v286
    %2606 = vmatprep.subr.mxu0 %v295
    %2607 = vmatpush1.msra.mxu0 %v294
    %2608 = vmatprep.subr.mxu0 %v303
    %2609 = vmatpush1.msra.mxu0 %v302
    %2610 = vmatprep.mubr.f32.mxu0 %v2497
    %2611 = vmatmul.mubr.f32.gmra.mrb[0].mxu0 %v2496
    %v2612 = vpop.f32.mrb[0].mxu0
    %v2613 = vadd.f32 %v2511, %v2612
    %v2614 = vpop.f32.mrb[0].mxu0
    %v2615 = vadd.f32 %v2519, %v2614
    %2616 = vdwg.mxu0
    %2617 = vmatprep.subr.mxu0 %v57
    %2618 = vmatpush1.msra.mxu0 %v56
    %2619 = vmatprep.subr.mxu0 %v65
    %2620 = vmatpush1.msra.mxu0 %v64
    %2621 = vmatprep.subr.mxu0 %v73
    %2622 = vmatpush1.msra.mxu0 %v72
    %2623 = vmatprep.subr.mxu0 %v81
    %2624 = vmatpush1.msra.mxu0 %v80
    %2625 = vmatprep.subr.mxu0 %v89
    %2626 = vmatpush1.msra.mxu0 %v88
    %2627 = vmatprep.subr.mxu0 %v97
    %2628 = vmatpush1.msra.mxu0 %v96
    %2629 = vmatprep.subr.mxu0 %v105
    %2630 = vmatpush1.msra.mxu0 %v104
    %2631 = vmatprep.subr.mxu0 %v113
    %2632 = vmatpush1.msra.mxu0 %v112
    %2633 = vmatprep.subr.mxu0 %v121
    %2634 = vmatpush1.msra.mxu0 %v120
    %2635 = vmatprep.subr.mxu0 %v129
    %2636 = vmatpush1.msra.mxu0 %v128
    %2637 = vmatprep.subr.mxu0 %v137
    %2638 = vmatpush1.msra.mxu0 %v136
    %2639 = vmatprep.subr.mxu0 %v145
    %2640 = vmatpush1.msra.mxu0 %v144
    %2641 = vmatprep.subr.mxu0 %v153
    %2642 = vmatpush1.msra.mxu0 %v152
    %2643 = vmatprep.subr.mxu0 %v161
    %2644 = vmatpush1.msra.mxu0 %v160
    %2645 = vmatprep.subr.mxu0 %v169
    %2646 = vmatpush1.msra.mxu0 %v168
    %2647 = vmatprep.subr.mxu0 %v177
    %2648 = vmatpush1.msra.mxu0 %v176
    %2649 = vmatprep.subr.mxu0 %v185
    %2650 = vmatpush1.msra.mxu0 %v184
    %2651 = vmatprep.subr.mxu0 %v193
    %2652 = vmatpush1.msra.mxu0 %v192
    %2653 = vmatprep.subr.mxu0 %v201
    %2654 = vmatpush1.msra.mxu0 %v200
    %2655 = vmatprep.subr.mxu0 %v209
    %2656 = vmatpush1.msra.mxu0 %v208
    %2657 = vmatprep.subr.mxu0 %v217
    %2658 = vmatpush1.msra.mxu0 %v216
    %2659 = vmatprep.subr.mxu0 %v225
    %2660 = vmatpush1.msra.mxu0 %v224
    %2661 = vmatprep.subr.mxu0 %v233
    %2662 = vmatpush1.msra.mxu0 %v232
    %2663 = vmatprep.subr.mxu0 %v241
    %2664 = vmatpush1.msra.mxu0 %v240
    %2665 = vmatprep.subr.mxu0 %v249
    %2666 = vmatpush1.msra.mxu0 %v248
    %2667 = vmatprep.subr.mxu0 %v257
    %2668 = vmatpush1.msra.mxu0 %v256
    %2669 = vmatprep.subr.mxu0 %v265
    %2670 = vmatpush1.msra.mxu0 %v264
    %2671 = vmatprep.subr.mxu0 %v273
    %2672 = vmatpush1.msra.mxu0 %v272
    %2673 = vmatprep.subr.mxu0 %v281
    %2674 = vmatpush1.msra.mxu0 %v280
    %2675 = vmatprep.subr.mxu0 %v289
    %2676 = vmatpush1.msra.mxu0 %v288
    %2677 = vmatprep.subr.mxu0 %v297
    %2678 = vmatpush1.msra.mxu0 %v296
    %2679 = vmatprep.subr.mxu0 %v305
    %2680 = vmatpush1.msra.mxu0 %v304
    %2681 = vmatprep.mubr.f32.mxu0 %v2497
    %2682 = vmatmul.mubr.f32.gmra.mrb[0].mxu0 %v2496
    %v2683 = vpop.f32.mrb[0].mxu0
    %v2684 = vadd.f32 %v2518, %v2683
    %v2685 = vpop.f32.mrb[0].mxu0
    %v2686 = vadd.f32 %v2520, %v2685
    %2687 = vdwg.mxu0
    %2688 = vmatprep.subr.mxu0 %v59
    %2689 = vmatpush1.msra.mxu0 %v58
    %2690 = vmatprep.subr.mxu0 %v67
    %2691 = vmatpush1.msra.mxu0 %v66
    %2692 = vmatprep.subr.mxu0 %v75
    %2693 = vmatpush1.msra.mxu0 %v74
    %2694 = vmatprep.subr.mxu0 %v83
    %2695 = vmatpush1.msra.mxu0 %v82
    %2696 = vmatprep.subr.mxu0 %v91
    %2697 = vmatpush1.msra.mxu0 %v90
    %2698 = vmatprep.subr.mxu0 %v99
    %2699 = vmatpush1.msra.mxu0 %v98
    %2700 = vmatprep.subr.mxu0 %v107
    %2701 = vmatpush1.msra.mxu0 %v106
    %2702 = vmatprep.subr.mxu0 %v115
    %2703 = vmatpush1.msra.mxu0 %v114
    %2704 = vmatprep.subr.mxu0 %v123
    %2705 = vmatpush1.msra.mxu0 %v122
    %2706 = vmatprep.subr.mxu0 %v131
    %2707 = vmatpush1.msra.mxu0 %v130
    %2708 = vmatprep.subr.mxu0 %v139
    %2709 = vmatpush1.msra.mxu0 %v138
    %2710 = vmatprep.subr.mxu0 %v147
    %2711 = vmatpush1.msra.mxu0 %v146
    %2712 = vmatprep.subr.mxu0 %v155
    %2713 = vmatpush1.msra.mxu0 %v154
    %2714 = vmatprep.subr.mxu0 %v163
    %2715 = vmatpush1.msra.mxu0 %v162
    %2716 = vmatprep.subr.mxu0 %v171
    %2717 = vmatpush1.msra.mxu0 %v170
    %2718 = vmatprep.subr.mxu0 %v179
    %2719 = vmatpush1.msra.mxu0 %v178
    %2720 = vmatprep.subr.mxu0 %v187
    %2721 = vmatpush1.msra.mxu0 %v186
    %2722 = vmatprep.subr.mxu0 %v195
    %2723 = vmatpush1.msra.mxu0 %v194
    %2724 = vmatprep.subr.mxu0 %v203
    %2725 = vmatpush1.msra.mxu0 %v202
    %2726 = vmatprep.subr.mxu0 %v211
    %2727 = vmatpush1.msra.mxu0 %v210
    %2728 = vmatprep.subr.mxu0 %v219
    %2729 = vmatpush1.msra.mxu0 %v218
    %2730 = vmatprep.subr.mxu0 %v227
    %2731 = vmatpush1.msra.mxu0 %v226
    %2732 = vmatprep.subr.mxu0 %v235
    %2733 = vmatpush1.msra.mxu0 %v234
    %2734 = vmatprep.subr.mxu0 %v243
    %2735 = vmatpush1.msra.mxu0 %v242
    %2736 = vmatprep.subr.mxu0 %v251
    %2737 = vmatpush1.msra.mxu0 %v250
    %2738 = vmatprep.subr.mxu0 %v259
    %2739 = vmatpush1.msra.mxu0 %v258
    %2740 = vmatprep.subr.mxu0 %v267
    %2741 = vmatpush1.msra.mxu0 %v266
    %2742 = vmatprep.subr.mxu0 %v275
    %2743 = vmatpush1.msra.mxu0 %v274
    %2744 = vmatprep.subr.mxu0 %v283
    %2745 = vmatpush1.msra.mxu0 %v282
    %2746 = vmatprep.subr.mxu0 %v291
    %2747 = vmatpush1.msra.mxu0 %v290
    %2748 = vmatprep.subr.mxu0 %v299
    %2749 = vmatpush1.msra.mxu0 %v298
    %2750 = vmatprep.subr.mxu0 %v307
    %2751 = vmatpush1.msra.mxu0 %v306
    %2752 = vmatprep.mubr.f32.mxu0 %v2497
    %2753 = vmatmul.mubr.f32.gmra.mrb[0].mxu0 %v2496
    %v2754 = vpop.f32.mrb[0].mxu0
    %v2755 = vadd.f32 %v2528, %v2754
    %v2756 = vpop.f32.mrb[0].mxu0
    %v2757 = vadd.f32 %v2536, %v2756
    %2758 = vdwg.mxu0
    %2759 = vmatprep.subr.mxu0 %v61
    %2760 = vmatpush1.msra.mxu0 %v60
    %2761 = vmatprep.subr.mxu0 %v69
    %2762 = vmatpush1.msra.mxu0 %v68
    %2763 = vmatprep.subr.mxu0 %v77
    %2764 = vmatpush1.msra.mxu0 %v76
    %2765 = vmatprep.subr.mxu0 %v85
    %2766 = vmatpush1.msra.mxu0 %v84
    %2767 = vmatprep.subr.mxu0 %v93
    %2768 = vmatpush1.msra.mxu0 %v92
    %2769 = vmatprep.subr.mxu0 %v101
    %2770 = vmatpush1.msra.mxu0 %v100
    %2771 = vmatprep.subr.mxu0 %v109
    %2772 = vmatpush1.msra.mxu0 %v108
    %2773 = vmatprep.subr.mxu0 %v117
    %2774 = vmatpush1.msra.mxu0 %v116
    %2775 = vmatprep.subr.mxu0 %v125
    %2776 = vmatpush1.msra.mxu0 %v124
    %2777 = vmatprep.subr.mxu0 %v133
    %2778 = vmatpush1.msra.mxu0 %v132
    %2779 = vmatprep.subr.mxu0 %v141
    %2780 = vmatpush1.msra.mxu0 %v140
    %2781 = vmatprep.subr.mxu0 %v149
    %2782 = vmatpush1.msra.mxu0 %v148
    %2783 = vmatprep.subr.mxu0 %v157
    %2784 = vmatpush1.msra.mxu0 %v156
    %2785 = vmatprep.subr.mxu0 %v165
    %2786 = vmatpush1.msra.mxu0 %v164
    %2787 = vmatprep.subr.mxu0 %v173
    %2788 = vmatpush1.msra.mxu0 %v172
    %2789 = vmatprep.subr.mxu0 %v181
    %2790 = vmatpush1.msra.mxu0 %v180
    %2791 = vmatprep.subr.mxu0 %v189
    %2792 = vmatpush1.msra.mxu0 %v188
    %2793 = vmatprep.subr.mxu0 %v197
    %2794 = vmatpush1.msra.mxu0 %v196
    %2795 = vmatprep.subr.mxu0 %v205
    %2796 = vmatpush1.msra.mxu0 %v204
    %2797 = vmatprep.subr.mxu0 %v213
    %2798 = vmatpush1.msra.mxu0 %v212
    %2799 = vmatprep.subr.mxu0 %v221
    %2800 = vmatpush1.msra.mxu0 %v220
    %2801 = vmatprep.subr.mxu0 %v229
    %2802 = vmatpush1.msra.mxu0 %v228
    %2803 = vmatprep.subr.mxu0 %v237
    %2804 = vmatpush1.msra.mxu0 %v236
    %2805 = vmatprep.subr.mxu0 %v245
    %2806 = vmatpush1.msra.mxu0 %v244
    %2807 = vmatprep.subr.mxu0 %v253
    %2808 = vmatpush1.msra.mxu0 %v252
    %2809 = vmatprep.subr.mxu0 %v261
    %2810 = vmatpush1.msra.mxu0 %v260
    %2811 = vmatprep.subr.mxu0 %v269
    %2812 = vmatpush1.msra.mxu0 %v268
    %2813 = vmatprep.subr.mxu0 %v277
    %2814 = vmatpush1.msra.mxu0 %v276
    %2815 = vmatprep.subr.mxu0 %v285
    %2816 = vmatpush1.msra.mxu0 %v284
    %2817 = vmatprep.subr.mxu0 %v293
    %2818 = vmatpush1.msra.mxu0 %v292
    %2819 = vmatprep.subr.mxu0 %v301
    %2820 = vmatpush1.msra.mxu0 %v300
    %2821 = vmatprep.subr.mxu0 %v309
    %2822 = vmatpush1.msra.mxu0 %v308
    %2823 = vmatprep.mubr.f32.mxu0 %v2497
    %2824 = vmatmul.mubr.f32.gmra.mrb[0].mxu0 %v2496
    %v2825 = vpop.f32.mrb[0].mxu0
    %v2826 = vadd.f32 %v2535, %v2825
    %v2827 = vpop.f32.mrb[0].mxu0
    %v2828 = vadd.f32 %v2537, %v2827
    %2829 = vdwg.mxu0
    %v2830 = vld [vmem:[%s1 + $0x50] sm:$0xff]
    %v2831 = vld [vmem:[%s1 + $0x58] sm:$0xff]
    %v2834 = vcombine.high %v2830, %v2830
    %v2836 = vunpack.c.l.s4 1983009808
    %v2837 = vunpack.c.0.s8 %v2836
    %v2838 = vlaneseq
    %v2839 = vshrl.u32 %v2838, 7
    %v2840 = vsub.s32 %v2837, %v2839
    %v2841 = vrot.slane %v2830, %v2840
    %v2843 = vunpack.c.l.s4 1983009808
    %v2844 = vunpack.c.0.s8 %v2843
    %v2845 = vlaneseq
    %v2846 = vshrl.u32 %v2845, 7
    %v2847 = vsub.s32 %v2844, %v2846
    %v2848 = vrot.slane %v2834, %v2847
    %v2849 = vcombine.high %v2841, %v2841
    %v2850 = vcombine.high %v2848, %v2848
    %v2851 = vcombine.high %v2831, %v2831
    %v2853 = vunpack.c.l.s4 1983009808
    %v2854 = vunpack.c.0.s8 %v2853
    %v2855 = vlaneseq
    %v2856 = vshrl.u32 %v2855, 7
    %v2857 = vsub.s32 %v2854, %v2856
    %v2858 = vrot.slane %v2831, %v2857
    %v2860 = vunpack.c.l.s4 1983009808
    %v2861 = vunpack.c.0.s8 %v2860
    %v2862 = vlaneseq
    %v2863 = vshrl.u32 %v2862, 7
    %v2864 = vsub.s32 %v2861, %v2863
    %v2865 = vrot.slane %v2851, %v2864
    %v2866 = vcombine.high %v2858, %v2858
    %v2867 = vcombine.high %v2865, %v2865
    %v2876 = vadd.f32 %v2613, %v2841
    %v2877 = vadd.f32 %v2615, %v2849
    %v2878 = vadd.f32 %v2684, %v2848
    %v2879 = vadd.f32 %v2686, %v2850
    %v2880 = vadd.f32 %v2755, %v2858
    %v2881 = vadd.f32 %v2757, %v2866
    %v2882 = vadd.f32 %v2826, %v2865
    %v2883 = vadd.f32 %v2828, %v2867
    %v2884 = vxor.u32 %v2876, 2147483648
    %v2885 = vxor.u32 %v2877, 2147483648
    %v2886 = vmul.f32 %v2884, 1.442695
    %v2887 = vpow.pop %v2886
    %v2888 = vmul.f32 %v2885, 1.442695
    %v2889 = vpow.pop %v2888
    %v2890 = vadd.f32 %v2887, 1.0
    %v2891 = vadd.f32 %v2889, 1.0
    %v2892 = vrcp.pop %v2890
    %v2893 = vmul.f32 1.0, %v2892
    %v2894 = vrcp.pop %v2891
    %v2895 = vmul.f32 1.0, %v2894
    %v2896 = vxor.u32 %v2878, 2147483648
    %v2897 = vxor.u32 %v2879, 2147483648
    %v2898 = vmul.f32 %v2896, 1.442695
    %v2899 = vpow.pop %v2898
    %v2900 = vmul.f32 %v2897, 1.442695
    %v2901 = vpow.pop %v2900
    %v2902 = vadd.f32 %v2899, 1.0
    %v2903 = vadd.f32 %v2901, 1.0
    %v2904 = vrcp.pop %v2902
    %v2905 = vmul.f32 1.0, %v2904
    %v2906 = vrcp.pop %v2903
    %v2907 = vmul.f32 1.0, %v2906
    %v2908 = vtanh.pop %v2880
    %v2909 = vtanh.pop %v2881
    %v2910 = vxor.u32 %v2882, 2147483648
    %v2911 = vxor.u32 %v2883, 2147483648
    %v2912 = vmul.f32 %v2910, 1.442695
    %v2913 = vpow.pop %v2912
    %v2914 = vmul.f32 %v2911, 1.442695
    %v2915 = vpow.pop %v2914
    %v2916 = vadd.f32 %v2913, 1.0
    %v2917 = vadd.f32 %v2915, 1.0
    %v2918 = vrcp.pop %v2916
    %v2919 = vmul.f32 1.0, %v2918
    %v2920 = vrcp.pop %v2917
    %v2921 = vmul.f32 1.0, %v2920
    %v2922 = vmul.f32 %v2905, %v2498
    %v2923 = vmul.f32 %v2907, %v2499
    %v2924 = vmul.f32 %v2893, %v2908
    %v2925 = vmul.f32 %v2895, %v2909
    %v2926 = vadd.f32 %v2922, %v2924
    %v2927 = vadd.f32 %v2923, %v2925
    %v2928 = vtanh.pop %v2926
    %v2929 = vtanh.pop %v2927
    %v2930 = vmul.f32 %v2919, %v2928
    %v2931 = vmul.f32 %v2921, %v2929
    %vm2932 = vcmp.gt.s32.totalorder %v52, 5
    %vm2933 = vcmp.gt.s32.totalorder %v53, 5
    %v2934 = vsel %vm2932, %v2930, %v2496
    %v2935 = vsel %vm2933, %v2931, %v2497
    %v2936 = vsel %vm2932, %v2926, %v2498
    %v2937 = vsel %vm2933, %v2927, %v2499
    %v2938 = vld [vmem:[%s0 + $0x60] sm:$0xff]
    %v2939 = vld [vmem:[%s0 + $0x68] sm:$0xff]
    %v2942 = vcombine.high %v2938, %v2938
    %v2944 = vunpack.c.l.s4 1983009808
    %v2945 = vunpack.c.0.s8 %v2944
    %v2946 = vlaneseq
    %v2947 = vshrl.u32 %v2946, 7
    %v2948 = vsub.s32 %v2945, %v2947
    %v2949 = vrot.slane %v2938, %v2948
    %v2951 = vunpack.c.l.s4 1983009808
    %v2952 = vunpack.c.0.s8 %v2951
    %v2953 = vlaneseq
    %v2954 = vshrl.u32 %v2953, 7
    %v2955 = vsub.s32 %v2952, %v2954
    %v2956 = vrot.slane %v2942, %v2955
    %v2957 = vcombine.high %v2949, %v2949
    %v2958 = vcombine.high %v2956, %v2956
    %v2959 = vcombine.high %v2939, %v2939
    %v2961 = vunpack.c.l.s4 1983009808
    %v2962 = vunpack.c.0.s8 %v2961
    %v2963 = vlaneseq
    %v2964 = vshrl.u32 %v2963, 7
    %v2965 = vsub.s32 %v2962, %v2964
    %v2966 = vrot.slane %v2939, %v2965
    %v2968 = vunpack.c.l.s4 1983009808
    %v2969 = vunpack.c.0.s8 %v2968
    %v2970 = vlaneseq
    %v2971 = vshrl.u32 %v2970, 7
    %v2972 = vsub.s32 %v2969, %v2971
    %v2973 = vrot.slane %v2959, %v2972
    %v2974 = vcombine.high %v2966, %v2966
    %v2975 = vcombine.high %v2973, %v2973
    %2984 = vmatprep.subr.mxu0 %v55
    %2985 = vmatpush1.msra.mxu0 %v54
    %2986 = vmatprep.subr.mxu0 %v63
    %2987 = vmatpush1.msra.mxu0 %v62
    %2988 = vmatprep.subr.mxu0 %v71
    %2989 = vmatpush1.msra.mxu0 %v70
    %2990 = vmatprep.subr.mxu0 %v79
    %2991 = vmatpush1.msra.mxu0 %v78
    %2992 = vmatprep.subr.mxu0 %v87
    %2993 = vmatpush1.msra.mxu0 %v86
    %2994 = vmatprep.subr.mxu0 %v95
    %2995 = vmatpush1.msra.mxu0 %v94
    %2996 = vmatprep.subr.mxu0 %v103
    %2997 = vmatpush1.msra.mxu0 %v102
    %2998 = vmatprep.subr.mxu0 %v111
    %2999 = vmatpush1.msra.mxu0 %v110
    %3000 = vmatprep.subr.mxu0 %v119
    %3001 = vmatpush1.msra.mxu0 %v118
    %3002 = vmatprep.subr.mxu0 %v127
    %3003 = vmatpush1.msra.mxu0 %v126
    %3004 = vmatprep.subr.mxu0 %v135
    %3005 = vmatpush1.msra.mxu0 %v134
    %3006 = vmatprep.subr.mxu0 %v143
    %3007 = vmatpush1.msra.mxu0 %v142
    %3008 = vmatprep.subr.mxu0 %v151
    %3009 = vmatpush1.msra.mxu0 %v150
    %3010 = vmatprep.subr.mxu0 %v159
    %3011 = vmatpush1.msra.mxu0 %v158
    %3012 = vmatprep.subr.mxu0 %v167
    %3013 = vmatpush1.msra.mxu0 %v166
    %3014 = vmatprep.subr.mxu0 %v175
    %3015 = vmatpush1.msra.mxu0 %v174
    %3016 = vmatprep.subr.mxu0 %v183
    %3017 = vmatpush1.msra.mxu0 %v182
    %3018 = vmatprep.subr.mxu0 %v191
    %3019 = vmatpush1.msra.mxu0 %v190
    %3020 = vmatprep.subr.mxu0 %v199
    %3021 = vmatpush1.msra.mxu0 %v198
    %3022 = vmatprep.subr.mxu0 %v207
    %3023 = vmatpush1.msra.mxu0 %v206
    %3024 = vmatprep.subr.mxu0 %v215
    %3025 = vmatpush1.msra.mxu0 %v214
    %3026 = vmatprep.subr.mxu0 %v223
    %3027 = vmatpush1.msra.mxu0 %v222
    %3028 = vmatprep.subr.mxu0 %v231
    %3029 = vmatpush1.msra.mxu0 %v230
    %3030 = vmatprep.subr.mxu0 %v239
    %3031 = vmatpush1.msra.mxu0 %v238
    %3032 = vmatprep.subr.mxu0 %v247
    %3033 = vmatpush1.msra.mxu0 %v246
    %3034 = vmatprep.subr.mxu0 %v255
    %3035 = vmatpush1.msra.mxu0 %v254
    %3036 = vmatprep.subr.mxu0 %v263
    %3037 = vmatpush1.msra.mxu0 %v262
    %3038 = vmatprep.subr.mxu0 %v271
    %3039 = vmatpush1.msra.mxu0 %v270
    %3040 = vmatprep.subr.mxu0 %v279
    %3041 = vmatpush1.msra.mxu0 %v278
    %3042 = vmatprep.subr.mxu0 %v287
    %3043 = vmatpush1.msra.mxu0 %v286
    %3044 = vmatprep.subr.mxu0 %v295
    %3045 = vmatpush1.msra.mxu0 %v294
    %3046 = vmatprep.subr.mxu0 %v303
    %3047 = vmatpush1.msra.mxu0 %v302
    %3048 = vmatprep.mubr.f32.mxu0 %v2935
    %3049 = vmatmul.mubr.f32.gmra.mrb[0].mxu0 %v2934
    %v3050 = vpop.f32.mrb[0].mxu0
    %v3051 = vadd.f32 %v2949, %v3050
    %v3052 = vpop.f32.mrb[0].mxu0
    %v3053 = vadd.f32 %v2957, %v3052
    %3054 = vdwg.mxu0
    %3055 = vmatprep.subr.mxu0 %v57
    %3056 = vmatpush1.msra.mxu0 %v56
    %3057 = vmatprep.subr.mxu0 %v65
    %3058 = vmatpush1.msra.mxu0 %v64
    %3059 = vmatprep.subr.mxu0 %v73
    %3060 = vmatpush1.msra.mxu0 %v72
    %3061 = vmatprep.subr.mxu0 %v81
    %3062 = vmatpush1.msra.mxu0 %v80
    %3063 = vmatprep.subr.mxu0 %v89
    %3064 = vmatpush1.msra.mxu0 %v88
    %3065 = vmatprep.subr.mxu0 %v97
    %3066 = vmatpush1.msra.mxu0 %v96
    %3067 = vmatprep.subr.mxu0 %v105
    %3068 = vmatpush1.msra.mxu0 %v104
    %3069 = vmatprep.subr.mxu0 %v113
    %3070 = vmatpush1.msra.mxu0 %v112
    %3071 = vmatprep.subr.mxu0 %v121
    %3072 = vmatpush1.msra.mxu0 %v120
    %3073 = vmatprep.subr.mxu0 %v129
    %3074 = vmatpush1.msra.mxu0 %v128
    %3075 = vmatprep.subr.mxu0 %v137
    %3076 = vmatpush1.msra.mxu0 %v136
    %3077 = vmatprep.subr.mxu0 %v145
    %3078 = vmatpush1.msra.mxu0 %v144
    %3079 = vmatprep.subr.mxu0 %v153
    %3080 = vmatpush1.msra.mxu0 %v152
    %3081 = vmatprep.subr.mxu0 %v161
    %3082 = vmatpush1.msra.mxu0 %v160
    %3083 = vmatprep.subr.mxu0 %v169
    %3084 = vmatpush1.msra.mxu0 %v168
    %3085 = vmatprep.subr.mxu0 %v177
    %3086 = vmatpush1.msra.mxu0 %v176
    %3087 = vmatprep.subr.mxu0 %v185
    %3088 = vmatpush1.msra.mxu0 %v184
    %3089 = vmatprep.subr.mxu0 %v193
    %3090 = vmatpush1.msra.mxu0 %v192
    %3091 = vmatprep.subr.mxu0 %v201
    %3092 = vmatpush1.msra.mxu0 %v200
    %3093 = vmatprep.subr.mxu0 %v209
    %3094 = vmatpush1.msra.mxu0 %v208
    %3095 = vmatprep.subr.mxu0 %v217
    %3096 = vmatpush1.msra.mxu0 %v216
    %3097 = vmatprep.subr.mxu0 %v225
    %3098 = vmatpush1.msra.mxu0 %v224
    %3099 = vmatprep.subr.mxu0 %v233
    %3100 = vmatpush1.msra.mxu0 %v232
    %3101 = vmatprep.subr.mxu0 %v241
    %3102 = vmatpush1.msra.mxu0 %v240
    %3103 = vmatprep.subr.mxu0 %v249
    %3104 = vmatpush1.msra.mxu0 %v248
    %3105 = vmatprep.subr.mxu0 %v257
    %3106 = vmatpush1.msra.mxu0 %v256
    %3107 = vmatprep.subr.mxu0 %v265
    %3108 = vmatpush1.msra.mxu0 %v264
    %3109 = vmatprep.subr.mxu0 %v273
    %3110 = vmatpush1.msra.mxu0 %v272
    %3111 = vmatprep.subr.mxu0 %v281
    %3112 = vmatpush1.msra.mxu0 %v280
    %3113 = vmatprep.subr.mxu0 %v289
    %3114 = vmatpush1.msra.mxu0 %v288
    %3115 = vmatprep.subr.mxu0 %v297
    %3116 = vmatpush1.msra.mxu0 %v296
    %3117 = vmatprep.subr.mxu0 %v305
    %3118 = vmatpush1.msra.mxu0 %v304
    %3119 = vmatprep.mubr.f32.mxu0 %v2935
    %3120 = vmatmul.mubr.f32.gmra.mrb[0].mxu0 %v2934
    %v3121 = vpop.f32.mrb[0].mxu0
    %v3122 = vadd.f32 %v2956, %v3121
    %v3123 = vpop.f32.mrb[0].mxu0
    %v3124 = vadd.f32 %v2958, %v3123
    %3125 = vdwg.mxu0
    %3126 = vmatprep.subr.mxu0 %v59
    %3127 = vmatpush1.msra.mxu0 %v58
    %3128 = vmatprep.subr.mxu0 %v67
    %3129 = vmatpush1.msra.mxu0 %v66
    %3130 = vmatprep.subr.mxu0 %v75
    %3131 = vmatpush1.msra.mxu0 %v74
    %3132 = vmatprep.subr.mxu0 %v83
    %3133 = vmatpush1.msra.mxu0 %v82
    %3134 = vmatprep.subr.mxu0 %v91
    %3135 = vmatpush1.msra.mxu0 %v90
    %3136 = vmatprep.subr.mxu0 %v99
    %3137 = vmatpush1.msra.mxu0 %v98
    %3138 = vmatprep.subr.mxu0 %v107
    %3139 = vmatpush1.msra.mxu0 %v106
    %3140 = vmatprep.subr.mxu0 %v115
    %3141 = vmatpush1.msra.mxu0 %v114
    %3142 = vmatprep.subr.mxu0 %v123
    %3143 = vmatpush1.msra.mxu0 %v122
    %3144 = vmatprep.subr.mxu0 %v131
    %3145 = vmatpush1.msra.mxu0 %v130
    %3146 = vmatprep.subr.mxu0 %v139
    %3147 = vmatpush1.msra.mxu0 %v138
    %3148 = vmatprep.subr.mxu0 %v147
    %3149 = vmatpush1.msra.mxu0 %v146
    %3150 = vmatprep.subr.mxu0 %v155
    %3151 = vmatpush1.msra.mxu0 %v154
    %3152 = vmatprep.subr.mxu0 %v163
    %3153 = vmatpush1.msra.mxu0 %v162
    %3154 = vmatprep.subr.mxu0 %v171
    %3155 = vmatpush1.msra.mxu0 %v170
    %3156 = vmatprep.subr.mxu0 %v179
    %3157 = vmatpush1.msra.mxu0 %v178
    %3158 = vmatprep.subr.mxu0 %v187
    %3159 = vmatpush1.msra.mxu0 %v186
    %3160 = vmatprep.subr.mxu0 %v195
    %3161 = vmatpush1.msra.mxu0 %v194
    %3162 = vmatprep.subr.mxu0 %v203
    %3163 = vmatpush1.msra.mxu0 %v202
    %3164 = vmatprep.subr.mxu0 %v211
    %3165 = vmatpush1.msra.mxu0 %v210
    %3166 = vmatprep.subr.mxu0 %v219
    %3167 = vmatpush1.msra.mxu0 %v218
    %3168 = vmatprep.subr.mxu0 %v227
    %3169 = vmatpush1.msra.mxu0 %v226
    %3170 = vmatprep.subr.mxu0 %v235
    %3171 = vmatpush1.msra.mxu0 %v234
    %3172 = vmatprep.subr.mxu0 %v243
    %3173 = vmatpush1.msra.mxu0 %v242
    %3174 = vmatprep.subr.mxu0 %v251
    %3175 = vmatpush1.msra.mxu0 %v250
    %3176 = vmatprep.subr.mxu0 %v259
    %3177 = vmatpush1.msra.mxu0 %v258
    %3178 = vmatprep.subr.mxu0 %v267
    %3179 = vmatpush1.msra.mxu0 %v266
    %3180 = vmatprep.subr.mxu0 %v275
    %3181 = vmatpush1.msra.mxu0 %v274
    %3182 = vmatprep.subr.mxu0 %v283
    %3183 = vmatpush1.msra.mxu0 %v282
    %3184 = vmatprep.subr.mxu0 %v291
    %3185 = vmatpush1.msra.mxu0 %v290
    %3186 = vmatprep.subr.mxu0 %v299
    %3187 = vmatpush1.msra.mxu0 %v298
    %3188 = vmatprep.subr.mxu0 %v307
    %3189 = vmatpush1.msra.mxu0 %v306
    %3190 = vmatprep.mubr.f32.mxu0 %v2935
    %3191 = vmatmul.mubr.f32.gmra.mrb[0].mxu0 %v2934
    %v3192 = vpop.f32.mrb[0].mxu0
    %v3193 = vadd.f32 %v2966, %v3192
    %v3194 = vpop.f32.mrb[0].mxu0
    %v3195 = vadd.f32 %v2974, %v3194
    %3196 = vdwg.mxu0
    %3197 = vmatprep.subr.mxu0 %v61
    %3198 = vmatpush1.msra.mxu0 %v60
    %3199 = vmatprep.subr.mxu0 %v69
    %3200 = vmatpush1.msra.mxu0 %v68
    %3201 = vmatprep.subr.mxu0 %v77
    %3202 = vmatpush1.msra.mxu0 %v76
    %3203 = vmatprep.subr.mxu0 %v85
    %3204 = vmatpush1.msra.mxu0 %v84
    %3205 = vmatprep.subr.mxu0 %v93
    %3206 = vmatpush1.msra.mxu0 %v92
    %3207 = vmatprep.subr.mxu0 %v101
    %3208 = vmatpush1.msra.mxu0 %v100
    %3209 = vmatprep.subr.mxu0 %v109
    %3210 = vmatpush1.msra.mxu0 %v108
    %3211 = vmatprep.subr.mxu0 %v117
    %3212 = vmatpush1.msra.mxu0 %v116
    %3213 = vmatprep.subr.mxu0 %v125
    %3214 = vmatpush1.msra.mxu0 %v124
    %3215 = vmatprep.subr.mxu0 %v133
    %3216 = vmatpush1.msra.mxu0 %v132
    %3217 = vmatprep.subr.mxu0 %v141
    %3218 = vmatpush1.msra.mxu0 %v140
    %3219 = vmatprep.subr.mxu0 %v149
    %3220 = vmatpush1.msra.mxu0 %v148
    %3221 = vmatprep.subr.mxu0 %v157
    %3222 = vmatpush1.msra.mxu0 %v156
    %3223 = vmatprep.subr.mxu0 %v165
    %3224 = vmatpush1.msra.mxu0 %v164
    %3225 = vmatprep.subr.mxu0 %v173
    %3226 = vmatpush1.msra.mxu0 %v172
    %3227 = vmatprep.subr.mxu0 %v181
    %3228 = vmatpush1.msra.mxu0 %v180
    %3229 = vmatprep.subr.mxu0 %v189
    %3230 = vmatpush1.msra.mxu0 %v188
    %3231 = vmatprep.subr.mxu0 %v197
    %3232 = vmatpush1.msra.mxu0 %v196
    %3233 = vmatprep.subr.mxu0 %v205
    %3234 = vmatpush1.msra.mxu0 %v204
    %3235 = vmatprep.subr.mxu0 %v213
    %3236 = vmatpush1.msra.mxu0 %v212
    %3237 = vmatprep.subr.mxu0 %v221
    %3238 = vmatpush1.msra.mxu0 %v220
    %3239 = vmatprep.subr.mxu0 %v229
    %3240 = vmatpush1.msra.mxu0 %v228
    %3241 = vmatprep.subr.mxu0 %v237
    %3242 = vmatpush1.msra.mxu0 %v236
    %3243 = vmatprep.subr.mxu0 %v245
    %3244 = vmatpush1.msra.mxu0 %v244
    %3245 = vmatprep.subr.mxu0 %v253
    %3246 = vmatpush1.msra.mxu0 %v252
    %3247 = vmatprep.subr.mxu0 %v261
    %3248 = vmatpush1.msra.mxu0 %v260
    %3249 = vmatprep.subr.mxu0 %v269
    %3250 = vmatpush1.msra.mxu0 %v268
    %3251 = vmatprep.subr.mxu0 %v277
    %3252 = vmatpush1.msra.mxu0 %v276
    %3253 = vmatprep.subr.mxu0 %v285
    %3254 = vmatpush1.msra.mxu0 %v284
    %3255 = vmatprep.subr.mxu0 %v293
    %3256 = vmatpush1.msra.mxu0 %v292
    %3257 = vmatprep.subr.mxu0 %v301
    %3258 = vmatpush1.msra.mxu0 %v300
    %3259 = vmatprep.subr.mxu0 %v309
    %3260 = vmatpush1.msra.mxu0 %v308
    %3261 = vmatprep.mubr.f32.mxu0 %v2935
    %3262 = vmatmul.mubr.f32.gmra.mrb[0].mxu0 %v2934
    %v3263 = vpop.f32.mrb[0].mxu0
    %v3264 = vadd.f32 %v2973, %v3263
    %v3265 = vpop.f32.mrb[0].mxu0
    %v3266 = vadd.f32 %v2975, %v3265
    %3267 = vdwg.mxu0
    %v3268 = vxor.u32 %v3051, 2147483648
    %v3269 = vxor.u32 %v3053, 2147483648
    %v3270 = vmul.f32 %v3268, 1.442695
    %v3271 = vpow.pop %v3270
    %v3272 = vmul.f32 %v3269, 1.442695
    %v3273 = vpow.pop %v3272
    %v3274 = vadd.f32 %v3271, 1.0
    %v3275 = vadd.f32 %v3273, 1.0
    %v3276 = vrcp.pop %v3274
    %v3277 = vmul.f32 1.0, %v3276
    %v3278 = vrcp.pop %v3275
    %v3279 = vmul.f32 1.0, %v3278
    %v3280 = vxor.u32 %v3122, 2147483648
    %v3281 = vxor.u32 %v3124, 2147483648
    %v3282 = vmul.f32 %v3280, 1.442695
    %v3283 = vpow.pop %v3282
    %v3284 = vmul.f32 %v3281, 1.442695
    %v3285 = vpow.pop %v3284
    %v3286 = vadd.f32 %v3283, 1.0
    %v3287 = vadd.f32 %v3285, 1.0
    %v3288 = vrcp.pop %v3286
    %v3289 = vmul.f32 1.0, %v3288
    %v3290 = vrcp.pop %v3287
    %v3291 = vmul.f32 1.0, %v3290
    %v3292 = vtanh.pop %v3193
    %v3293 = vtanh.pop %v3195
    %v3294 = vxor.u32 %v3264, 2147483648
    %v3295 = vxor.u32 %v3266, 2147483648
    %v3296 = vmul.f32 %v3294, 1.442695
    %v3297 = vpow.pop %v3296
    %v3298 = vmul.f32 %v3295, 1.442695
    %v3299 = vpow.pop %v3298
    %v3300 = vadd.f32 %v3297, 1.0
    %v3301 = vadd.f32 %v3299, 1.0
    %v3302 = vrcp.pop %v3300
    %v3303 = vmul.f32 1.0, %v3302
    %v3304 = vrcp.pop %v3301
    %v3305 = vmul.f32 1.0, %v3304
    %v3306 = vmul.f32 %v3289, %v2936
    %v3307 = vmul.f32 %v3291, %v2937
    %v3308 = vmul.f32 %v3277, %v3292
    %v3309 = vmul.f32 %v3279, %v3293
    %v3310 = vadd.f32 %v3306, %v3308
    %v3311 = vadd.f32 %v3307, %v3309
    %v3312 = vtanh.pop %v3310
    %v3313 = vtanh.pop %v3311
    %v3314 = vmul.f32 %v3303, %v3312
    %v3315 = vmul.f32 %v3305, %v3313
    %vm3316 = vcmp.gt.s32.totalorder %v52, 6
    %vm3317 = vcmp.gt.s32.totalorder %v53, 6
    %v3318 = vsel %vm3316, %v3314, %v2934
    %v3319 = vsel %vm3317, %v3315, %v2935
    %v3320 = vsel %vm3316, %v3310, %v2936
    %v3321 = vsel %vm3317, %v3311, %v2937
    %v3322 = vld [vmem:[%s0 + $0x70] sm:$0xff]
    %v3323 = vld [vmem:[%s0 + $0x78] sm:$0xff]
    %v3326 = vcombine.high %v3322, %v3322
    %v3328 = vunpack.c.l.s4 1983009808
    %v3329 = vunpack.c.0.s8 %v3328
    %v3330 = vlaneseq
    %v3331 = vshrl.u32 %v3330, 7
    %v3332 = vsub.s32 %v3329, %v3331
    %v3333 = vrot.slane %v3322, %v3332
    %v3335 = vunpack.c.l.s4 1983009808
    %v3336 = vunpack.c.0.s8 %v3335
    %v3337 = vlaneseq
    %v3338 = vshrl.u32 %v3337, 7
    %v3339 = vsub.s32 %v3336, %v3338
    %v3340 = vrot.slane %v3326, %v3339
    %v3341 = vcombine.high %v3333, %v3333
    %v3342 = vcombine.high %v3340, %v3340
    %v3343 = vcombine.high %v3323, %v3323
    %v3345 = vunpack.c.l.s4 1983009808
    %v3346 = vunpack.c.0.s8 %v3345
    %v3347 = vlaneseq
    %v3348 = vshrl.u32 %v3347, 7
    %v3349 = vsub.s32 %v3346, %v3348
    %v3350 = vrot.slane %v3323, %v3349
    %v3352 = vunpack.c.l.s4 1983009808
    %v3353 = vunpack.c.0.s8 %v3352
    %v3354 = vlaneseq
    %v3355 = vshrl.u32 %v3354, 7
    %v3356 = vsub.s32 %v3353, %v3355
    %v3357 = vrot.slane %v3343, %v3356
    %v3358 = vcombine.high %v3350, %v3350
    %v3359 = vcombine.high %v3357, %v3357
    %3368 = vmatprep.subr.mxu0 %v55
    %3369 = vmatpush1.msra.mxu0 %v54
    %3370 = vmatprep.subr.mxu0 %v63
    %3371 = vmatpush1.msra.mxu0 %v62
    %3372 = vmatprep.subr.mxu0 %v71
    %3373 = vmatpush1.msra.mxu0 %v70
    %3374 = vmatprep.subr.mxu0 %v79
    %3375 = vmatpush1.msra.mxu0 %v78
    %3376 = vmatprep.subr.mxu0 %v87
    %3377 = vmatpush1.msra.mxu0 %v86
    %3378 = vmatprep.subr.mxu0 %v95
    %3379 = vmatpush1.msra.mxu0 %v94
    %3380 = vmatprep.subr.mxu0 %v103
    %3381 = vmatpush1.msra.mxu0 %v102
    %3382 = vmatprep.subr.mxu0 %v111
    %3383 = vmatpush1.msra.mxu0 %v110
    %3384 = vmatprep.subr.mxu0 %v119
    %3385 = vmatpush1.msra.mxu0 %v118
    %3386 = vmatprep.subr.mxu0 %v127
    %3387 = vmatpush1.msra.mxu0 %v126
    %3388 = vmatprep.subr.mxu0 %v135
    %3389 = vmatpush1.msra.mxu0 %v134
    %3390 = vmatprep.subr.mxu0 %v143
    %3391 = vmatpush1.msra.mxu0 %v142
    %3392 = vmatprep.subr.mxu0 %v151
    %3393 = vmatpush1.msra.mxu0 %v150
    %3394 = vmatprep.subr.mxu0 %v159
    %3395 = vmatpush1.msra.mxu0 %v158
    %3396 = vmatprep.subr.mxu0 %v167
    %3397 = vmatpush1.msra.mxu0 %v166
    %3398 = vmatprep.subr.mxu0 %v175
    %3399 = vmatpush1.msra.mxu0 %v174
    %3400 = vmatprep.subr.mxu0 %v183
    %3401 = vmatpush1.msra.mxu0 %v182
    %3402 = vmatprep.subr.mxu0 %v191
    %3403 = vmatpush1.msra.mxu0 %v190
    %3404 = vmatprep.subr.mxu0 %v199
    %3405 = vmatpush1.msra.mxu0 %v198
    %3406 = vmatprep.subr.mxu0 %v207
    %3407 = vmatpush1.msra.mxu0 %v206
    %3408 = vmatprep.subr.mxu0 %v215
    %3409 = vmatpush1.msra.mxu0 %v214
    %3410 = vmatprep.subr.mxu0 %v223
    %3411 = vmatpush1.msra.mxu0 %v222
    %3412 = vmatprep.subr.mxu0 %v231
    %3413 = vmatpush1.msra.mxu0 %v230
    %3414 = vmatprep.subr.mxu0 %v239
    %3415 = vmatpush1.msra.mxu0 %v238
    %3416 = vmatprep.subr.mxu0 %v247
    %3417 = vmatpush1.msra.mxu0 %v246
    %3418 = vmatprep.subr.mxu0 %v255
    %3419 = vmatpush1.msra.mxu0 %v254
    %3420 = vmatprep.subr.mxu0 %v263
    %3421 = vmatpush1.msra.mxu0 %v262
    %3422 = vmatprep.subr.mxu0 %v271
    %3423 = vmatpush1.msra.mxu0 %v270
    %3424 = vmatprep.subr.mxu0 %v279
    %3425 = vmatpush1.msra.mxu0 %v278
    %3426 = vmatprep.subr.mxu0 %v287
    %3427 = vmatpush1.msra.mxu0 %v286
    %3428 = vmatprep.subr.mxu0 %v295
    %3429 = vmatpush1.msra.mxu0 %v294
    %3430 = vmatprep.subr.mxu0 %v303
    %3431 = vmatpush1.msra.mxu0 %v302
    %3432 = vmatprep.mubr.f32.mxu0 %v3319
    %3433 = vmatmul.mubr.f32.gmra.mrb[0].mxu0 %v3318
    %v3434 = vpop.f32.mrb[0].mxu0
    %v3435 = vadd.f32 %v3333, %v3434
    %v3436 = vpop.f32.mrb[0].mxu0
    %v3437 = vadd.f32 %v3341, %v3436
    %3438 = vdwg.mxu0
    %3439 = vmatprep.subr.mxu0 %v57
    %3440 = vmatpush1.msra.mxu0 %v56
    %3441 = vmatprep.subr.mxu0 %v65
    %3442 = vmatpush1.msra.mxu0 %v64
    %3443 = vmatprep.subr.mxu0 %v73
    %3444 = vmatpush1.msra.mxu0 %v72
    %3445 = vmatprep.subr.mxu0 %v81
    %3446 = vmatpush1.msra.mxu0 %v80
    %3447 = vmatprep.subr.mxu0 %v89
    %3448 = vmatpush1.msra.mxu0 %v88
    %3449 = vmatprep.subr.mxu0 %v97
    %3450 = vmatpush1.msra.mxu0 %v96
    %3451 = vmatprep.subr.mxu0 %v105
    %3452 = vmatpush1.msra.mxu0 %v104
    %3453 = vmatprep.subr.mxu0 %v113
    %3454 = vmatpush1.msra.mxu0 %v112
    %3455 = vmatprep.subr.mxu0 %v121
    %3456 = vmatpush1.msra.mxu0 %v120
    %3457 = vmatprep.subr.mxu0 %v129
    %3458 = vmatpush1.msra.mxu0 %v128
    %3459 = vmatprep.subr.mxu0 %v137
    %3460 = vmatpush1.msra.mxu0 %v136
    %3461 = vmatprep.subr.mxu0 %v145
    %3462 = vmatpush1.msra.mxu0 %v144
    %3463 = vmatprep.subr.mxu0 %v153
    %3464 = vmatpush1.msra.mxu0 %v152
    %3465 = vmatprep.subr.mxu0 %v161
    %3466 = vmatpush1.msra.mxu0 %v160
    %3467 = vmatprep.subr.mxu0 %v169
    %3468 = vmatpush1.msra.mxu0 %v168
    %3469 = vmatprep.subr.mxu0 %v177
    %3470 = vmatpush1.msra.mxu0 %v176
    %3471 = vmatprep.subr.mxu0 %v185
    %3472 = vmatpush1.msra.mxu0 %v184
    %3473 = vmatprep.subr.mxu0 %v193
    %3474 = vmatpush1.msra.mxu0 %v192
    %3475 = vmatprep.subr.mxu0 %v201
    %3476 = vmatpush1.msra.mxu0 %v200
    %3477 = vmatprep.subr.mxu0 %v209
    %3478 = vmatpush1.msra.mxu0 %v208
    %3479 = vmatprep.subr.mxu0 %v217
    %3480 = vmatpush1.msra.mxu0 %v216
    %3481 = vmatprep.subr.mxu0 %v225
    %3482 = vmatpush1.msra.mxu0 %v224
    %3483 = vmatprep.subr.mxu0 %v233
    %3484 = vmatpush1.msra.mxu0 %v232
    %3485 = vmatprep.subr.mxu0 %v241
    %3486 = vmatpush1.msra.mxu0 %v240
    %3487 = vmatprep.subr.mxu0 %v249
    %3488 = vmatpush1.msra.mxu0 %v248
    %3489 = vmatprep.subr.mxu0 %v257
    %3490 = vmatpush1.msra.mxu0 %v256
    %3491 = vmatprep.subr.mxu0 %v265
    %3492 = vmatpush1.msra.mxu0 %v264
    %3493 = vmatprep.subr.mxu0 %v273
    %3494 = vmatpush1.msra.mxu0 %v272
    %3495 = vmatprep.subr.mxu0 %v281
    %3496 = vmatpush1.msra.mxu0 %v280
    %3497 = vmatprep.subr.mxu0 %v289
    %3498 = vmatpush1.msra.mxu0 %v288
    %3499 = vmatprep.subr.mxu0 %v297
    %3500 = vmatpush1.msra.mxu0 %v296
    %3501 = vmatprep.subr.mxu0 %v305
    %3502 = vmatpush1.msra.mxu0 %v304
    %3503 = vmatprep.mubr.f32.mxu0 %v3319
    %3504 = vmatmul.mubr.f32.gmra.mrb[0].mxu0 %v3318
    %v3505 = vpop.f32.mrb[0].mxu0
    %v3506 = vadd.f32 %v3340, %v3505
    %v3507 = vpop.f32.mrb[0].mxu0
    %v3508 = vadd.f32 %v3342, %v3507
    %3509 = vdwg.mxu0
    %3510 = vmatprep.subr.mxu0 %v59
    %3511 = vmatpush1.msra.mxu0 %v58
    %3512 = vmatprep.subr.mxu0 %v67
    %3513 = vmatpush1.msra.mxu0 %v66
    %3514 = vmatprep.subr.mxu0 %v75
    %3515 = vmatpush1.msra.mxu0 %v74
    %3516 = vmatprep.subr.mxu0 %v83
    %3517 = vmatpush1.msra.mxu0 %v82
    %3518 = vmatprep.subr.mxu0 %v91
    %3519 = vmatpush1.msra.mxu0 %v90
    %3520 = vmatprep.subr.mxu0 %v99
    %3521 = vmatpush1.msra.mxu0 %v98
    %3522 = vmatprep.subr.mxu0 %v107
    %3523 = vmatpush1.msra.mxu0 %v106
    %3524 = vmatprep.subr.mxu0 %v115
    %3525 = vmatpush1.msra.mxu0 %v114
    %3526 = vmatprep.subr.mxu0 %v123
    %3527 = vmatpush1.msra.mxu0 %v122
    %3528 = vmatprep.subr.mxu0 %v131
    %3529 = vmatpush1.msra.mxu0 %v130
    %3530 = vmatprep.subr.mxu0 %v139
    %3531 = vmatpush1.msra.mxu0 %v138
    %3532 = vmatprep.subr.mxu0 %v147
    %3533 = vmatpush1.msra.mxu0 %v146
    %3534 = vmatprep.subr.mxu0 %v155
    %3535 = vmatpush1.msra.mxu0 %v154
    %3536 = vmatprep.subr.mxu0 %v163
    %3537 = vmatpush1.msra.mxu0 %v162
    %3538 = vmatprep.subr.mxu0 %v171
    %3539 = vmatpush1.msra.mxu0 %v170
    %3540 = vmatprep.subr.mxu0 %v179
    %3541 = vmatpush1.msra.mxu0 %v178
    %3542 = vmatprep.subr.mxu0 %v187
    %3543 = vmatpush1.msra.mxu0 %v186
    %3544 = vmatprep.subr.mxu0 %v195
    %3545 = vmatpush1.msra.mxu0 %v194
    %3546 = vmatprep.subr.mxu0 %v203
    %3547 = vmatpush1.msra.mxu0 %v202
    %3548 = vmatprep.subr.mxu0 %v211
    %3549 = vmatpush1.msra.mxu0 %v210
    %3550 = vmatprep.subr.mxu0 %v219
    %3551 = vmatpush1.msra.mxu0 %v218
    %3552 = vmatprep.subr.mxu0 %v227
    %3553 = vmatpush1.msra.mxu0 %v226
    %3554 = vmatprep.subr.mxu0 %v235
    %3555 = vmatpush1.msra.mxu0 %v234
    %3556 = vmatprep.subr.mxu0 %v243
    %3557 = vmatpush1.msra.mxu0 %v242
    %3558 = vmatprep.subr.mxu0 %v251
    %3559 = vmatpush1.msra.mxu0 %v250
    %3560 = vmatprep.subr.mxu0 %v259
    %3561 = vmatpush1.msra.mxu0 %v258
    %3562 = vmatprep.subr.mxu0 %v267
    %3563 = vmatpush1.msra.mxu0 %v266
    %3564 = vmatprep.subr.mxu0 %v275
    %3565 = vmatpush1.msra.mxu0 %v274
    %3566 = vmatprep.subr.mxu0 %v283
    %3567 = vmatpush1.msra.mxu0 %v282
    %3568 = vmatprep.subr.mxu0 %v291
    %3569 = vmatpush1.msra.mxu0 %v290
    %3570 = vmatprep.subr.mxu0 %v299
    %3571 = vmatpush1.msra.mxu0 %v298
    %3572 = vmatprep.subr.mxu0 %v307
    %3573 = vmatpush1.msra.mxu0 %v306
    %3574 = vmatprep.mubr.f32.mxu0 %v3319
    %3575 = vmatmul.mubr.f32.gmra.mrb[0].mxu0 %v3318
    %v3576 = vpop.f32.mrb[0].mxu0
    %v3577 = vadd.f32 %v3350, %v3576
    %v3578 = vpop.f32.mrb[0].mxu0
    %v3579 = vadd.f32 %v3358, %v3578
    %3580 = vdwg.mxu0
    %3581 = vmatprep.subr.mxu0 %v61
    %3582 = vmatpush1.msra.mxu0 %v60
    %3583 = vmatprep.subr.mxu0 %v69
    %3584 = vmatpush1.msra.mxu0 %v68
    %3585 = vmatprep.subr.mxu0 %v77
    %3586 = vmatpush1.msra.mxu0 %v76
    %3587 = vmatprep.subr.mxu0 %v85
    %3588 = vmatpush1.msra.mxu0 %v84
    %3589 = vmatprep.subr.mxu0 %v93
    %3590 = vmatpush1.msra.mxu0 %v92
    %3591 = vmatprep.subr.mxu0 %v101
    %3592 = vmatpush1.msra.mxu0 %v100
    %3593 = vmatprep.subr.mxu0 %v109
    %3594 = vmatpush1.msra.mxu0 %v108
    %3595 = vmatprep.subr.mxu0 %v117
    %3596 = vmatpush1.msra.mxu0 %v116
    %3597 = vmatprep.subr.mxu0 %v125
    %3598 = vmatpush1.msra.mxu0 %v124
    %3599 = vmatprep.subr.mxu0 %v133
    %3600 = vmatpush1.msra.mxu0 %v132
    %3601 = vmatprep.subr.mxu0 %v141
    %3602 = vmatpush1.msra.mxu0 %v140
    %3603 = vmatprep.subr.mxu0 %v149
    %3604 = vmatpush1.msra.mxu0 %v148
    %3605 = vmatprep.subr.mxu0 %v157
    %3606 = vmatpush1.msra.mxu0 %v156
    %3607 = vmatprep.subr.mxu0 %v165
    %3608 = vmatpush1.msra.mxu0 %v164
    %3609 = vmatprep.subr.mxu0 %v173
    %3610 = vmatpush1.msra.mxu0 %v172
    %3611 = vmatprep.subr.mxu0 %v181
    %3612 = vmatpush1.msra.mxu0 %v180
    %3613 = vmatprep.subr.mxu0 %v189
    %3614 = vmatpush1.msra.mxu0 %v188
    %3615 = vmatprep.subr.mxu0 %v197
    %3616 = vmatpush1.msra.mxu0 %v196
    %3617 = vmatprep.subr.mxu0 %v205
    %3618 = vmatpush1.msra.mxu0 %v204
    %3619 = vmatprep.subr.mxu0 %v213
    %3620 = vmatpush1.msra.mxu0 %v212
    %3621 = vmatprep.subr.mxu0 %v221
    %3622 = vmatpush1.msra.mxu0 %v220
    %3623 = vmatprep.subr.mxu0 %v229
    %3624 = vmatpush1.msra.mxu0 %v228
    %3625 = vmatprep.subr.mxu0 %v237
    %3626 = vmatpush1.msra.mxu0 %v236
    %3627 = vmatprep.subr.mxu0 %v245
    %3628 = vmatpush1.msra.mxu0 %v244
    %3629 = vmatprep.subr.mxu0 %v253
    %3630 = vmatpush1.msra.mxu0 %v252
    %3631 = vmatprep.subr.mxu0 %v261
    %3632 = vmatpush1.msra.mxu0 %v260
    %3633 = vmatprep.subr.mxu0 %v269
    %3634 = vmatpush1.msra.mxu0 %v268
    %3635 = vmatprep.subr.mxu0 %v277
    %3636 = vmatpush1.msra.mxu0 %v276
    %3637 = vmatprep.subr.mxu0 %v285
    %3638 = vmatpush1.msra.mxu0 %v284
    %3639 = vmatprep.subr.mxu0 %v293
    %3640 = vmatpush1.msra.mxu0 %v292
    %3641 = vmatprep.subr.mxu0 %v301
    %3642 = vmatpush1.msra.mxu0 %v300
    %3643 = vmatprep.subr.mxu0 %v309
    %3644 = vmatpush1.msra.mxu0 %v308
    %3645 = vmatprep.mubr.f32.mxu0 %v3319
    %3646 = vmatmul.mubr.f32.gmra.mrb[0].mxu0 %v3318
    %v3647 = vpop.f32.mrb[0].mxu0
    %v3648 = vadd.f32 %v3357, %v3647
    %v3649 = vpop.f32.mrb[0].mxu0
    %v3650 = vadd.f32 %v3359, %v3649
    %3651 = vdwg.mxu0
    %v3652 = vxor.u32 %v3435, 2147483648
    %v3653 = vxor.u32 %v3437, 2147483648
    %v3654 = vmul.f32 %v3652, 1.442695
    %v3655 = vpow.pop %v3654
    %v3656 = vmul.f32 %v3653, 1.442695
    %v3657 = vpow.pop %v3656
    %v3658 = vadd.f32 %v3655, 1.0
    %v3659 = vadd.f32 %v3657, 1.0
    %v3660 = vrcp.pop %v3658
    %v3661 = vmul.f32 1.0, %v3660
    %v3662 = vrcp.pop %v3659
    %v3663 = vmul.f32 1.0, %v3662
    %v3664 = vxor.u32 %v3506, 2147483648
    %v3665 = vxor.u32 %v3508, 2147483648
    %v3666 = vmul.f32 %v3664, 1.442695
    %v3667 = vpow.pop %v3666
    %v3668 = vmul.f32 %v3665, 1.442695
    %v3669 = vpow.pop %v3668
    %v3670 = vadd.f32 %v3667, 1.0
    %v3671 = vadd.f32 %v3669, 1.0
    %v3672 = vrcp.pop %v3670
    %v3673 = vmul.f32 1.0, %v3672
    %v3674 = vrcp.pop %v3671
    %v3675 = vmul.f32 1.0, %v3674
    %v3676 = vtanh.pop %v3577
    %v3677 = vtanh.pop %v3579
    %v3678 = vxor.u32 %v3648, 2147483648
    %v3679 = vxor.u32 %v3650, 2147483648
    %v3680 = vmul.f32 %v3678, 1.442695
    %v3681 = vpow.pop %v3680
    %v3682 = vmul.f32 %v3679, 1.442695
    %v3683 = vpow.pop %v3682
    %v3684 = vadd.f32 %v3681, 1.0
    %v3685 = vadd.f32 %v3683, 1.0
    %v3686 = vrcp.pop %v3684
    %v3687 = vmul.f32 1.0, %v3686
    %v3688 = vrcp.pop %v3685
    %v3689 = vmul.f32 1.0, %v3688
    %v3690 = vmul.f32 %v3673, %v3320
    %v3691 = vmul.f32 %v3675, %v3321
    %v3692 = vmul.f32 %v3661, %v3676
    %v3693 = vmul.f32 %v3663, %v3677
    %v3694 = vadd.f32 %v3690, %v3692
    %v3695 = vadd.f32 %v3691, %v3693
    %v3696 = vtanh.pop %v3694
    %v3697 = vtanh.pop %v3695
    %v3698 = vmul.f32 %v3687, %v3696
    %v3699 = vmul.f32 %v3689, %v3697
    %vm3700 = vcmp.gt.s32.totalorder %v52, 7
    %vm3701 = vcmp.gt.s32.totalorder %v53, 7
    %v3702 = vsel %vm3700, %v3698, %v3318
    %v3703 = vsel %vm3701, %v3699, %v3319
    %v3704 = vld [vmem:[%s5] sm:$0xff]
    %v3705 = vld [vmem:[%s5 + $0x8] sm:$0xff]
    %v3706 = vld [vmem:[%s5 + $0x10] sm:$0xff]
    %v3707 = vld [vmem:[%s5 + $0x18] sm:$0xff]
    %v3708 = vld [vmem:[%s5 + $0x20] sm:$0xff]
    %v3709 = vld [vmem:[%s5 + $0x28] sm:$0xff]
    %v3710 = vld [vmem:[%s5 + $0x30] sm:$0xff]
    %v3711 = vld [vmem:[%s5 + $0x38] sm:$0xff]
    %v3712 = vld [vmem:[%s5 + $0x40] sm:$0xff]
    %v3713 = vld [vmem:[%s5 + $0x48] sm:$0xff]
    %v3714 = vld [vmem:[%s5 + $0x50] sm:$0xff]
    %v3715 = vld [vmem:[%s5 + $0x58] sm:$0xff]
    %v3716 = vld [vmem:[%s5 + $0x60] sm:$0xff]
    %v3717 = vld [vmem:[%s5 + $0x68] sm:$0xff]
    %v3718 = vld [vmem:[%s5 + $0x70] sm:$0xff]
    %v3719 = vld [vmem:[%s5 + $0x78] sm:$0xff]
    %v3720 = vld [vmem:[%s5 + $0x80] sm:$0xff]
    %v3721 = vld [vmem:[%s5 + $0x88] sm:$0xff]
    %v3722 = vld [vmem:[%s5 + $0x90] sm:$0xff]
    %v3723 = vld [vmem:[%s5 + $0x98] sm:$0xff]
    %v3724 = vld [vmem:[%s5 + $0xa0] sm:$0xff]
    %v3725 = vld [vmem:[%s5 + $0xa8] sm:$0xff]
    %v3726 = vld [vmem:[%s5 + $0xb0] sm:$0xff]
    %v3727 = vld [vmem:[%s5 + $0xb8] sm:$0xff]
    %v3728 = vld [vmem:[%s5 + $0xc0] sm:$0xff]
    %v3729 = vld [vmem:[%s5 + $0xc8] sm:$0xff]
    %v3730 = vld [vmem:[%s5 + $0xd0] sm:$0xff]
    %v3731 = vld [vmem:[%s5 + $0xd8] sm:$0xff]
    %v3732 = vld [vmem:[%s5 + $0xe0] sm:$0xff]
    %v3733 = vld [vmem:[%s5 + $0xe8] sm:$0xff]
    %v3734 = vld [vmem:[%s5 + $0xf0] sm:$0xff]
    %v3735 = vld [vmem:[%s5 + $0xf8] sm:$0xff]
    %v3736 = vld [vmem:[%s5 + $0x100] sm:$0xff]
    %v3737 = vld [vmem:[%s5 + $0x108] sm:$0xff]
    %v3738 = vld [vmem:[%s5 + $0x110] sm:$0xff]
    %v3739 = vld [vmem:[%s5 + $0x118] sm:$0xff]
    %v3740 = vld [vmem:[%s5 + $0x120] sm:$0xff]
    %v3741 = vld [vmem:[%s5 + $0x128] sm:$0xff]
    %v3742 = vld [vmem:[%s5 + $0x130] sm:$0xff]
    %v3743 = vld [vmem:[%s5 + $0x138] sm:$0xff]
    %v3744 = vld [vmem:[%s5 + $0x140] sm:$0xff]
    %v3745 = vld [vmem:[%s5 + $0x148] sm:$0xff]
    %v3746 = vld [vmem:[%s5 + $0x150] sm:$0xff]
    %v3747 = vld [vmem:[%s5 + $0x158] sm:$0xff]
    %v3748 = vld [vmem:[%s5 + $0x160] sm:$0xff]
    %v3749 = vld [vmem:[%s5 + $0x168] sm:$0xff]
    %v3750 = vld [vmem:[%s5 + $0x170] sm:$0xff]
    %v3751 = vld [vmem:[%s5 + $0x178] sm:$0xff]
    %v3752 = vld [vmem:[%s5 + $0x180] sm:$0xff]
    %v3753 = vld [vmem:[%s5 + $0x188] sm:$0xff]
    %v3754 = vld [vmem:[%s5 + $0x190] sm:$0xff]
    %v3755 = vld [vmem:[%s5 + $0x198] sm:$0xff]
    %v3756 = vld [vmem:[%s5 + $0x1a0] sm:$0xff]
    %v3757 = vld [vmem:[%s5 + $0x1a8] sm:$0xff]
    %v3758 = vld [vmem:[%s5 + $0x1b0] sm:$0xff]
    %v3759 = vld [vmem:[%s5 + $0x1b8] sm:$0xff]
    %v3760 = vld [vmem:[%s5 + $0x1c0] sm:$0xff]
    %v3761 = vld [vmem:[%s5 + $0x1c8] sm:$0xff]
    %v3762 = vld [vmem:[%s5 + $0x1d0] sm:$0xff]
    %v3763 = vld [vmem:[%s5 + $0x1d8] sm:$0xff]
    %v3764 = vld [vmem:[%s5 + $0x1e0] sm:$0xff]
    %v3765 = vld [vmem:[%s5 + $0x1e8] sm:$0xff]
    %v3766 = vld [vmem:[%s5 + $0x1f0] sm:$0xff]
    %v3767 = vld [vmem:[%s5 + $0x1f8] sm:$0xff]
    %v3768 = vld [vmem:[%s6] sm:$0x3]
    %v3770 = vlaneseq
    %v3771 = vshrl.u32 %v3770, 7
    %v3772 = vsub.s32 0, %v3771
    %v3773 = vrot.slane %v3768, %v3772
    %v3774 = vlaneseq
    %v3775 = vshrl.u32 %v3774, 7
    %v3776 = vsub.s32 1, %v3775
    %v3777 = vrot.slane %v3768, %v3776
    %3780 = vmatprep.subr.mxu0 %v3705
    %3781 = vmatpush1.msra.mxu0 %v3704
    %3782 = vmatprep.subr.mxu0 %v3707
    %3783 = vmatpush1.msra.mxu0 %v3706
    %3784 = vmatprep.subr.mxu0 %v3709
    %3785 = vmatpush1.msra.mxu0 %v3708
    %3786 = vmatprep.subr.mxu0 %v3711
    %3787 = vmatpush1.msra.mxu0 %v3710
    %3788 = vmatprep.subr.mxu0 %v3713
    %3789 = vmatpush1.msra.mxu0 %v3712
    %3790 = vmatprep.subr.mxu0 %v3715
    %3791 = vmatpush1.msra.mxu0 %v3714
    %3792 = vmatprep.subr.mxu0 %v3717
    %3793 = vmatpush1.msra.mxu0 %v3716
    %3794 = vmatprep.subr.mxu0 %v3719
    %3795 = vmatpush1.msra.mxu0 %v3718
    %3796 = vmatprep.subr.mxu0 %v3721
    %3797 = vmatpush1.msra.mxu0 %v3720
    %3798 = vmatprep.subr.mxu0 %v3723
    %3799 = vmatpush1.msra.mxu0 %v3722
    %3800 = vmatprep.subr.mxu0 %v3725
    %3801 = vmatpush1.msra.mxu0 %v3724
    %3802 = vmatprep.subr.mxu0 %v3727
    %3803 = vmatpush1.msra.mxu0 %v3726
    %3804 = vmatprep.subr.mxu0 %v3729
    %3805 = vmatpush1.msra.mxu0 %v3728
    %3806 = vmatprep.subr.mxu0 %v3731
    %3807 = vmatpush1.msra.mxu0 %v3730
    %3808 = vmatprep.subr.mxu0 %v3733
    %3809 = vmatpush1.msra.mxu0 %v3732
    %3810 = vmatprep.subr.mxu0 %v3735
    %3811 = vmatpush1.msra.mxu0 %v3734
    %3812 = vmatprep.subr.mxu0 %v3737
    %3813 = vmatpush1.msra.mxu0 %v3736
    %3814 = vmatprep.subr.mxu0 %v3739
    %3815 = vmatpush1.msra.mxu0 %v3738
    %3816 = vmatprep.subr.mxu0 %v3741
    %3817 = vmatpush1.msra.mxu0 %v3740
    %3818 = vmatprep.subr.mxu0 %v3743
    %3819 = vmatpush1.msra.mxu0 %v3742
    %3820 = vmatprep.subr.mxu0 %v3745
    %3821 = vmatpush1.msra.mxu0 %v3744
    %3822 = vmatprep.subr.mxu0 %v3747
    %3823 = vmatpush1.msra.mxu0 %v3746
    %3824 = vmatprep.subr.mxu0 %v3749
    %3825 = vmatpush1.msra.mxu0 %v3748
    %3826 = vmatprep.subr.mxu0 %v3751
    %3827 = vmatpush1.msra.mxu0 %v3750
    %3828 = vmatprep.subr.mxu0 %v3753
    %3829 = vmatpush1.msra.mxu0 %v3752
    %3830 = vmatprep.subr.mxu0 %v3755
    %3831 = vmatpush1.msra.mxu0 %v3754
    %3832 = vmatprep.subr.mxu0 %v3757
    %3833 = vmatpush1.msra.mxu0 %v3756
    %3834 = vmatprep.subr.mxu0 %v3759
    %3835 = vmatpush1.msra.mxu0 %v3758
    %3836 = vmatprep.subr.mxu0 %v3761
    %3837 = vmatpush1.msra.mxu0 %v3760
    %3838 = vmatprep.subr.mxu0 %v3763
    %3839 = vmatpush1.msra.mxu0 %v3762
    %3840 = vmatprep.subr.mxu0 %v3765
    %3841 = vmatpush1.msra.mxu0 %v3764
    %3842 = vmatprep.subr.mxu0 %v3767
    %3843 = vmatpush1.msra.mxu0 %v3766
    %3844 = vmatprep.mubr.f32.mxu0 %v3703
    %3845 = vmatmul.mubr.f32.gmra.mrb[0].mxu0 %v3702
    %v3846 = vpop.f32.mrb[0].mxu0
    %v3847 = vadd.f32 %v3773, %v3846
    %v3848 = vpop.f32.mrb[0].mxu0
    %v3849 = vadd.f32 %v3777, %v3848
    %3850 = vdwg.mxu0
    %v3851 = vtanh.pop %v3847
    %v3852 = vtanh.pop %v3849
    %v3853 = vld [vmem:[%s7] sm:$0xff]
    %v3854 = vld [vmem:[%s7 + $0x8] sm:$0xff]
    %v3855 = vld [vmem:[%s7 + $0x10] sm:$0xff]
    %v3856 = vld [vmem:[%s7 + $0x18] sm:$0xff]
    %v3857 = vld [vmem:[%s7 + $0x20] sm:$0xff]
    %v3858 = vld [vmem:[%s7 + $0x28] sm:$0xff]
    %v3859 = vld [vmem:[%s7 + $0x30] sm:$0xff]
    %v3860 = vld [vmem:[%s7 + $0x38] sm:$0xff]
    %v3861 = vld [vmem:[%s7 + $0x40] sm:$0xff]
    %v3862 = vld [vmem:[%s7 + $0x48] sm:$0xff]
    %v3863 = vld [vmem:[%s7 + $0x50] sm:$0xff]
    %v3864 = vld [vmem:[%s7 + $0x58] sm:$0xff]
    %v3865 = vld [vmem:[%s7 + $0x60] sm:$0xff]
    %v3866 = vld [vmem:[%s7 + $0x68] sm:$0xff]
    %v3867 = vld [vmem:[%s7 + $0x70] sm:$0xff]
    %v3868 = vld [vmem:[%s7 + $0x78] sm:$0xff]
    %v3869 = vld [vmem:[%s7 + $0x80] sm:$0xff]
    %v3870 = vld [vmem:[%s7 + $0x88] sm:$0xff]
    %v3871 = vld [vmem:[%s7 + $0x90] sm:$0xff]
    %v3872 = vld [vmem:[%s7 + $0x98] sm:$0xff]
    %v3873 = vld [vmem:[%s7 + $0xa0] sm:$0xff]
    %v3874 = vld [vmem:[%s7 + $0xa8] sm:$0xff]
    %v3875 = vld [vmem:[%s7 + $0xb0] sm:$0xff]
    %v3876 = vld [vmem:[%s7 + $0xb8] sm:$0xff]
    %v3877 = vld [vmem:[%s7 + $0xc0] sm:$0xff]
    %v3878 = vld [vmem:[%s7 + $0xc8] sm:$0xff]
    %v3879 = vld [vmem:[%s7 + $0xd0] sm:$0xff]
    %v3880 = vld [vmem:[%s7 + $0xd8] sm:$0xff]
    %v3881 = vld [vmem:[%s7 + $0xe0] sm:$0xff]
    %v3882 = vld [vmem:[%s7 + $0xe8] sm:$0xff]
    %v3883 = vld [vmem:[%s7 + $0xf0] sm:$0xff]
    %v3884 = vld [vmem:[%s7 + $0xf8] sm:$0xff]
    %v3885 = vld [vmem:[%s7 + $0x100] sm:$0xff]
    %v3886 = vld [vmem:[%s7 + $0x108] sm:$0xff]
    %v3887 = vld [vmem:[%s7 + $0x110] sm:$0xff]
    %v3888 = vld [vmem:[%s7 + $0x118] sm:$0xff]
    %v3889 = vld [vmem:[%s7 + $0x120] sm:$0xff]
    %v3890 = vld [vmem:[%s7 + $0x128] sm:$0xff]
    %v3891 = vld [vmem:[%s7 + $0x130] sm:$0xff]
    %v3892 = vld [vmem:[%s7 + $0x138] sm:$0xff]
    %v3893 = vld [vmem:[%s7 + $0x140] sm:$0xff]
    %v3894 = vld [vmem:[%s7 + $0x148] sm:$0xff]
    %v3895 = vld [vmem:[%s7 + $0x150] sm:$0xff]
    %v3896 = vld [vmem:[%s7 + $0x158] sm:$0xff]
    %v3897 = vld [vmem:[%s7 + $0x160] sm:$0xff]
    %v3898 = vld [vmem:[%s7 + $0x168] sm:$0xff]
    %v3899 = vld [vmem:[%s7 + $0x170] sm:$0xff]
    %v3900 = vld [vmem:[%s7 + $0x178] sm:$0xff]
    %v3901 = vld [vmem:[%s7 + $0x180] sm:$0xff]
    %v3902 = vld [vmem:[%s7 + $0x188] sm:$0xff]
    %v3903 = vld [vmem:[%s7 + $0x190] sm:$0xff]
    %v3904 = vld [vmem:[%s7 + $0x198] sm:$0xff]
    %v3905 = vld [vmem:[%s7 + $0x1a0] sm:$0xff]
    %v3906 = vld [vmem:[%s7 + $0x1a8] sm:$0xff]
    %v3907 = vld [vmem:[%s7 + $0x1b0] sm:$0xff]
    %v3908 = vld [vmem:[%s7 + $0x1b8] sm:$0xff]
    %v3909 = vld [vmem:[%s7 + $0x1c0] sm:$0xff]
    %v3910 = vld [vmem:[%s7 + $0x1c8] sm:$0xff]
    %v3911 = vld [vmem:[%s7 + $0x1d0] sm:$0xff]
    %v3912 = vld [vmem:[%s7 + $0x1d8] sm:$0xff]
    %v3913 = vld [vmem:[%s7 + $0x1e0] sm:$0xff]
    %v3914 = vld [vmem:[%s7 + $0x1e8] sm:$0xff]
    %v3915 = vld [vmem:[%s7 + $0x1f0] sm:$0xff]
    %v3916 = vld [vmem:[%s7 + $0x1f8] sm:$0xff]
    %v3917 = vld [vmem:[%s8] sm:$0x3]
    %v3919 = vlaneseq
    %v3920 = vshrl.u32 %v3919, 7
    %v3921 = vsub.s32 0, %v3920
    %v3922 = vrot.slane %v3917, %v3921
    %v3923 = vlaneseq
    %v3924 = vshrl.u32 %v3923, 7
    %v3925 = vsub.s32 1, %v3924
    %v3926 = vrot.slane %v3917, %v3925
    %3929 = vmatprep.subr.mxu0 %v3854
    %3930 = vmatpush1.msra.mxu0 %v3853
    %3931 = vmatprep.subr.mxu0 %v3856
    %3932 = vmatpush1.msra.mxu0 %v3855
    %3933 = vmatprep.subr.mxu0 %v3858
    %3934 = vmatpush1.msra.mxu0 %v3857
    %3935 = vmatprep.subr.mxu0 %v3860
    %3936 = vmatpush1.msra.mxu0 %v3859
    %3937 = vmatprep.subr.mxu0 %v3862
    %3938 = vmatpush1.msra.mxu0 %v3861
    %3939 = vmatprep.subr.mxu0 %v3864
    %3940 = vmatpush1.msra.mxu0 %v3863
    %3941 = vmatprep.subr.mxu0 %v3866
    %3942 = vmatpush1.msra.mxu0 %v3865
    %3943 = vmatprep.subr.mxu0 %v3868
    %3944 = vmatpush1.msra.mxu0 %v3867
    %3945 = vmatprep.subr.mxu0 %v3870
    %3946 = vmatpush1.msra.mxu0 %v3869
    %3947 = vmatprep.subr.mxu0 %v3872
    %3948 = vmatpush1.msra.mxu0 %v3871
    %3949 = vmatprep.subr.mxu0 %v3874
    %3950 = vmatpush1.msra.mxu0 %v3873
    %3951 = vmatprep.subr.mxu0 %v3876
    %3952 = vmatpush1.msra.mxu0 %v3875
    %3953 = vmatprep.subr.mxu0 %v3878
    %3954 = vmatpush1.msra.mxu0 %v3877
    %3955 = vmatprep.subr.mxu0 %v3880
    %3956 = vmatpush1.msra.mxu0 %v3879
    %3957 = vmatprep.subr.mxu0 %v3882
    %3958 = vmatpush1.msra.mxu0 %v3881
    %3959 = vmatprep.subr.mxu0 %v3884
    %3960 = vmatpush1.msra.mxu0 %v3883
    %3961 = vmatprep.subr.mxu0 %v3886
    %3962 = vmatpush1.msra.mxu0 %v3885
    %3963 = vmatprep.subr.mxu0 %v3888
    %3964 = vmatpush1.msra.mxu0 %v3887
    %3965 = vmatprep.subr.mxu0 %v3890
    %3966 = vmatpush1.msra.mxu0 %v3889
    %3967 = vmatprep.subr.mxu0 %v3892
    %3968 = vmatpush1.msra.mxu0 %v3891
    %3969 = vmatprep.subr.mxu0 %v3894
    %3970 = vmatpush1.msra.mxu0 %v3893
    %3971 = vmatprep.subr.mxu0 %v3896
    %3972 = vmatpush1.msra.mxu0 %v3895
    %3973 = vmatprep.subr.mxu0 %v3898
    %3974 = vmatpush1.msra.mxu0 %v3897
    %3975 = vmatprep.subr.mxu0 %v3900
    %3976 = vmatpush1.msra.mxu0 %v3899
    %3977 = vmatprep.subr.mxu0 %v3902
    %3978 = vmatpush1.msra.mxu0 %v3901
    %3979 = vmatprep.subr.mxu0 %v3904
    %3980 = vmatpush1.msra.mxu0 %v3903
    %3981 = vmatprep.subr.mxu0 %v3906
    %3982 = vmatpush1.msra.mxu0 %v3905
    %3983 = vmatprep.subr.mxu0 %v3908
    %3984 = vmatpush1.msra.mxu0 %v3907
    %3985 = vmatprep.subr.mxu0 %v3910
    %3986 = vmatpush1.msra.mxu0 %v3909
    %3987 = vmatprep.subr.mxu0 %v3912
    %3988 = vmatpush1.msra.mxu0 %v3911
    %3989 = vmatprep.subr.mxu0 %v3914
    %3990 = vmatpush1.msra.mxu0 %v3913
    %3991 = vmatprep.subr.mxu0 %v3916
    %3992 = vmatpush1.msra.mxu0 %v3915
    %3993 = vmatprep.mubr.f32.mxu0 %v3852
    %3994 = vmatmul.mubr.f32.gmra.mrb[0].mxu0 %v3851
    %v3995 = vpop.f32.mrb[0].mxu0
    %v3996 = vadd.f32 %v3922, %v3995
    %v3997 = vpop.f32.mrb[0].mxu0
    %v3998 = vadd.f32 %v3926, %v3997
    %3999 = vdwg.mxu0
    %v4000 = vtanh.pop %v3996
    %v4001 = vtanh.pop %v3998
    %v4002 = vld [vmem:[%s9] sm:$0xff]
    %v4003 = vld [vmem:[%s9 + $0x8] sm:$0xff]
    %v4004 = vld [vmem:[%s9 + $0x10] sm:$0xff]
    %v4005 = vld [vmem:[%s9 + $0x18] sm:$0xff]
    %v4006 = vld [vmem:[%s9 + $0x20] sm:$0xff]
    %v4007 = vld [vmem:[%s9 + $0x28] sm:$0xff]
    %v4008 = vld [vmem:[%s9 + $0x30] sm:$0xff]
    %v4009 = vld [vmem:[%s9 + $0x38] sm:$0xff]
    %v4010 = vld [vmem:[%s9 + $0x40] sm:$0xff]
    %v4011 = vld [vmem:[%s9 + $0x48] sm:$0xff]
    %v4012 = vld [vmem:[%s9 + $0x50] sm:$0xff]
    %v4013 = vld [vmem:[%s9 + $0x58] sm:$0xff]
    %v4014 = vld [vmem:[%s9 + $0x60] sm:$0xff]
    %v4015 = vld [vmem:[%s9 + $0x68] sm:$0xff]
    %v4016 = vld [vmem:[%s9 + $0x70] sm:$0xff]
    %v4017 = vld [vmem:[%s9 + $0x78] sm:$0xff]
    %v4018 = vld [vmem:[%s9 + $0x80] sm:$0xff]
    %v4019 = vld [vmem:[%s9 + $0x88] sm:$0xff]
    %v4020 = vld [vmem:[%s9 + $0x90] sm:$0xff]
    %v4021 = vld [vmem:[%s9 + $0x98] sm:$0xff]
    %v4022 = vld [vmem:[%s9 + $0xa0] sm:$0xff]
    %v4023 = vld [vmem:[%s9 + $0xa8] sm:$0xff]
    %v4024 = vld [vmem:[%s9 + $0xb0] sm:$0xff]
    %v4025 = vld [vmem:[%s9 + $0xb8] sm:$0xff]
    %v4026 = vld [vmem:[%s9 + $0xc0] sm:$0xff]
    %v4027 = vld [vmem:[%s9 + $0xc8] sm:$0xff]
    %v4028 = vld [vmem:[%s9 + $0xd0] sm:$0xff]
    %v4029 = vld [vmem:[%s9 + $0xd8] sm:$0xff]
    %v4030 = vld [vmem:[%s9 + $0xe0] sm:$0xff]
    %v4031 = vld [vmem:[%s9 + $0xe8] sm:$0xff]
    %v4032 = vld [vmem:[%s9 + $0xf0] sm:$0xff]
    %v4033 = vld [vmem:[%s9 + $0xf8] sm:$0xff]
    %v4034 = vld [vmem:[%s10] sm:$0x1]
    %v4036 = vlaneseq
    %v4037 = vshrl.u32 %v4036, 7
    %v4038 = vsub.s32 0, %v4037
    %v4039 = vrot.slane %v4034, %v4038
    %4041 = vmatprep.subr.mxu0 0.0
    %4042 = vmatpush1.msra.mxu0 %v4002
    %4043 = vmatprep.subr.mxu0 0.0
    %4044 = vmatpush1.msra.mxu0 %v4003
    %4045 = vmatprep.subr.mxu0 0.0
    %4046 = vmatpush1.msra.mxu0 %v4004
    %4047 = vmatprep.subr.mxu0 0.0
    %4048 = vmatpush1.msra.mxu0 %v4005
    %4049 = vmatprep.subr.mxu0 0.0
    %4050 = vmatpush1.msra.mxu0 %v4006
    %4051 = vmatprep.subr.mxu0 0.0
    %4052 = vmatpush1.msra.mxu0 %v4007
    %4053 = vmatprep.subr.mxu0 0.0
    %4054 = vmatpush1.msra.mxu0 %v4008
    %4055 = vmatprep.subr.mxu0 0.0
    %4056 = vmatpush1.msra.mxu0 %v4009
    %4057 = vmatprep.subr.mxu0 0.0
    %4058 = vmatpush1.msra.mxu0 %v4010
    %4059 = vmatprep.subr.mxu0 0.0
    %4060 = vmatpush1.msra.mxu0 %v4011
    %4061 = vmatprep.subr.mxu0 0.0
    %4062 = vmatpush1.msra.mxu0 %v4012
    %4063 = vmatprep.subr.mxu0 0.0
    %4064 = vmatpush1.msra.mxu0 %v4013
    %4065 = vmatprep.subr.mxu0 0.0
    %4066 = vmatpush1.msra.mxu0 %v4014
    %4067 = vmatprep.subr.mxu0 0.0
    %4068 = vmatpush1.msra.mxu0 %v4015
    %4069 = vmatprep.subr.mxu0 0.0
    %4070 = vmatpush1.msra.mxu0 %v4016
    %4071 = vmatprep.subr.mxu0 0.0
    %4072 = vmatpush1.msra.mxu0 %v4017
    %4073 = vmatprep.subr.mxu0 0.0
    %4074 = vmatpush1.msra.mxu0 %v4018
    %4075 = vmatprep.subr.mxu0 0.0
    %4076 = vmatpush1.msra.mxu0 %v4019
    %4077 = vmatprep.subr.mxu0 0.0
    %4078 = vmatpush1.msra.mxu0 %v4020
    %4079 = vmatprep.subr.mxu0 0.0
    %4080 = vmatpush1.msra.mxu0 %v4021
    %4081 = vmatprep.subr.mxu0 0.0
    %4082 = vmatpush1.msra.mxu0 %v4022
    %4083 = vmatprep.subr.mxu0 0.0
    %4084 = vmatpush1.msra.mxu0 %v4023
    %4085 = vmatprep.subr.mxu0 0.0
    %4086 = vmatpush1.msra.mxu0 %v4024
    %4087 = vmatprep.subr.mxu0 0.0
    %4088 = vmatpush1.msra.mxu0 %v4025
    %4089 = vmatprep.subr.mxu0 0.0
    %4090 = vmatpush1.msra.mxu0 %v4026
    %4091 = vmatprep.subr.mxu0 0.0
    %4092 = vmatpush1.msra.mxu0 %v4027
    %4093 = vmatprep.subr.mxu0 0.0
    %4094 = vmatpush1.msra.mxu0 %v4028
    %4095 = vmatprep.subr.mxu0 0.0
    %4096 = vmatpush1.msra.mxu0 %v4029
    %4097 = vmatprep.subr.mxu0 0.0
    %4098 = vmatpush1.msra.mxu0 %v4030
    %4099 = vmatprep.subr.mxu0 0.0
    %4100 = vmatpush1.msra.mxu0 %v4031
    %4101 = vmatprep.subr.mxu0 0.0
    %4102 = vmatpush1.msra.mxu0 %v4032
    %4103 = vmatprep.subr.mxu0 0.0
    %4104 = vmatpush1.msra.mxu0 %v4033
    %4105 = vmatprep.mubr.f32.mxu0 %v4001
    %4106 = vmatmul.mubr.f32.gmra.mrb[0].mxu0 %v4000
    %v4107 = vpop.f32.mrb[0].mxu0
    %v4108 = vadd.f32 %v4039, %v4107
    %v4109 = vpop.f32.mrb[0].mxu0
    %4110 = vdwg.mxu0
    %v4111 = vtanh.pop %v4108
    %4112 = vst [vmem:[#allocation2] sm:$0x3] %v4111
    // Predicated region
    $region46: #{baseline_forward.1} parent=1 // pred_check
      _
    $region47: #{baseline_forward.1} parent=1 // pred_check_branch
      %4114 = sbr.rel (0) target = $region49
    $region48: #{baseline_forward.1} parent=1 // pred_region
      %s4116 = ssub.s32 32, 32
      %4117 = vsyncadd [#allocation3], %s4116
      %s4119 = sshll.u32 [#allocation2], 4
      %s4120 = int_to_ptr.vmem [resolvable:$true] %s4119
      %4122 = dma.vmem_to_hbm [thread:$0]  %s4120, 32, %s11, [#allocation3]
    $region49: #{baseline_forward.1} parent=1 // pred_fallthru
      _
    // Predicated region
    $region50: #{baseline_forward.1} parent=1 // pred_check
      _
    $region51: #{baseline_forward.1} parent=1 // pred_check_branch
      %4124 = sbr.rel (0) target = $region53
    $region52: #{baseline_forward.1} parent=1 // pred_region
      %4125 = dma.done [#allocation3], 32
    $region53: #{baseline_forward.1} parent=1 // pred_fallthru
      _
    %4126 = vsyncpa [#allocation3], 1

</llo_original>
